<compile_context>
chip_gen: v6e
topology: v6e:2x2x1
jax: 0.10.0
libtpu: 0.0.40
codegen_flags: <defaults>
</compile_context>

<pallas_src>
import functools

import jax
import jax.numpy as jnp
from jax.experimental import pallas as pl
from jax.experimental.pallas import tpu as pltpu


def _mapper_kernel(x_ref, w_ref, b_ref, o_ref):
    # x_ref: (B, K) bf16, w_ref: (K, TN) bf16, b_ref: (1, TN) f32,
    # o_ref: (B, TN) f32.  MXU matmul with f32 accumulation; bias + tanh
    # fused on the f32 accumulator (tanh goes to the EUP, effectively free).
    acc = jnp.dot(x_ref[...], w_ref[...], preferred_element_type=jnp.float32)
    o_ref[...] = jnp.tanh(acc + b_ref[...]).astype(o_ref.dtype)


@functools.partial(jax.jit, static_argnames=("prefix_length", "tile_n"))
def mlp_mapper_forward(x, w, b, *, prefix_length, tile_n=1920):
    """x: (B, clip_dim), w: (clip_dim, out_dim), b: (1, out_dim)."""
    batch, clip_dim = x.shape
    out_dim = w.shape[1]
    assert out_dim % prefix_length == 0
    assert out_dim % tile_n == 0, "tile_n must divide out_dim"
    assert tile_n % 128 == 0, "keep lane-dense output stores"
    grid = (out_dim // tile_n,)

    # Stream activations/weights in bf16 (the big bandwidth win); keep the
    # bias and output in f32 so the nonlinearity sees the f32 accumulator.
    x_lo = x.astype(jnp.bfloat16)
    w_lo = w.astype(jnp.bfloat16)
    b_f32 = b.astype(jnp.float32)

    cost = pl.CostEstimate(
        flops=2 * batch * clip_dim * out_dim,
        transcendentals=batch * out_dim,
        bytes_accessed=(
            clip_dim * out_dim * 2      # W (bf16)
            + batch * clip_dim * 2      # x (bf16)
            + out_dim * 4               # bias (f32)
            + batch * out_dim * 4       # output (f32)
        ),
    )

    y = pl.pallas_call(
        _mapper_kernel,
        out_shape=jax.ShapeDtypeStruct((batch, out_dim), jnp.float32),
        grid_spec=pltpu.PrefetchScalarGridSpec(
            num_scalar_prefetch=0,
            grid=grid,
            in_specs=[
                pl.BlockSpec((batch, clip_dim), lambda j: (0, 0)),   # x (whole)
                pl.BlockSpec((clip_dim, tile_n), lambda j: (0, j)),  # W tile
                pl.BlockSpec((1, tile_n), lambda j: (0, j)),         # bias tile
            ],
            out_specs=pl.BlockSpec((batch, tile_n), lambda j: (0, j)),
        ),
        compiler_params=pltpu.CompilerParams(
            dimension_semantics=("parallel",),
        ),
        cost_estimate=cost,
    )(x_lo, w_lo, b_f32)

    gpt2_dim = out_dim // prefix_length
    return y.astype(x.dtype).reshape(batch, prefix_length, gpt2_dim)


if __name__ == "__main__":
    # Module hyperparameters (defaults of MLPMapper).
    clip_dim = 512
    gpt2_dim = 768
    prefix_length = 10
    out_dim = gpt2_dim * prefix_length  # 7680 = 4 * 1920

    batch = 2

    key = jax.random.PRNGKey(0)
    kx, kw, kb = jax.random.split(key, 3)

    # Deterministic synthetic parameters (nn.Linear shapes; weight stored
    # transposed as (in, out) for the kernel).
    x = jax.random.normal(kx, (batch, clip_dim), dtype=jnp.float32)
    w = jax.random.normal(kw, (clip_dim, out_dim), dtype=jnp.float32) * 0.02
    b = jax.random.normal(kb, (1, out_dim), dtype=jnp.float32) * 0.02

    out = mlp_mapper_forward(x, w, b, prefix_length=prefix_length)
    out = jax.block_until_ready(out)
    assert out.shape == (batch, prefix_length, gpt2_dim)

    # References: full-f32 math (loose tolerance, bf16 weight streaming) and
    # bf16-rounded-input math (tight tolerance, same inputs the kernel saw).
    ref_f32 = jnp.tanh(x @ w + b).reshape(batch, prefix_length, gpt2_dim)
    x_lo = x.astype(jnp.bfloat16).astype(jnp.float32)
    w_lo = w.astype(jnp.bfloat16).astype(jnp.float32)
    ref_lo = jnp.tanh(x_lo @ w_lo + b).reshape(batch, prefix_length, gpt2_dim)

    assert jnp.allclose(out, ref_lo, atol=3e-3, rtol=3e-3), "mismatch vs bf16 reference"
    assert jnp.allclose(out, ref_f32, atol=2e-2, rtol=2e-2), "mismatch vs f32 reference"

    print("KERNEL_OK")
</pallas_src>

<mosaic_0001>
module attributes {stable_mosaic.version = 11 : i64} {
  func.func @_mapper_kernel(%arg0: i32, %arg1: memref<2x512xbf16, #tpu.memory_space<vmem>>, %arg2: memref<512x1920xbf16, #tpu.memory_space<vmem>>, %arg3: memref<1x1920xf32, #tpu.memory_space<vmem>>, %arg4: memref<2x1920xf32, #tpu.memory_space<vmem>>) attributes {dimension_semantics = [#tpu.dimension_semantics<parallel>], iteration_bounds = array<i64: 4>, scalar_prefetch = 0 : i64, scratch_operands = 0 : i64, tpu.core_type = #tpu.core_type<tc>, window_params = [{pipeline_mode = #tpu.pipeline_mode<synchronous>, transform_indices = @transform_0, window_bounds = array<i64: 2, 512>}, {transform_indices = @transform_1, window_bounds = array<i64: 512, 1920>}, {transform_indices = @transform_2, window_bounds = array<i64: 1, 1920>}, {transform_indices = @transform_3, window_bounds = array<i64: 2, 1920>}]} {
    %c0 = arith.constant 0 : index
    %c0_0 = arith.constant 0 : index
    %0 = vector.load %arg1[%c0, %c0_0] : memref<2x512xbf16, #tpu.memory_space<vmem>>, vector<2x512xbf16>
    %c0_1 = arith.constant 0 : index
    %c0_2 = arith.constant 0 : index
    %1 = vector.load %arg2[%c0_1, %c0_2] : memref<512x1920xbf16, #tpu.memory_space<vmem>>, vector<512x1920xbf16>
    %cst = arith.constant dense<0.000000e+00> : vector<2x1920xf32>
    %2 = tpu.matmul %0, %1, %cst {dimension_numbers = #tpu.dot_dimension_numbers<[1], [0], [0], [1], [0, 0, 1, 1], [], []>} : vector<2x512xbf16>, vector<512x1920xbf16>, vector<2x1920xf32> -> vector<2x1920xf32>
    %c0_3 = arith.constant 0 : index
    %c0_4 = arith.constant 0 : index
    %3 = vector.load %arg3[%c0_3, %c0_4] : memref<1x1920xf32, #tpu.memory_space<vmem>>, vector<1x1920xf32>
    %4 = vector.broadcast %3 : vector<1x1920xf32> to vector<2x1920xf32>
    %5 = arith.addf %2, %4 : vector<2x1920xf32>
    %6 = math.tanh %5 : vector<2x1920xf32>
    %c0_5 = arith.constant 0 : index
    %c0_6 = arith.constant 0 : index
    %7 = vector.load %arg4[%c0_5, %c0_6] : memref<2x1920xf32, #tpu.memory_space<vmem>>, vector<2x1920xf32>
    tpu.vector_store %arg4[%c0_5, %c0_6], %6 {strides = array<i32>} : memref<2x1920xf32, #tpu.memory_space<vmem>>, vector<2x1920xf32>,
    return
  }
  func.func @transform_0(%arg0: i32) -> (i32, i32) {
    %c0_i32 = arith.constant 0 : i32
    %c0_i32_0 = arith.constant 0 : i32
    %c0_i32_1 = arith.constant 0 : i32
    return %c0_i32, %c0_i32_0 : i32, i32
  }
  func.func @transform_1(%arg0: i32) -> (i32, i32) {
    %c0_i32 = arith.constant 0 : i32
    %c0_i32_0 = arith.constant 0 : i32
    return %c0_i32, %arg0 : i32, i32
  }
  func.func @transform_2(%arg0: i32) -> (i32, i32) {
    %c0_i32 = arith.constant 0 : i32
    %c0_i32_0 = arith.constant 0 : i32
    return %c0_i32, %arg0 : i32, i32
  }
  func.func @transform_3(%arg0: i32) -> (i32, i32) {
    %c0_i32 = arith.constant 0 : i32
    %c0_i32_0 = arith.constant 0 : i32
    return %c0_i32, %arg0 : i32, i32
  }
}

</mosaic_0001>

<llo_original>
// kernel: mlp_mapper_forward.1
$region0: #{mlp_mapper_forward.1}
  #allocation0 [shape = 'u32[]', space=smem, size = 0x4, offset = 0x4, fixed_abs, tag = 'smem constant byte address 0x4 - core index']
  #allocation1 [shape = 'u32[144,128]{1,0:T(1,128)}', space=vmem, size = 0x12000, scoped, tag = 'internal scratch']
  %s0 = inlined_call_operand.vmem [shape: bf16[2,512], index: 0, kind: input, shape index: {}]
  %s1 = inlined_call_operand.vmem [shape: bf16[512,7680], index: 1, kind: input, shape index: {}]
  %s2 = inlined_call_operand.vmem [shape: f32[1,7680], index: 2, kind: input, shape index: {}]
  %s3 = inlined_call_operand.hbm [shape: f32[2,7680], index: 3, kind: output, shape index: {}]
  %s4 = sld [smem:[#allocation0]]
  $region71: #{mlp_mapper_forward.1} parent=0
    _
  %s6 = ssub.s32 1, %s4
  %s7 = scalar_select 0, %s6, %s4
  $region1: #{mlp_mapper_forward.1} parent=0
    #allocation2 [shape = 'u8[3932160]{0}', space=vmem, size = 0x3c0000, scoped, tag = 'input window, operand 1']
    #allocation3 [shape = 'u8[30720]{0}', space=vmem, size = 0x7800, scoped, tag = 'output window, operand 0']
    #allocation4 [shape = 's32[2]{0}', space=sflag, size = 0x8, scoped, tag = 'scoped memory for mlp_mapper_forward.1']
    %8 = vsyncpa [#allocation4], 0
    %s9 = scalar_lea.sflag [#allocation4], 1
    %10 = vsyncpa %s9, 0
    loop: start=0, step=1, limit=6
    $region2: #{mlp_mapper_forward.1} parent=1 // loop_pre_header
      _
    $region3: #{mlp_mapper_forward.1} parent=1 // loop_header
      %s12 = sphi 0, %s16
      %p13 = scmp.ge.s32.totalorder %s12, 6
      %s20 = sphi 0, %s20
      %s22 = sphi 0, %s20
      %s23 = sphi 0, %s22
      %s37 = sphi 0, %s23
      %s43 = sphi 0, %s45
      %s46 = sphi 0, %s43
      %s47 = sphi 0, %s46
      %s63 = sphi 0, %s47
      %s69 = sphi 0, %s71
      %s72 = sphi 0, %s69
      %s73 = sphi 0, %s72
      %s89 = sphi 0, %s73
      %s95 = sphi 0, %s97
      %s98 = sphi 0, %s95
      %s99 = sphi 0, %s98
      %s115 = sphi 0, %s99
    $region4: #{mlp_mapper_forward.1} parent=1 // loop_header_branch
      %15 = sbr.rel (%p13) target = $region8
    $region5: #{mlp_mapper_forward.1} parent=1 // loop_body
      %s17 = ssub.s32 %s12, 1
      %s18 = ssub.s32 %s12, 2
      %s19 = sadd.s32 %s12, 1
      %s21 = sadd.s32 %s20, 1
      %p24 = scmp.eq.s32.totalorder %s12, 3
      %p25 = scmp.ne.s32.totalorder %s20, %s22
      %p26 = scmp.eq.s32.totalorder %s12, 0
      %p27 = por %p25, %p26
      %p28 = scmp.ne.s32.totalorder %s20, %s22
      %p29 = scmp.eq.s32.totalorder %s17, 3
      %p30 = por %p28, %p29
      %p31 = scmp.ne.s32.totalorder %s22, %s23
      %p32 = scmp.eq.s32.totalorder %s17, 0
      %p33 = por %p31, %p32
      %p34 = scmp.ne.s32.totalorder %s22, %s23
      %p35 = scmp.eq.s32.totalorder %s18, 3
      %p36 = por %p34, %p35
      %p38 = scmp.ne.s32.totalorder %s23, %s37
      %p39 = scmp.eq.s32.totalorder %s18, 0
      %p40 = por %p38, %p39
      %s41 = ssub.s32 %s12, %s19
      %p42 = scmp.eq.s32.totalorder %s41, 0
      %s44 = sadd.s32 %s43, 1
      %s45 = scalar_select %p42, %s43, %s44
      %p48 = pneg %p42
      %p49 = scmp.eq.s32.totalorder %s12, 3
      %p50 = por %p48, %p49
      %p51 = scmp.ne.s32.totalorder %s43, %s46
      %p52 = scmp.eq.s32.totalorder %s12, 0
      %p53 = por %p51, %p52
      %p54 = scmp.ne.s32.totalorder %s43, %s46
      %p55 = scmp.eq.s32.totalorder %s17, 3
      %p56 = por %p54, %p55
      %p57 = scmp.ne.s32.totalorder %s46, %s47
      %p58 = scmp.eq.s32.totalorder %s17, 0
      %p59 = por %p57, %p58
      %p60 = scmp.ne.s32.totalorder %s46, %s47
      %p61 = scmp.eq.s32.totalorder %s18, 3
      %p62 = por %p60, %p61
      %p64 = scmp.ne.s32.totalorder %s47, %s63
      %p65 = scmp.eq.s32.totalorder %s18, 0
      %p66 = por %p64, %p65
      %s67 = ssub.s32 %s12, %s19
      %p68 = scmp.eq.s32.totalorder %s67, 0
      %s70 = sadd.s32 %s69, 1
      %s71 = scalar_select %p68, %s69, %s70
      %p74 = pneg %p68
      %p75 = scmp.eq.s32.totalorder %s12, 3
      %p76 = por %p74, %p75
      %p77 = scmp.ne.s32.totalorder %s69, %s72
      %p78 = scmp.eq.s32.totalorder %s12, 0
      %p79 = por %p77, %p78
      %p80 = scmp.ne.s32.totalorder %s69, %s72
      %p81 = scmp.eq.s32.totalorder %s17, 3
      %p82 = por %p80, %p81
      %p83 = scmp.ne.s32.totalorder %s72, %s73
      %p84 = scmp.eq.s32.totalorder %s17, 0
      %p85 = por %p83, %p84
      %p86 = scmp.ne.s32.totalorder %s72, %s73
      %p87 = scmp.eq.s32.totalorder %s18, 3
      %p88 = por %p86, %p87
      %p90 = scmp.ne.s32.totalorder %s73, %s89
      %p91 = scmp.eq.s32.totalorder %s18, 0
      %p92 = por %p90, %p91
      %s93 = ssub.s32 %s12, %s19
      %p94 = scmp.eq.s32.totalorder %s93, 0
      %s96 = sadd.s32 %s95, 1
      %s97 = scalar_select %p94, %s95, %s96
      %p100 = pneg %p94
      %p101 = scmp.eq.s32.totalorder %s12, 3
      %p102 = por %p100, %p101
      %p103 = scmp.ne.s32.totalorder %s95, %s98
      %p104 = scmp.eq.s32.totalorder %s12, 0
      %p105 = por %p103, %p104
      %p106 = scmp.ne.s32.totalorder %s95, %s98
      %p107 = scmp.eq.s32.totalorder %s17, 3
      %p108 = por %p106, %p107
      %p109 = scmp.ne.s32.totalorder %s98, %s99
      %p110 = scmp.eq.s32.totalorder %s17, 0
      %p111 = por %p109, %p110
      %p112 = scmp.ne.s32.totalorder %s98, %s99
      %p113 = scmp.eq.s32.totalorder %s18, 3
      %p114 = por %p112, %p113
      %p116 = scmp.ne.s32.totalorder %s99, %s115
      %p117 = scmp.eq.s32.totalorder %s18, 0
      %p118 = por %p116, %p117
      %p119 = scmp.le.s32.totalorder 1, %s12
      %p120 = scmp.lt.s32.totalorder %s12, 5
      %p121 = pnand %p119, %p120
      %p122 = pneg %p121
      // Predicated region
      $region9: #{mlp_mapper_forward.1} parent=5 // pred_check
        _
      $region10: #{mlp_mapper_forward.1} parent=5 // pred_check_branch
        %124 = sbr.rel (%p121) target = $region12
      $region11: #{mlp_mapper_forward.1} parent=5 // pred_region
        %s125 = ssub.s32 %s12, 1
        // Predicated region
        $region13: #{mlp_mapper_forward.1} parent=11 // pred_check
          %p126 = pneg %p33
        $region14: #{mlp_mapper_forward.1} parent=11 // pred_check_branch
          %128 = sbr.rel (%p126) target = $region16
        $region15: #{mlp_mapper_forward.1} parent=11 // pred_region
          _
        $region16: #{mlp_mapper_forward.1} parent=11 // pred_fallthru
          _
      $region12: #{mlp_mapper_forward.1} parent=5 // pred_fallthru
        _
      %p129 = scmp.lt.s32.totalorder %s12, 4
      // Predicated region
      $region17: #{mlp_mapper_forward.1} parent=5 // pred_check
        %p130 = pneg %p129
      $region18: #{mlp_mapper_forward.1} parent=5 // pred_check_branch
        %132 = sbr.rel (%p130) target = $region20
      $region19: #{mlp_mapper_forward.1} parent=5 // pred_region
        // Predicated region
        $region21: #{mlp_mapper_forward.1} parent=19 // pred_check
          %p133 = pneg %p53
        $region22: #{mlp_mapper_forward.1} parent=19 // pred_check_branch
          %135 = sbr.rel (%p133) target = $region24
        $region23: #{mlp_mapper_forward.1} parent=19 // pred_region
          %s136 = sand.u32 %s43, 1
          %s137 = sand.u32 %s43, 1
          %s138 = smul.addr %s137, 3840
          %s139 = scalar_lea.vmem [#allocation2], %s138
          %s140 = smul.u32 15, %s12
          %s141 = smul.addr %s140, 4
          %s142 = scalar_lea.vmem %s1, %s141
          // Predicated region
          $region25: #{mlp_mapper_forward.1} parent=23 // pred_check
            _
          $region26: #{mlp_mapper_forward.1} parent=23 // pred_check_branch
            %144 = sbr.rel (0) target = $region28
          $region27: #{mlp_mapper_forward.1} parent=23 // pred_region
            // Predicated region
            $region29: #{mlp_mapper_forward.1} parent=27 // pred_check
              _
            $region30: #{mlp_mapper_forward.1} parent=27 // pred_check_branch
              %146 = sbr.rel (0) target = $region32
            $region31: #{mlp_mapper_forward.1} parent=27 // pred_region
              %s147 = scalar_lea.vmem %s142, 56
              %s148 = scalar_lea.vmem %s139, 56 [#allocation2]
              loop: start=0, step=1, limit=1
              $region33: #{mlp_mapper_forward.1} parent=31 // loop_pre_header
                _
              $region34: #{mlp_mapper_forward.1} parent=31 // loop_header
                %s150 = sphi 0, %s154
                %p151 = scmp.ge.s32.totalorder %s150, 1
                %s155 = sphi %s142, %s142
                %s156 = sphi %s139, %s139
              $region35: #{mlp_mapper_forward.1} parent=31 // loop_header_branch
                %153 = sbr.rel (%p151) target = $region39
              $region36: #{mlp_mapper_forward.1} parent=31 // loop_body
                %v157 = vld [vmem:[%s155] sm:$0xff]
                %158 = vst [vmem:[%s156] sm:$0xff] %v157
                %v159 = vld [vmem:[%s155 + $0x8] sm:$0xff]
                %160 = vst [vmem:[%s156 + $0x8] sm:$0xff] %v159
                %v161 = vld [vmem:[%s155 + $0x10] sm:$0xff]
                %162 = vst [vmem:[%s156 + $0x10] sm:$0xff] %v161
                %v163 = vld [vmem:[%s155 + $0x18] sm:$0xff]
                %164 = vst [vmem:[%s156 + $0x18] sm:$0xff] %v163
                %v165 = vld [vmem:[%s155 + $0x20] sm:$0xff]
                %166 = vst [vmem:[%s156 + $0x20] sm:$0xff] %v165
                %v167 = vld [vmem:[%s155 + $0x28] sm:$0xff]
                %168 = vst [vmem:[%s156 + $0x28] sm:$0xff] %v167
                %v169 = vld [vmem:[%s155 + $0x30] sm:$0xff]
                %170 = vst [vmem:[%s156 + $0x30] sm:$0xff] %v169
                %v171 = vld [vmem:[%s155 + $0xf0] sm:$0xff]
                %172 = vst [vmem:[%s156 + $0x3c] sm:$0xff] %v171
                %v173 = vld [vmem:[%s155 + $0xf8] sm:$0xff]
                %174 = vst [vmem:[%s156 + $0x44] sm:$0xff] %v173
                %v175 = vld [vmem:[%s155 + $0x100] sm:$0xff]
                %176 = vst [vmem:[%s156 + $0x4c] sm:$0xff] %v175
                %v177 = vld [vmem:[%s155 + $0x108] sm:$0xff]
                %178 = vst [vmem:[%s156 + $0x54] sm:$0xff] %v177
                %v179 = vld [vmem:[%s155 + $0x110] sm:$0xff]
                %180 = vst [vmem:[%s156 + $0x5c] sm:$0xff] %v179
                %v181 = vld [vmem:[%s155 + $0x118] sm:$0xff]
                %182 = vst [vmem:[%s156 + $0x64] sm:$0xff] %v181
                %v183 = vld [vmem:[%s155 + $0x120] sm:$0xff]
                %184 = vst [vmem:[%s156 + $0x6c] sm:$0xff] %v183
                %v185 = vld [vmem:[%s155 + $0x1e0] sm:$0xff]
                %186 = vst [vmem:[%s156 + $0x78] sm:$0xff] %v185
                %v187 = vld [vmem:[%s155 + $0x1e8] sm:$0xff]
                %188 = vst [vmem:[%s156 + $0x80] sm:$0xff] %v187
                %v189 = vld [vmem:[%s155 + $0x1f0] sm:$0xff]
                %190 = vst [vmem:[%s156 + $0x88] sm:$0xff] %v189
                %v191 = vld [vmem:[%s155 + $0x1f8] sm:$0xff]
                %192 = vst [vmem:[%s156 + $0x90] sm:$0xff] %v191
                %v193 = vld [vmem:[%s155 + $0x200] sm:$0xff]
                %194 = vst [vmem:[%s156 + $0x98] sm:$0xff] %v193
                %v195 = vld [vmem:[%s155 + $0x208] sm:$0xff]
                %196 = vst [vmem:[%s156 + $0xa0] sm:$0xff] %v195
                %v197 = vld [vmem:[%s155 + $0x210] sm:$0xff]
                %198 = vst [vmem:[%s156 + $0xa8] sm:$0xff] %v197
                %v199 = vld [vmem:[%s155 + $0x2d0] sm:$0xff]
                %200 = vst [vmem:[%s156 + $0xb4] sm:$0xff] %v199
                %v201 = vld [vmem:[%s155 + $0x2d8] sm:$0xff]
                %202 = vst [vmem:[%s156 + $0xbc] sm:$0xff] %v201
                %v203 = vld [vmem:[%s155 + $0x2e0] sm:$0xff]
                %204 = vst [vmem:[%s156 + $0xc4] sm:$0xff] %v203
                %v205 = vld [vmem:[%s155 + $0x2e8] sm:$0xff]
                %206 = vst [vmem:[%s156 + $0xcc] sm:$0xff] %v205
                %v207 = vld [vmem:[%s155 + $0x2f0] sm:$0xff]
                %208 = vst [vmem:[%s156 + $0xd4] sm:$0xff] %v207
                %v209 = vld [vmem:[%s155 + $0x2f8] sm:$0xff]
                %210 = vst [vmem:[%s156 + $0xdc] sm:$0xff] %v209
                %v211 = vld [vmem:[%s155 + $0x300] sm:$0xff]
                %212 = vst [vmem:[%s156 + $0xe4] sm:$0xff] %v211
                %v213 = vld [vmem:[%s155 + $0x3c0] sm:$0xff]
                %214 = vst [vmem:[%s156 + $0xf0] sm:$0xff] %v213
                %v215 = vld [vmem:[%s155 + $0x3c8] sm:$0xff]
                %216 = vst [vmem:[%s156 + $0xf8] sm:$0xff] %v215
                %v217 = vld [vmem:[%s155 + $0x3d0] sm:$0xff]
                %218 = vst [vmem:[%s156 + $0x100] sm:$0xff] %v217
                %v219 = vld [vmem:[%s155 + $0x3d8] sm:$0xff]
                %220 = vst [vmem:[%s156 + $0x108] sm:$0xff] %v219
                %v221 = vld [vmem:[%s155 + $0x3e0] sm:$0xff]
                %222 = vst [vmem:[%s156 + $0x110] sm:$0xff] %v221
                %v223 = vld [vmem:[%s155 + $0x3e8] sm:$0xff]
                %224 = vst [vmem:[%s156 + $0x118] sm:$0xff] %v223
                %v225 = vld [vmem:[%s155 + $0x3f0] sm:$0xff]
                %226 = vst [vmem:[%s156 + $0x120] sm:$0xff] %v225
                %v227 = vld [vmem:[%s155 + $0x4b0] sm:$0xff]
                %228 = vst [vmem:[%s156 + $0x12c] sm:$0xff] %v227
                %v229 = vld [vmem:[%s155 + $0x4b8] sm:$0xff]
                %230 = vst [vmem:[%s156 + $0x134] sm:$0xff] %v229
                %v231 = vld [vmem:[%s155 + $0x4c0] sm:$0xff]
                %232 = vst [vmem:[%s156 + $0x13c] sm:$0xff] %v231
                %v233 = vld [vmem:[%s155 + $0x4c8] sm:$0xff]
                %234 = vst [vmem:[%s156 + $0x144] sm:$0xff] %v233
                %v235 = vld [vmem:[%s155 + $0x4d0] sm:$0xff]
                %236 = vst [vmem:[%s156 + $0x14c] sm:$0xff] %v235
                %v237 = vld [vmem:[%s155 + $0x4d8] sm:$0xff]
                %238 = vst [vmem:[%s156 + $0x154] sm:$0xff] %v237
                %v239 = vld [vmem:[%s155 + $0x4e0] sm:$0xff]
                %240 = vst [vmem:[%s156 + $0x15c] sm:$0xff] %v239
                %v241 = vld [vmem:[%s155 + $0x5a0] sm:$0xff]
                %242 = vst [vmem:[%s156 + $0x168] sm:$0xff] %v241
                %v243 = vld [vmem:[%s155 + $0x5a8] sm:$0xff]
                %244 = vst [vmem:[%s156 + $0x170] sm:$0xff] %v243
                %v245 = vld [vmem:[%s155 + $0x5b0] sm:$0xff]
                %246 = vst [vmem:[%s156 + $0x178] sm:$0xff] %v245
                %v247 = vld [vmem:[%s155 + $0x5b8] sm:$0xff]
                %248 = vst [vmem:[%s156 + $0x180] sm:$0xff] %v247
                %v249 = vld [vmem:[%s155 + $0x5c0] sm:$0xff]
                %250 = vst [vmem:[%s156 + $0x188] sm:$0xff] %v249
                %v251 = vld [vmem:[%s155 + $0x5c8] sm:$0xff]
                %252 = vst [vmem:[%s156 + $0x190] sm:$0xff] %v251
                %v253 = vld [vmem:[%s155 + $0x5d0] sm:$0xff]
                %254 = vst [vmem:[%s156 + $0x198] sm:$0xff] %v253
                %v255 = vld [vmem:[%s155 + $0x690] sm:$0xff]
                %256 = vst [vmem:[%s156 + $0x1a4] sm:$0xff] %v255
                %v257 = vld [vmem:[%s155 + $0x698] sm:$0xff]
                %258 = vst [vmem:[%s156 + $0x1ac] sm:$0xff] %v257
                %v259 = vld [vmem:[%s155 + $0x6a0] sm:$0xff]
                %260 = vst [vmem:[%s156 + $0x1b4] sm:$0xff] %v259
                %v261 = vld [vmem:[%s155 + $0x6a8] sm:$0xff]
                %262 = vst [vmem:[%s156 + $0x1bc] sm:$0xff] %v261
                %v263 = vld [vmem:[%s155 + $0x6b0] sm:$0xff]
                %264 = vst [vmem:[%s156 + $0x1c4] sm:$0xff] %v263
                %v265 = vld [vmem:[%s155 + $0x6b8] sm:$0xff]
                %266 = vst [vmem:[%s156 + $0x1cc] sm:$0xff] %v265
                %v267 = vld [vmem:[%s155 + $0x6c0] sm:$0xff]
                %268 = vst [vmem:[%s156 + $0x1d4] sm:$0xff] %v267
                %v269 = vld [vmem:[%s155 + $0x780] sm:$0xff]
                %270 = vst [vmem:[%s156 + $0x1e0] sm:$0xff] %v269
                %v271 = vld [vmem:[%s155 + $0x788] sm:$0xff]
                %272 = vst [vmem:[%s156 + $0x1e8] sm:$0xff] %v271
                %v273 = vld [vmem:[%s155 + $0x790] sm:$0xff]
                %274 = vst [vmem:[%s156 + $0x1f0] sm:$0xff] %v273
                %v275 = vld [vmem:[%s155 + $0x798] sm:$0xff]
                %276 = vst [vmem:[%s156 + $0x1f8] sm:$0xff] %v275
                %v277 = vld [vmem:[%s155 + $0x7a0] sm:$0xff]
                %278 = vst [vmem:[%s156 + $0x200] sm:$0xff] %v277
                %v279 = vld [vmem:[%s155 + $0x7a8] sm:$0xff]
                %280 = vst [vmem:[%s156 + $0x208] sm:$0xff] %v279
                %v281 = vld [vmem:[%s155 + $0x7b0] sm:$0xff]
                %282 = vst [vmem:[%s156 + $0x210] sm:$0xff] %v281
                %v283 = vld [vmem:[%s155 + $0x870] sm:$0xff]
                %284 = vst [vmem:[%s156 + $0x21c] sm:$0xff] %v283
                %v285 = vld [vmem:[%s155 + $0x878] sm:$0xff]
                %286 = vst [vmem:[%s156 + $0x224] sm:$0xff] %v285
                %v287 = vld [vmem:[%s155 + $0x880] sm:$0xff]
                %288 = vst [vmem:[%s156 + $0x22c] sm:$0xff] %v287
                %v289 = vld [vmem:[%s155 + $0x888] sm:$0xff]
                %290 = vst [vmem:[%s156 + $0x234] sm:$0xff] %v289
                %v291 = vld [vmem:[%s155 + $0x890] sm:$0xff]
                %292 = vst [vmem:[%s156 + $0x23c] sm:$0xff] %v291
                %v293 = vld [vmem:[%s155 + $0x898] sm:$0xff]
                %294 = vst [vmem:[%s156 + $0x244] sm:$0xff] %v293
                %v295 = vld [vmem:[%s155 + $0x8a0] sm:$0xff]
                %296 = vst [vmem:[%s156 + $0x24c] sm:$0xff] %v295
                %v297 = vld [vmem:[%s155 + $0x960] sm:$0xff]
                %298 = vst [vmem:[%s156 + $0x258] sm:$0xff] %v297
                %v299 = vld [vmem:[%s155 + $0x968] sm:$0xff]
                %300 = vst [vmem:[%s156 + $0x260] sm:$0xff] %v299
                %v301 = vld [vmem:[%s155 + $0x970] sm:$0xff]
                %302 = vst [vmem:[%s156 + $0x268] sm:$0xff] %v301
                %v303 = vld [vmem:[%s155 + $0x978] sm:$0xff]
                %304 = vst [vmem:[%s156 + $0x270] sm:$0xff] %v303
                %v305 = vld [vmem:[%s155 + $0x980] sm:$0xff]
                %306 = vst [vmem:[%s156 + $0x278] sm:$0xff] %v305
                %v307 = vld [vmem:[%s155 + $0x988] sm:$0xff]
                %308 = vst [vmem:[%s156 + $0x280] sm:$0xff] %v307
                %v309 = vld [vmem:[%s155 + $0x990] sm:$0xff]
                %310 = vst [vmem:[%s156 + $0x288] sm:$0xff] %v309
                %v311 = vld [vmem:[%s155 + $0xa50] sm:$0xff]
                %312 = vst [vmem:[%s156 + $0x294] sm:$0xff] %v311
                %v313 = vld [vmem:[%s155 + $0xa58] sm:$0xff]
                %314 = vst [vmem:[%s156 + $0x29c] sm:$0xff] %v313
                %v315 = vld [vmem:[%s155 + $0xa60] sm:$0xff]
                %316 = vst [vmem:[%s156 + $0x2a4] sm:$0xff] %v315
                %v317 = vld [vmem:[%s155 + $0xa68] sm:$0xff]
                %318 = vst [vmem:[%s156 + $0x2ac] sm:$0xff] %v317
                %v319 = vld [vmem:[%s155 + $0xa70] sm:$0xff]
                %320 = vst [vmem:[%s156 + $0x2b4] sm:$0xff] %v319
                %v321 = vld [vmem:[%s155 + $0xa78] sm:$0xff]
                %322 = vst [vmem:[%s156 + $0x2bc] sm:$0xff] %v321
                %v323 = vld [vmem:[%s155 + $0xa80] sm:$0xff]
                %324 = vst [vmem:[%s156 + $0x2c4] sm:$0xff] %v323
                %v325 = vld [vmem:[%s155 + $0xb40] sm:$0xff]
                %326 = vst [vmem:[%s156 + $0x2d0] sm:$0xff] %v325
                %v327 = vld [vmem:[%s155 + $0xb48] sm:$0xff]
                %328 = vst [vmem:[%s156 + $0x2d8] sm:$0xff] %v327
                %v329 = vld [vmem:[%s155 + $0xb50] sm:$0xff]
                %330 = vst [vmem:[%s156 + $0x2e0] sm:$0xff] %v329
                %v331 = vld [vmem:[%s155 + $0xb58] sm:$0xff]
                %332 = vst [vmem:[%s156 + $0x2e8] sm:$0xff] %v331
                %v333 = vld [vmem:[%s155 + $0xb60] sm:$0xff]
                %334 = vst [vmem:[%s156 + $0x2f0] sm:$0xff] %v333
                %v335 = vld [vmem:[%s155 + $0xb68] sm:$0xff]
                %336 = vst [vmem:[%s156 + $0x2f8] sm:$0xff] %v335
                %v337 = vld [vmem:[%s155 + $0xb70] sm:$0xff]
                %338 = vst [vmem:[%s156 + $0x300] sm:$0xff] %v337
                %v339 = vld [vmem:[%s155 + $0xc30] sm:$0xff]
                %340 = vst [vmem:[%s156 + $0x30c] sm:$0xff] %v339
                %v341 = vld [vmem:[%s155 + $0xc38] sm:$0xff]
                %342 = vst [vmem:[%s156 + $0x314] sm:$0xff] %v341
                %v343 = vld [vmem:[%s155 + $0xc40] sm:$0xff]
                %344 = vst [vmem:[%s156 + $0x31c] sm:$0xff] %v343
                %v345 = vld [vmem:[%s155 + $0xc48] sm:$0xff]
                %346 = vst [vmem:[%s156 + $0x324] sm:$0xff] %v345
                %v347 = vld [vmem:[%s155 + $0xc50] sm:$0xff]
                %348 = vst [vmem:[%s156 + $0x32c] sm:$0xff] %v347
                %v349 = vld [vmem:[%s155 + $0xc58] sm:$0xff]
                %350 = vst [vmem:[%s156 + $0x334] sm:$0xff] %v349
                %v351 = vld [vmem:[%s155 + $0xc60] sm:$0xff]
                %352 = vst [vmem:[%s156 + $0x33c] sm:$0xff] %v351
                %v353 = vld [vmem:[%s155 + $0xd20] sm:$0xff]
                %354 = vst [vmem:[%s156 + $0x348] sm:$0xff] %v353
                %v355 = vld [vmem:[%s155 + $0xd28] sm:$0xff]
                %356 = vst [vmem:[%s156 + $0x350] sm:$0xff] %v355
                %v357 = vld [vmem:[%s155 + $0xd30] sm:$0xff]
                %358 = vst [vmem:[%s156 + $0x358] sm:$0xff] %v357
                %v359 = vld [vmem:[%s155 + $0xd38] sm:$0xff]
                %360 = vst [vmem:[%s156 + $0x360] sm:$0xff] %v359
                %v361 = vld [vmem:[%s155 + $0xd40] sm:$0xff]
                %362 = vst [vmem:[%s156 + $0x368] sm:$0xff] %v361
                %v363 = vld [vmem:[%s155 + $0xd48] sm:$0xff]
                %364 = vst [vmem:[%s156 + $0x370] sm:$0xff] %v363
                %v365 = vld [vmem:[%s155 + $0xd50] sm:$0xff]
                %366 = vst [vmem:[%s156 + $0x378] sm:$0xff] %v365
                %v367 = vld [vmem:[%s155 + $0xe10] sm:$0xff]
                %368 = vst [vmem:[%s156 + $0x384] sm:$0xff] %v367
                %v369 = vld [vmem:[%s155 + $0xe18] sm:$0xff]
                %370 = vst [vmem:[%s156 + $0x38c] sm:$0xff] %v369
                %v371 = vld [vmem:[%s155 + $0xe20] sm:$0xff]
                %372 = vst [vmem:[%s156 + $0x394] sm:$0xff] %v371
                %v373 = vld [vmem:[%s155 + $0xe28] sm:$0xff]
                %374 = vst [vmem:[%s156 + $0x39c] sm:$0xff] %v373
                %v375 = vld [vmem:[%s155 + $0xe30] sm:$0xff]
                %376 = vst [vmem:[%s156 + $0x3a4] sm:$0xff] %v375
                %v377 = vld [vmem:[%s155 + $0xe38] sm:$0xff]
                %378 = vst [vmem:[%s156 + $0x3ac] sm:$0xff] %v377
                %v379 = vld [vmem:[%s155 + $0xe40] sm:$0xff]
                %380 = vst [vmem:[%s156 + $0x3b4] sm:$0xff] %v379
                %v381 = vld [vmem:[%s155 + $0xf00] sm:$0xff]
                %382 = vst [vmem:[%s156 + $0x3c0] sm:$0xff] %v381
                %v383 = vld [vmem:[%s155 + $0xf08] sm:$0xff]
                %384 = vst [vmem:[%s156 + $0x3c8] sm:$0xff] %v383
                %v385 = vld [vmem:[%s155 + $0xf10] sm:$0xff]
                %386 = vst [vmem:[%s156 + $0x3d0] sm:$0xff] %v385
                %v387 = vld [vmem:[%s155 + $0xf18] sm:$0xff]
                %388 = vst [vmem:[%s156 + $0x3d8] sm:$0xff] %v387
                %v389 = vld [vmem:[%s155 + $0xf20] sm:$0xff]
                %390 = vst [vmem:[%s156 + $0x3e0] sm:$0xff] %v389
                %v391 = vld [vmem:[%s155 + $0xf28] sm:$0xff]
                %392 = vst [vmem:[%s156 + $0x3e8] sm:$0xff] %v391
                %v393 = vld [vmem:[%s155 + $0xf30] sm:$0xff]
                %394 = vst [vmem:[%s156 + $0x3f0] sm:$0xff] %v393
                %v395 = vld [vmem:[%s155 + $0xff0] sm:$0xff]
                %396 = vst [vmem:[%s156 + $0x3fc] sm:$0xff] %v395
                %v397 = vld [vmem:[%s155 + $0xff8] sm:$0xff]
                %398 = vst [vmem:[%s156 + $0x404] sm:$0xff] %v397
                %v399 = vld [vmem:[%s155 + $0x1000] sm:$0xff]
                %400 = vst [vmem:[%s156 + $0x40c] sm:$0xff] %v399
                %v401 = vld [vmem:[%s155 + $0x1008] sm:$0xff]
                %402 = vst [vmem:[%s156 + $0x414] sm:$0xff] %v401
                %v403 = vld [vmem:[%s155 + $0x1010] sm:$0xff]
                %404 = vst [vmem:[%s156 + $0x41c] sm:$0xff] %v403
                %v405 = vld [vmem:[%s155 + $0x1018] sm:$0xff]
                %406 = vst [vmem:[%s156 + $0x424] sm:$0xff] %v405
                %v407 = vld [vmem:[%s155 + $0x1020] sm:$0xff]
                %408 = vst [vmem:[%s156 + $0x42c] sm:$0xff] %v407
                %v409 = vld [vmem:[%s155 + $0x10e0] sm:$0xff]
                %410 = vst [vmem:[%s156 + $0x438] sm:$0xff] %v409
                %v411 = vld [vmem:[%s155 + $0x10e8] sm:$0xff]
                %412 = vst [vmem:[%s156 + $0x440] sm:$0xff] %v411
                %v413 = vld [vmem:[%s155 + $0x10f0] sm:$0xff]
                %414 = vst [vmem:[%s156 + $0x448] sm:$0xff] %v413
                %v415 = vld [vmem:[%s155 + $0x10f8] sm:$0xff]
                %416 = vst [vmem:[%s156 + $0x450] sm:$0xff] %v415
                %v417 = vld [vmem:[%s155 + $0x1100] sm:$0xff]
                %418 = vst [vmem:[%s156 + $0x458] sm:$0xff] %v417
                %v419 = vld [vmem:[%s155 + $0x1108] sm:$0xff]
                %420 = vst [vmem:[%s156 + $0x460] sm:$0xff] %v419
                %v421 = vld [vmem:[%s155 + $0x1110] sm:$0xff]
                %422 = vst [vmem:[%s156 + $0x468] sm:$0xff] %v421
                %v423 = vld [vmem:[%s155 + $0x11d0] sm:$0xff]
                %424 = vst [vmem:[%s156 + $0x474] sm:$0xff] %v423
                %v425 = vld [vmem:[%s155 + $0x11d8] sm:$0xff]
                %426 = vst [vmem:[%s156 + $0x47c] sm:$0xff] %v425
                %v427 = vld [vmem:[%s155 + $0x11e0] sm:$0xff]
                %428 = vst [vmem:[%s156 + $0x484] sm:$0xff] %v427
                %v429 = vld [vmem:[%s155 + $0x11e8] sm:$0xff]
                %430 = vst [vmem:[%s156 + $0x48c] sm:$0xff] %v429
                %v431 = vld [vmem:[%s155 + $0x11f0] sm:$0xff]
                %432 = vst [vmem:[%s156 + $0x494] sm:$0xff] %v431
                %v433 = vld [vmem:[%s155 + $0x11f8] sm:$0xff]
                %434 = vst [vmem:[%s156 + $0x49c] sm:$0xff] %v433
                %v435 = vld [vmem:[%s155 + $0x1200] sm:$0xff]
                %436 = vst [vmem:[%s156 + $0x4a4] sm:$0xff] %v435
                %v437 = vld [vmem:[%s155 + $0x12c0] sm:$0xff]
                %438 = vst [vmem:[%s156 + $0x4b0] sm:$0xff] %v437
                %v439 = vld [vmem:[%s155 + $0x12c8] sm:$0xff]
                %440 = vst [vmem:[%s156 + $0x4b8] sm:$0xff] %v439
                %v441 = vld [vmem:[%s155 + $0x12d0] sm:$0xff]
                %442 = vst [vmem:[%s156 + $0x4c0] sm:$0xff] %v441
                %v443 = vld [vmem:[%s155 + $0x12d8] sm:$0xff]
                %444 = vst [vmem:[%s156 + $0x4c8] sm:$0xff] %v443
                %v445 = vld [vmem:[%s155 + $0x12e0] sm:$0xff]
                %446 = vst [vmem:[%s156 + $0x4d0] sm:$0xff] %v445
                %v447 = vld [vmem:[%s155 + $0x12e8] sm:$0xff]
                %448 = vst [vmem:[%s156 + $0x4d8] sm:$0xff] %v447
                %v449 = vld [vmem:[%s155 + $0x12f0] sm:$0xff]
                %450 = vst [vmem:[%s156 + $0x4e0] sm:$0xff] %v449
                %v451 = vld [vmem:[%s155 + $0x13b0] sm:$0xff]
                %452 = vst [vmem:[%s156 + $0x4ec] sm:$0xff] %v451
                %v453 = vld [vmem:[%s155 + $0x13b8] sm:$0xff]
                %454 = vst [vmem:[%s156 + $0x4f4] sm:$0xff] %v453
                %v455 = vld [vmem:[%s155 + $0x13c0] sm:$0xff]
                %456 = vst [vmem:[%s156 + $0x4fc] sm:$0xff] %v455
                %v457 = vld [vmem:[%s155 + $0x13c8] sm:$0xff]
                %458 = vst [vmem:[%s156 + $0x504] sm:$0xff] %v457
                %v459 = vld [vmem:[%s155 + $0x13d0] sm:$0xff]
                %460 = vst [vmem:[%s156 + $0x50c] sm:$0xff] %v459
                %v461 = vld [vmem:[%s155 + $0x13d8] sm:$0xff]
                %462 = vst [vmem:[%s156 + $0x514] sm:$0xff] %v461
                %v463 = vld [vmem:[%s155 + $0x13e0] sm:$0xff]
                %464 = vst [vmem:[%s156 + $0x51c] sm:$0xff] %v463
                %v465 = vld [vmem:[%s155 + $0x14a0] sm:$0xff]
                %466 = vst [vmem:[%s156 + $0x528] sm:$0xff] %v465
                %v467 = vld [vmem:[%s155 + $0x14a8] sm:$0xff]
                %468 = vst [vmem:[%s156 + $0x530] sm:$0xff] %v467
                %v469 = vld [vmem:[%s155 + $0x14b0] sm:$0xff]
                %470 = vst [vmem:[%s156 + $0x538] sm:$0xff] %v469
                %v471 = vld [vmem:[%s155 + $0x14b8] sm:$0xff]
                %472 = vst [vmem:[%s156 + $0x540] sm:$0xff] %v471
                %v473 = vld [vmem:[%s155 + $0x14c0] sm:$0xff]
                %474 = vst [vmem:[%s156 + $0x548] sm:$0xff] %v473
                %v475 = vld [vmem:[%s155 + $0x14c8] sm:$0xff]
                %476 = vst [vmem:[%s156 + $0x550] sm:$0xff] %v475
                %v477 = vld [vmem:[%s155 + $0x14d0] sm:$0xff]
                %478 = vst [vmem:[%s156 + $0x558] sm:$0xff] %v477
                %v479 = vld [vmem:[%s155 + $0x1590] sm:$0xff]
                %480 = vst [vmem:[%s156 + $0x564] sm:$0xff] %v479
                %v481 = vld [vmem:[%s155 + $0x1598] sm:$0xff]
                %482 = vst [vmem:[%s156 + $0x56c] sm:$0xff] %v481
                %v483 = vld [vmem:[%s155 + $0x15a0] sm:$0xff]
                %484 = vst [vmem:[%s156 + $0x574] sm:$0xff] %v483
                %v485 = vld [vmem:[%s155 + $0x15a8] sm:$0xff]
                %486 = vst [vmem:[%s156 + $0x57c] sm:$0xff] %v485
                %v487 = vld [vmem:[%s155 + $0x15b0] sm:$0xff]
                %488 = vst [vmem:[%s156 + $0x584] sm:$0xff] %v487
                %v489 = vld [vmem:[%s155 + $0x15b8] sm:$0xff]
                %490 = vst [vmem:[%s156 + $0x58c] sm:$0xff] %v489
                %v491 = vld [vmem:[%s155 + $0x15c0] sm:$0xff]
                %492 = vst [vmem:[%s156 + $0x594] sm:$0xff] %v491
                %v493 = vld [vmem:[%s155 + $0x1680] sm:$0xff]
                %494 = vst [vmem:[%s156 + $0x5a0] sm:$0xff] %v493
                %v495 = vld [vmem:[%s155 + $0x1688] sm:$0xff]
                %496 = vst [vmem:[%s156 + $0x5a8] sm:$0xff] %v495
                %v497 = vld [vmem:[%s155 + $0x1690] sm:$0xff]
                %498 = vst [vmem:[%s156 + $0x5b0] sm:$0xff] %v497
                %v499 = vld [vmem:[%s155 + $0x1698] sm:$0xff]
                %500 = vst [vmem:[%s156 + $0x5b8] sm:$0xff] %v499
                %v501 = vld [vmem:[%s155 + $0x16a0] sm:$0xff]
                %502 = vst [vmem:[%s156 + $0x5c0] sm:$0xff] %v501
                %v503 = vld [vmem:[%s155 + $0x16a8] sm:$0xff]
                %504 = vst [vmem:[%s156 + $0x5c8] sm:$0xff] %v503
                %v505 = vld [vmem:[%s155 + $0x16b0] sm:$0xff]
                %506 = vst [vmem:[%s156 + $0x5d0] sm:$0xff] %v505
                %v507 = vld [vmem:[%s155 + $0x1770] sm:$0xff]
                %508 = vst [vmem:[%s156 + $0x5dc] sm:$0xff] %v507
                %v509 = vld [vmem:[%s155 + $0x1778] sm:$0xff]
                %510 = vst [vmem:[%s156 + $0x5e4] sm:$0xff] %v509
                %v511 = vld [vmem:[%s155 + $0x1780] sm:$0xff]
                %512 = vst [vmem:[%s156 + $0x5ec] sm:$0xff] %v511
                %v513 = vld [vmem:[%s155 + $0x1788] sm:$0xff]
                %514 = vst [vmem:[%s156 + $0x5f4] sm:$0xff] %v513
                %v515 = vld [vmem:[%s155 + $0x1790] sm:$0xff]
                %516 = vst [vmem:[%s156 + $0x5fc] sm:$0xff] %v515
                %v517 = vld [vmem:[%s155 + $0x1798] sm:$0xff]
                %518 = vst [vmem:[%s156 + $0x604] sm:$0xff] %v517
                %v519 = vld [vmem:[%s155 + $0x17a0] sm:$0xff]
                %520 = vst [vmem:[%s156 + $0x60c] sm:$0xff] %v519
                %v521 = vld [vmem:[%s155 + $0x1860] sm:$0xff]
                %522 = vst [vmem:[%s156 + $0x618] sm:$0xff] %v521
                %v523 = vld [vmem:[%s155 + $0x1868] sm:$0xff]
                %524 = vst [vmem:[%s156 + $0x620] sm:$0xff] %v523
                %v525 = vld [vmem:[%s155 + $0x1870] sm:$0xff]
                %526 = vst [vmem:[%s156 + $0x628] sm:$0xff] %v525
                %v527 = vld [vmem:[%s155 + $0x1878] sm:$0xff]
                %528 = vst [vmem:[%s156 + $0x630] sm:$0xff] %v527
                %v529 = vld [vmem:[%s155 + $0x1880] sm:$0xff]
                %530 = vst [vmem:[%s156 + $0x638] sm:$0xff] %v529
                %v531 = vld [vmem:[%s155 + $0x1888] sm:$0xff]
                %532 = vst [vmem:[%s156 + $0x640] sm:$0xff] %v531
                %v533 = vld [vmem:[%s155 + $0x1890] sm:$0xff]
                %534 = vst [vmem:[%s156 + $0x648] sm:$0xff] %v533
                %v535 = vld [vmem:[%s155 + $0x1950] sm:$0xff]
                %536 = vst [vmem:[%s156 + $0x654] sm:$0xff] %v535
                %v537 = vld [vmem:[%s155 + $0x1958] sm:$0xff]
                %538 = vst [vmem:[%s156 + $0x65c] sm:$0xff] %v537
                %v539 = vld [vmem:[%s155 + $0x1960] sm:$0xff]
                %540 = vst [vmem:[%s156 + $0x664] sm:$0xff] %v539
                %v541 = vld [vmem:[%s155 + $0x1968] sm:$0xff]
                %542 = vst [vmem:[%s156 + $0x66c] sm:$0xff] %v541
                %v543 = vld [vmem:[%s155 + $0x1970] sm:$0xff]
                %544 = vst [vmem:[%s156 + $0x674] sm:$0xff] %v543
                %v545 = vld [vmem:[%s155 + $0x1978] sm:$0xff]
                %546 = vst [vmem:[%s156 + $0x67c] sm:$0xff] %v545
                %v547 = vld [vmem:[%s155 + $0x1980] sm:$0xff]
                %548 = vst [vmem:[%s156 + $0x684] sm:$0xff] %v547
                %v549 = vld [vmem:[%s155 + $0x1a40] sm:$0xff]
                %550 = vst [vmem:[%s156 + $0x690] sm:$0xff] %v549
                %v551 = vld [vmem:[%s155 + $0x1a48] sm:$0xff]
                %552 = vst [vmem:[%s156 + $0x698] sm:$0xff] %v551
                %v553 = vld [vmem:[%s155 + $0x1a50] sm:$0xff]
                %554 = vst [vmem:[%s156 + $0x6a0] sm:$0xff] %v553
                %v555 = vld [vmem:[%s155 + $0x1a58] sm:$0xff]
                %556 = vst [vmem:[%s156 + $0x6a8] sm:$0xff] %v555
                %v557 = vld [vmem:[%s155 + $0x1a60] sm:$0xff]
                %558 = vst [vmem:[%s156 + $0x6b0] sm:$0xff] %v557
                %v559 = vld [vmem:[%s155 + $0x1a68] sm:$0xff]
                %560 = vst [vmem:[%s156 + $0x6b8] sm:$0xff] %v559
                %v561 = vld [vmem:[%s155 + $0x1a70] sm:$0xff]
                %562 = vst [vmem:[%s156 + $0x6c0] sm:$0xff] %v561
                %v563 = vld [vmem:[%s155 + $0x1b30] sm:$0xff]
                %564 = vst [vmem:[%s156 + $0x6cc] sm:$0xff] %v563
                %v565 = vld [vmem:[%s155 + $0x1b38] sm:$0xff]
                %566 = vst [vmem:[%s156 + $0x6d4] sm:$0xff] %v565
                %v567 = vld [vmem:[%s155 + $0x1b40] sm:$0xff]
                %568 = vst [vmem:[%s156 + $0x6dc] sm:$0xff] %v567
                %v569 = vld [vmem:[%s155 + $0x1b48] sm:$0xff]
                %570 = vst [vmem:[%s156 + $0x6e4] sm:$0xff] %v569
                %v571 = vld [vmem:[%s155 + $0x1b50] sm:$0xff]
                %572 = vst [vmem:[%s156 + $0x6ec] sm:$0xff] %v571
                %v573 = vld [vmem:[%s155 + $0x1b58] sm:$0xff]
                %574 = vst [vmem:[%s156 + $0x6f4] sm:$0xff] %v573
                %v575 = vld [vmem:[%s155 + $0x1b60] sm:$0xff]
                %576 = vst [vmem:[%s156 + $0x6fc] sm:$0xff] %v575
                %v577 = vld [vmem:[%s155 + $0x1c20] sm:$0xff]
                %578 = vst [vmem:[%s156 + $0x708] sm:$0xff] %v577
                %v579 = vld [vmem:[%s155 + $0x1c28] sm:$0xff]
                %580 = vst [vmem:[%s156 + $0x710] sm:$0xff] %v579
                %v581 = vld [vmem:[%s155 + $0x1c30] sm:$0xff]
                %582 = vst [vmem:[%s156 + $0x718] sm:$0xff] %v581
                %v583 = vld [vmem:[%s155 + $0x1c38] sm:$0xff]
                %584 = vst [vmem:[%s156 + $0x720] sm:$0xff] %v583
                %v585 = vld [vmem:[%s155 + $0x1c40] sm:$0xff]
                %586 = vst [vmem:[%s156 + $0x728] sm:$0xff] %v585
                %v587 = vld [vmem:[%s155 + $0x1c48] sm:$0xff]
                %588 = vst [vmem:[%s156 + $0x730] sm:$0xff] %v587
                %v589 = vld [vmem:[%s155 + $0x1c50] sm:$0xff]
                %590 = vst [vmem:[%s156 + $0x738] sm:$0xff] %v589
                %v591 = vld [vmem:[%s155 + $0x1d10] sm:$0xff]
                %592 = vst [vmem:[%s156 + $0x744] sm:$0xff] %v591
                %v593 = vld [vmem:[%s155 + $0x1d18] sm:$0xff]
                %594 = vst [vmem:[%s156 + $0x74c] sm:$0xff] %v593
                %v595 = vld [vmem:[%s155 + $0x1d20] sm:$0xff]
                %596 = vst [vmem:[%s156 + $0x754] sm:$0xff] %v595
                %v597 = vld [vmem:[%s155 + $0x1d28] sm:$0xff]
                %598 = vst [vmem:[%s156 + $0x75c] sm:$0xff] %v597
                %v599 = vld [vmem:[%s155 + $0x1d30] sm:$0xff]
                %600 = vst [vmem:[%s156 + $0x764] sm:$0xff] %v599
                %v601 = vld [vmem:[%s155 + $0x1d38] sm:$0xff]
                %602 = vst [vmem:[%s156 + $0x76c] sm:$0xff] %v601
                %v603 = vld [vmem:[%s155 + $0x1d40] sm:$0xff]
                %604 = vst [vmem:[%s156 + $0x774] sm:$0xff] %v603
                %v605 = vld [vmem:[%s155 + $0x1e00] sm:$0xff]
                %606 = vst [vmem:[%s156 + $0x780] sm:$0xff] %v605
                %v607 = vld [vmem:[%s155 + $0x1e08] sm:$0xff]
                %608 = vst [vmem:[%s156 + $0x788] sm:$0xff] %v607
                %v609 = vld [vmem:[%s155 + $0x1e10] sm:$0xff]
                %610 = vst [vmem:[%s156 + $0x790] sm:$0xff] %v609
                %v611 = vld [vmem:[%s155 + $0x1e18] sm:$0xff]
                %612 = vst [vmem:[%s156 + $0x798] sm:$0xff] %v611
                %v613 = vld [vmem:[%s155 + $0x1e20] sm:$0xff]
                %614 = vst [vmem:[%s156 + $0x7a0] sm:$0xff] %v613
                %v615 = vld [vmem:[%s155 + $0x1e28] sm:$0xff]
                %616 = vst [vmem:[%s156 + $0x7a8] sm:$0xff] %v615
                %v617 = vld [vmem:[%s155 + $0x1e30] sm:$0xff]
                %618 = vst [vmem:[%s156 + $0x7b0] sm:$0xff] %v617
                %v619 = vld [vmem:[%s155 + $0x1ef0] sm:$0xff]
                %620 = vst [vmem:[%s156 + $0x7bc] sm:$0xff] %v619
                %v621 = vld [vmem:[%s155 + $0x1ef8] sm:$0xff]
                %622 = vst [vmem:[%s156 + $0x7c4] sm:$0xff] %v621
                %v623 = vld [vmem:[%s155 + $0x1f00] sm:$0xff]
                %624 = vst [vmem:[%s156 + $0x7cc] sm:$0xff] %v623
                %v625 = vld [vmem:[%s155 + $0x1f08] sm:$0xff]
                %626 = vst [vmem:[%s156 + $0x7d4] sm:$0xff] %v625
                %v627 = vld [vmem:[%s155 + $0x1f10] sm:$0xff]
                %628 = vst [vmem:[%s156 + $0x7dc] sm:$0xff] %v627
                %v629 = vld [vmem:[%s155 + $0x1f18] sm:$0xff]
                %630 = vst [vmem:[%s156 + $0x7e4] sm:$0xff] %v629
                %v631 = vld [vmem:[%s155 + $0x1f20] sm:$0xff]
                %632 = vst [vmem:[%s156 + $0x7ec] sm:$0xff] %v631
                %v633 = vld [vmem:[%s155 + $0x1fe0] sm:$0xff]
                %634 = vst [vmem:[%s156 + $0x7f8] sm:$0xff] %v633
                %v635 = vld [vmem:[%s155 + $0x1fe8] sm:$0xff]
                %636 = vst [vmem:[%s156 + $0x800] sm:$0xff] %v635
                %v637 = vld [vmem:[%s155 + $0x1ff0] sm:$0xff]
                %638 = vst [vmem:[%s156 + $0x808] sm:$0xff] %v637
                %v639 = vld [vmem:[%s155 + $0x1ff8] sm:$0xff]
                %640 = vst [vmem:[%s156 + $0x810] sm:$0xff] %v639
                %v641 = vld [vmem:[%s155 + $0x2000] sm:$0xff]
                %642 = vst [vmem:[%s156 + $0x818] sm:$0xff] %v641
                %v643 = vld [vmem:[%s155 + $0x2008] sm:$0xff]
                %644 = vst [vmem:[%s156 + $0x820] sm:$0xff] %v643
                %v645 = vld [vmem:[%s155 + $0x2010] sm:$0xff]
                %646 = vst [vmem:[%s156 + $0x828] sm:$0xff] %v645
                %v647 = vld [vmem:[%s155 + $0x20d0] sm:$0xff]
                %648 = vst [vmem:[%s156 + $0x834] sm:$0xff] %v647
                %v649 = vld [vmem:[%s155 + $0x20d8] sm:$0xff]
                %650 = vst [vmem:[%s156 + $0x83c] sm:$0xff] %v649
                %v651 = vld [vmem:[%s155 + $0x20e0] sm:$0xff]
                %652 = vst [vmem:[%s156 + $0x844] sm:$0xff] %v651
                %v653 = vld [vmem:[%s155 + $0x20e8] sm:$0xff]
                %654 = vst [vmem:[%s156 + $0x84c] sm:$0xff] %v653
                %v655 = vld [vmem:[%s155 + $0x20f0] sm:$0xff]
                %656 = vst [vmem:[%s156 + $0x854] sm:$0xff] %v655
                %v657 = vld [vmem:[%s155 + $0x20f8] sm:$0xff]
                %658 = vst [vmem:[%s156 + $0x85c] sm:$0xff] %v657
                %v659 = vld [vmem:[%s155 + $0x2100] sm:$0xff]
                %660 = vst [vmem:[%s156 + $0x864] sm:$0xff] %v659
                %v661 = vld [vmem:[%s155 + $0x21c0] sm:$0xff]
                %662 = vst [vmem:[%s156 + $0x870] sm:$0xff] %v661
                %v663 = vld [vmem:[%s155 + $0x21c8] sm:$0xff]
                %664 = vst [vmem:[%s156 + $0x878] sm:$0xff] %v663
                %v665 = vld [vmem:[%s155 + $0x21d0] sm:$0xff]
                %666 = vst [vmem:[%s156 + $0x880] sm:$0xff] %v665
                %v667 = vld [vmem:[%s155 + $0x21d8] sm:$0xff]
                %668 = vst [vmem:[%s156 + $0x888] sm:$0xff] %v667
                %v669 = vld [vmem:[%s155 + $0x21e0] sm:$0xff]
                %670 = vst [vmem:[%s156 + $0x890] sm:$0xff] %v669
                %v671 = vld [vmem:[%s155 + $0x21e8] sm:$0xff]
                %672 = vst [vmem:[%s156 + $0x898] sm:$0xff] %v671
                %v673 = vld [vmem:[%s155 + $0x21f0] sm:$0xff]
                %674 = vst [vmem:[%s156 + $0x8a0] sm:$0xff] %v673
                %v675 = vld [vmem:[%s155 + $0x22b0] sm:$0xff]
                %676 = vst [vmem:[%s156 + $0x8ac] sm:$0xff] %v675
                %v677 = vld [vmem:[%s155 + $0x22b8] sm:$0xff]
                %678 = vst [vmem:[%s156 + $0x8b4] sm:$0xff] %v677
                %v679 = vld [vmem:[%s155 + $0x22c0] sm:$0xff]
                %680 = vst [vmem:[%s156 + $0x8bc] sm:$0xff] %v679
                %v681 = vld [vmem:[%s155 + $0x22c8] sm:$0xff]
                %682 = vst [vmem:[%s156 + $0x8c4] sm:$0xff] %v681
                %v683 = vld [vmem:[%s155 + $0x22d0] sm:$0xff]
                %684 = vst [vmem:[%s156 + $0x8cc] sm:$0xff] %v683
                %v685 = vld [vmem:[%s155 + $0x22d8] sm:$0xff]
                %686 = vst [vmem:[%s156 + $0x8d4] sm:$0xff] %v685
                %v687 = vld [vmem:[%s155 + $0x22e0] sm:$0xff]
                %688 = vst [vmem:[%s156 + $0x8dc] sm:$0xff] %v687
                %v689 = vld [vmem:[%s155 + $0x23a0] sm:$0xff]
                %690 = vst [vmem:[%s156 + $0x8e8] sm:$0xff] %v689
                %v691 = vld [vmem:[%s155 + $0x23a8] sm:$0xff]
                %692 = vst [vmem:[%s156 + $0x8f0] sm:$0xff] %v691
                %v693 = vld [vmem:[%s155 + $0x23b0] sm:$0xff]
                %694 = vst [vmem:[%s156 + $0x8f8] sm:$0xff] %v693
                %v695 = vld [vmem:[%s155 + $0x23b8] sm:$0xff]
                %696 = vst [vmem:[%s156 + $0x900] sm:$0xff] %v695
                %v697 = vld [vmem:[%s155 + $0x23c0] sm:$0xff]
                %698 = vst [vmem:[%s156 + $0x908] sm:$0xff] %v697
                %v699 = vld [vmem:[%s155 + $0x23c8] sm:$0xff]
                %700 = vst [vmem:[%s156 + $0x910] sm:$0xff] %v699
                %v701 = vld [vmem:[%s155 + $0x23d0] sm:$0xff]
                %702 = vst [vmem:[%s156 + $0x918] sm:$0xff] %v701
                %v703 = vld [vmem:[%s155 + $0x2490] sm:$0xff]
                %704 = vst [vmem:[%s156 + $0x924] sm:$0xff] %v703
                %v705 = vld [vmem:[%s155 + $0x2498] sm:$0xff]
                %706 = vst [vmem:[%s156 + $0x92c] sm:$0xff] %v705
                %v707 = vld [vmem:[%s155 + $0x24a0] sm:$0xff]
                %708 = vst [vmem:[%s156 + $0x934] sm:$0xff] %v707
                %v709 = vld [vmem:[%s155 + $0x24a8] sm:$0xff]
                %710 = vst [vmem:[%s156 + $0x93c] sm:$0xff] %v709
                %v711 = vld [vmem:[%s155 + $0x24b0] sm:$0xff]
                %712 = vst [vmem:[%s156 + $0x944] sm:$0xff] %v711
                %v713 = vld [vmem:[%s155 + $0x24b8] sm:$0xff]
                %714 = vst [vmem:[%s156 + $0x94c] sm:$0xff] %v713
                %v715 = vld [vmem:[%s155 + $0x24c0] sm:$0xff]
                %716 = vst [vmem:[%s156 + $0x954] sm:$0xff] %v715
                %v717 = vld [vmem:[%s155 + $0x2580] sm:$0xff]
                %718 = vst [vmem:[%s156 + $0x960] sm:$0xff] %v717
                %v719 = vld [vmem:[%s155 + $0x2588] sm:$0xff]
                %720 = vst [vmem:[%s156 + $0x968] sm:$0xff] %v719
                %v721 = vld [vmem:[%s155 + $0x2590] sm:$0xff]
                %722 = vst [vmem:[%s156 + $0x970] sm:$0xff] %v721
                %v723 = vld [vmem:[%s155 + $0x2598] sm:$0xff]
                %724 = vst [vmem:[%s156 + $0x978] sm:$0xff] %v723
                %v725 = vld [vmem:[%s155 + $0x25a0] sm:$0xff]
                %726 = vst [vmem:[%s156 + $0x980] sm:$0xff] %v725
                %v727 = vld [vmem:[%s155 + $0x25a8] sm:$0xff]
                %728 = vst [vmem:[%s156 + $0x988] sm:$0xff] %v727
                %v729 = vld [vmem:[%s155 + $0x25b0] sm:$0xff]
                %730 = vst [vmem:[%s156 + $0x990] sm:$0xff] %v729
                %v731 = vld [vmem:[%s155 + $0x2670] sm:$0xff]
                %732 = vst [vmem:[%s156 + $0x99c] sm:$0xff] %v731
                %v733 = vld [vmem:[%s155 + $0x2678] sm:$0xff]
                %734 = vst [vmem:[%s156 + $0x9a4] sm:$0xff] %v733
                %v735 = vld [vmem:[%s155 + $0x2680] sm:$0xff]
                %736 = vst [vmem:[%s156 + $0x9ac] sm:$0xff] %v735
                %v737 = vld [vmem:[%s155 + $0x2688] sm:$0xff]
                %738 = vst [vmem:[%s156 + $0x9b4] sm:$0xff] %v737
                %v739 = vld [vmem:[%s155 + $0x2690] sm:$0xff]
                %740 = vst [vmem:[%s156 + $0x9bc] sm:$0xff] %v739
                %v741 = vld [vmem:[%s155 + $0x2698] sm:$0xff]
                %742 = vst [vmem:[%s156 + $0x9c4] sm:$0xff] %v741
                %v743 = vld [vmem:[%s155 + $0x26a0] sm:$0xff]
                %744 = vst [vmem:[%s156 + $0x9cc] sm:$0xff] %v743
                %v745 = vld [vmem:[%s155 + $0x2760] sm:$0xff]
                %746 = vst [vmem:[%s156 + $0x9d8] sm:$0xff] %v745
                %v747 = vld [vmem:[%s155 + $0x2768] sm:$0xff]
                %748 = vst [vmem:[%s156 + $0x9e0] sm:$0xff] %v747
                %v749 = vld [vmem:[%s155 + $0x2770] sm:$0xff]
                %750 = vst [vmem:[%s156 + $0x9e8] sm:$0xff] %v749
                %v751 = vld [vmem:[%s155 + $0x2778] sm:$0xff]
                %752 = vst [vmem:[%s156 + $0x9f0] sm:$0xff] %v751
                %v753 = vld [vmem:[%s155 + $0x2780] sm:$0xff]
                %754 = vst [vmem:[%s156 + $0x9f8] sm:$0xff] %v753
                %v755 = vld [vmem:[%s155 + $0x2788] sm:$0xff]
                %756 = vst [vmem:[%s156 + $0xa00] sm:$0xff] %v755
                %v757 = vld [vmem:[%s155 + $0x2790] sm:$0xff]
                %758 = vst [vmem:[%s156 + $0xa08] sm:$0xff] %v757
                %v759 = vld [vmem:[%s155 + $0x2850] sm:$0xff]
                %760 = vst [vmem:[%s156 + $0xa14] sm:$0xff] %v759
                %v761 = vld [vmem:[%s155 + $0x2858] sm:$0xff]
                %762 = vst [vmem:[%s156 + $0xa1c] sm:$0xff] %v761
                %v763 = vld [vmem:[%s155 + $0x2860] sm:$0xff]
                %764 = vst [vmem:[%s156 + $0xa24] sm:$0xff] %v763
                %v765 = vld [vmem:[%s155 + $0x2868] sm:$0xff]
                %766 = vst [vmem:[%s156 + $0xa2c] sm:$0xff] %v765
                %v767 = vld [vmem:[%s155 + $0x2870] sm:$0xff]
                %768 = vst [vmem:[%s156 + $0xa34] sm:$0xff] %v767
                %v769 = vld [vmem:[%s155 + $0x2878] sm:$0xff]
                %770 = vst [vmem:[%s156 + $0xa3c] sm:$0xff] %v769
                %v771 = vld [vmem:[%s155 + $0x2880] sm:$0xff]
                %772 = vst [vmem:[%s156 + $0xa44] sm:$0xff] %v771
                %v773 = vld [vmem:[%s155 + $0x2940] sm:$0xff]
                %774 = vst [vmem:[%s156 + $0xa50] sm:$0xff] %v773
                %v775 = vld [vmem:[%s155 + $0x2948] sm:$0xff]
                %776 = vst [vmem:[%s156 + $0xa58] sm:$0xff] %v775
                %v777 = vld [vmem:[%s155 + $0x2950] sm:$0xff]
                %778 = vst [vmem:[%s156 + $0xa60] sm:$0xff] %v777
                %v779 = vld [vmem:[%s155 + $0x2958] sm:$0xff]
                %780 = vst [vmem:[%s156 + $0xa68] sm:$0xff] %v779
                %v781 = vld [vmem:[%s155 + $0x2960] sm:$0xff]
                %782 = vst [vmem:[%s156 + $0xa70] sm:$0xff] %v781
                %v783 = vld [vmem:[%s155 + $0x2968] sm:$0xff]
                %784 = vst [vmem:[%s156 + $0xa78] sm:$0xff] %v783
                %v785 = vld [vmem:[%s155 + $0x2970] sm:$0xff]
                %786 = vst [vmem:[%s156 + $0xa80] sm:$0xff] %v785
                %v787 = vld [vmem:[%s155 + $0x2a30] sm:$0xff]
                %788 = vst [vmem:[%s156 + $0xa8c] sm:$0xff] %v787
                %v789 = vld [vmem:[%s155 + $0x2a38] sm:$0xff]
                %790 = vst [vmem:[%s156 + $0xa94] sm:$0xff] %v789
                %v791 = vld [vmem:[%s155 + $0x2a40] sm:$0xff]
                %792 = vst [vmem:[%s156 + $0xa9c] sm:$0xff] %v791
                %v793 = vld [vmem:[%s155 + $0x2a48] sm:$0xff]
                %794 = vst [vmem:[%s156 + $0xaa4] sm:$0xff] %v793
                %v795 = vld [vmem:[%s155 + $0x2a50] sm:$0xff]
                %796 = vst [vmem:[%s156 + $0xaac] sm:$0xff] %v795
                %v797 = vld [vmem:[%s155 + $0x2a58] sm:$0xff]
                %798 = vst [vmem:[%s156 + $0xab4] sm:$0xff] %v797
                %v799 = vld [vmem:[%s155 + $0x2a60] sm:$0xff]
                %800 = vst [vmem:[%s156 + $0xabc] sm:$0xff] %v799
                %v801 = vld [vmem:[%s155 + $0x2b20] sm:$0xff]
                %802 = vst [vmem:[%s156 + $0xac8] sm:$0xff] %v801
                %v803 = vld [vmem:[%s155 + $0x2b28] sm:$0xff]
                %804 = vst [vmem:[%s156 + $0xad0] sm:$0xff] %v803
                %v805 = vld [vmem:[%s155 + $0x2b30] sm:$0xff]
                %806 = vst [vmem:[%s156 + $0xad8] sm:$0xff] %v805
                %v807 = vld [vmem:[%s155 + $0x2b38] sm:$0xff]
                %808 = vst [vmem:[%s156 + $0xae0] sm:$0xff] %v807
                %v809 = vld [vmem:[%s155 + $0x2b40] sm:$0xff]
                %810 = vst [vmem:[%s156 + $0xae8] sm:$0xff] %v809
                %v811 = vld [vmem:[%s155 + $0x2b48] sm:$0xff]
                %812 = vst [vmem:[%s156 + $0xaf0] sm:$0xff] %v811
                %v813 = vld [vmem:[%s155 + $0x2b50] sm:$0xff]
                %814 = vst [vmem:[%s156 + $0xaf8] sm:$0xff] %v813
                %v815 = vld [vmem:[%s155 + $0x2c10] sm:$0xff]
                %816 = vst [vmem:[%s156 + $0xb04] sm:$0xff] %v815
                %v817 = vld [vmem:[%s155 + $0x2c18] sm:$0xff]
                %818 = vst [vmem:[%s156 + $0xb0c] sm:$0xff] %v817
                %v819 = vld [vmem:[%s155 + $0x2c20] sm:$0xff]
                %820 = vst [vmem:[%s156 + $0xb14] sm:$0xff] %v819
                %v821 = vld [vmem:[%s155 + $0x2c28] sm:$0xff]
                %822 = vst [vmem:[%s156 + $0xb1c] sm:$0xff] %v821
                %v823 = vld [vmem:[%s155 + $0x2c30] sm:$0xff]
                %824 = vst [vmem:[%s156 + $0xb24] sm:$0xff] %v823
                %v825 = vld [vmem:[%s155 + $0x2c38] sm:$0xff]
                %826 = vst [vmem:[%s156 + $0xb2c] sm:$0xff] %v825
                %v827 = vld [vmem:[%s155 + $0x2c40] sm:$0xff]
                %828 = vst [vmem:[%s156 + $0xb34] sm:$0xff] %v827
                %v829 = vld [vmem:[%s155 + $0x2d00] sm:$0xff]
                %830 = vst [vmem:[%s156 + $0xb40] sm:$0xff] %v829
                %v831 = vld [vmem:[%s155 + $0x2d08] sm:$0xff]
                %832 = vst [vmem:[%s156 + $0xb48] sm:$0xff] %v831
                %v833 = vld [vmem:[%s155 + $0x2d10] sm:$0xff]
                %834 = vst [vmem:[%s156 + $0xb50] sm:$0xff] %v833
                %v835 = vld [vmem:[%s155 + $0x2d18] sm:$0xff]
                %836 = vst [vmem:[%s156 + $0xb58] sm:$0xff] %v835
                %v837 = vld [vmem:[%s155 + $0x2d20] sm:$0xff]
                %838 = vst [vmem:[%s156 + $0xb60] sm:$0xff] %v837
                %v839 = vld [vmem:[%s155 + $0x2d28] sm:$0xff]
                %840 = vst [vmem:[%s156 + $0xb68] sm:$0xff] %v839
                %v841 = vld [vmem:[%s155 + $0x2d30] sm:$0xff]
                %842 = vst [vmem:[%s156 + $0xb70] sm:$0xff] %v841
                %v843 = vld [vmem:[%s155 + $0x2df0] sm:$0xff]
                %844 = vst [vmem:[%s156 + $0xb7c] sm:$0xff] %v843
                %v845 = vld [vmem:[%s155 + $0x2df8] sm:$0xff]
                %846 = vst [vmem:[%s156 + $0xb84] sm:$0xff] %v845
                %v847 = vld [vmem:[%s155 + $0x2e00] sm:$0xff]
                %848 = vst [vmem:[%s156 + $0xb8c] sm:$0xff] %v847
                %v849 = vld [vmem:[%s155 + $0x2e08] sm:$0xff]
                %850 = vst [vmem:[%s156 + $0xb94] sm:$0xff] %v849
                %v851 = vld [vmem:[%s155 + $0x2e10] sm:$0xff]
                %852 = vst [vmem:[%s156 + $0xb9c] sm:$0xff] %v851
                %v853 = vld [vmem:[%s155 + $0x2e18] sm:$0xff]
                %854 = vst [vmem:[%s156 + $0xba4] sm:$0xff] %v853
                %v855 = vld [vmem:[%s155 + $0x2e20] sm:$0xff]
                %856 = vst [vmem:[%s156 + $0xbac] sm:$0xff] %v855
                %v857 = vld [vmem:[%s155 + $0x2ee0] sm:$0xff]
                %858 = vst [vmem:[%s156 + $0xbb8] sm:$0xff] %v857
                %v859 = vld [vmem:[%s155 + $0x2ee8] sm:$0xff]
                %860 = vst [vmem:[%s156 + $0xbc0] sm:$0xff] %v859
                %v861 = vld [vmem:[%s155 + $0x2ef0] sm:$0xff]
                %862 = vst [vmem:[%s156 + $0xbc8] sm:$0xff] %v861
                %v863 = vld [vmem:[%s155 + $0x2ef8] sm:$0xff]
                %864 = vst [vmem:[%s156 + $0xbd0] sm:$0xff] %v863
                %v865 = vld [vmem:[%s155 + $0x2f00] sm:$0xff]
                %866 = vst [vmem:[%s156 + $0xbd8] sm:$0xff] %v865
                %v867 = vld [vmem:[%s155 + $0x2f08] sm:$0xff]
                %868 = vst [vmem:[%s156 + $0xbe0] sm:$0xff] %v867
                %v869 = vld [vmem:[%s155 + $0x2f10] sm:$0xff]
                %870 = vst [vmem:[%s156 + $0xbe8] sm:$0xff] %v869
                %v871 = vld [vmem:[%s155 + $0x2fd0] sm:$0xff]
                %872 = vst [vmem:[%s156 + $0xbf4] sm:$0xff] %v871
                %v873 = vld [vmem:[%s155 + $0x2fd8] sm:$0xff]
                %874 = vst [vmem:[%s156 + $0xbfc] sm:$0xff] %v873
                %v875 = vld [vmem:[%s155 + $0x2fe0] sm:$0xff]
                %876 = vst [vmem:[%s156 + $0xc04] sm:$0xff] %v875
                %v877 = vld [vmem:[%s155 + $0x2fe8] sm:$0xff]
                %878 = vst [vmem:[%s156 + $0xc0c] sm:$0xff] %v877
                %v879 = vld [vmem:[%s155 + $0x2ff0] sm:$0xff]
                %880 = vst [vmem:[%s156 + $0xc14] sm:$0xff] %v879
                %v881 = vld [vmem:[%s155 + $0x2ff8] sm:$0xff]
                %882 = vst [vmem:[%s156 + $0xc1c] sm:$0xff] %v881
                %v883 = vld [vmem:[%s155 + $0x3000] sm:$0xff]
                %884 = vst [vmem:[%s156 + $0xc24] sm:$0xff] %v883
                %v885 = vld [vmem:[%s155 + $0x30c0] sm:$0xff]
                %886 = vst [vmem:[%s156 + $0xc30] sm:$0xff] %v885
                %v887 = vld [vmem:[%s155 + $0x30c8] sm:$0xff]
                %888 = vst [vmem:[%s156 + $0xc38] sm:$0xff] %v887
                %v889 = vld [vmem:[%s155 + $0x30d0] sm:$0xff]
                %890 = vst [vmem:[%s156 + $0xc40] sm:$0xff] %v889
                %v891 = vld [vmem:[%s155 + $0x30d8] sm:$0xff]
                %892 = vst [vmem:[%s156 + $0xc48] sm:$0xff] %v891
                %v893 = vld [vmem:[%s155 + $0x30e0] sm:$0xff]
                %894 = vst [vmem:[%s156 + $0xc50] sm:$0xff] %v893
                %v895 = vld [vmem:[%s155 + $0x30e8] sm:$0xff]
                %896 = vst [vmem:[%s156 + $0xc58] sm:$0xff] %v895
                %v897 = vld [vmem:[%s155 + $0x30f0] sm:$0xff]
                %898 = vst [vmem:[%s156 + $0xc60] sm:$0xff] %v897
                %v899 = vld [vmem:[%s155 + $0x31b0] sm:$0xff]
                %900 = vst [vmem:[%s156 + $0xc6c] sm:$0xff] %v899
                %v901 = vld [vmem:[%s155 + $0x31b8] sm:$0xff]
                %902 = vst [vmem:[%s156 + $0xc74] sm:$0xff] %v901
                %v903 = vld [vmem:[%s155 + $0x31c0] sm:$0xff]
                %904 = vst [vmem:[%s156 + $0xc7c] sm:$0xff] %v903
                %v905 = vld [vmem:[%s155 + $0x31c8] sm:$0xff]
                %906 = vst [vmem:[%s156 + $0xc84] sm:$0xff] %v905
                %v907 = vld [vmem:[%s155 + $0x31d0] sm:$0xff]
                %908 = vst [vmem:[%s156 + $0xc8c] sm:$0xff] %v907
                %v909 = vld [vmem:[%s155 + $0x31d8] sm:$0xff]
                %910 = vst [vmem:[%s156 + $0xc94] sm:$0xff] %v909
                %v911 = vld [vmem:[%s155 + $0x31e0] sm:$0xff]
                %912 = vst [vmem:[%s156 + $0xc9c] sm:$0xff] %v911
                %v913 = vld [vmem:[%s155 + $0x32a0] sm:$0xff]
                %914 = vst [vmem:[%s156 + $0xca8] sm:$0xff] %v913
                %v915 = vld [vmem:[%s155 + $0x32a8] sm:$0xff]
                %916 = vst [vmem:[%s156 + $0xcb0] sm:$0xff] %v915
                %v917 = vld [vmem:[%s155 + $0x32b0] sm:$0xff]
                %918 = vst [vmem:[%s156 + $0xcb8] sm:$0xff] %v917
                %v919 = vld [vmem:[%s155 + $0x32b8] sm:$0xff]
                %920 = vst [vmem:[%s156 + $0xcc0] sm:$0xff] %v919
                %v921 = vld [vmem:[%s155 + $0x32c0] sm:$0xff]
                %922 = vst [vmem:[%s156 + $0xcc8] sm:$0xff] %v921
                %v923 = vld [vmem:[%s155 + $0x32c8] sm:$0xff]
                %924 = vst [vmem:[%s156 + $0xcd0] sm:$0xff] %v923
                %v925 = vld [vmem:[%s155 + $0x32d0] sm:$0xff]
                %926 = vst [vmem:[%s156 + $0xcd8] sm:$0xff] %v925
                %v927 = vld [vmem:[%s155 + $0x3390] sm:$0xff]
                %928 = vst [vmem:[%s156 + $0xce4] sm:$0xff] %v927
                %v929 = vld [vmem:[%s155 + $0x3398] sm:$0xff]
                %930 = vst [vmem:[%s156 + $0xcec] sm:$0xff] %v929
                %v931 = vld [vmem:[%s155 + $0x33a0] sm:$0xff]
                %932 = vst [vmem:[%s156 + $0xcf4] sm:$0xff] %v931
                %v933 = vld [vmem:[%s155 + $0x33a8] sm:$0xff]
                %934 = vst [vmem:[%s156 + $0xcfc] sm:$0xff] %v933
                %v935 = vld [vmem:[%s155 + $0x33b0] sm:$0xff]
                %936 = vst [vmem:[%s156 + $0xd04] sm:$0xff] %v935
                %v937 = vld [vmem:[%s155 + $0x33b8] sm:$0xff]
                %938 = vst [vmem:[%s156 + $0xd0c] sm:$0xff] %v937
                %v939 = vld [vmem:[%s155 + $0x33c0] sm:$0xff]
                %940 = vst [vmem:[%s156 + $0xd14] sm:$0xff] %v939
                %v941 = vld [vmem:[%s155 + $0x3480] sm:$0xff]
                %942 = vst [vmem:[%s156 + $0xd20] sm:$0xff] %v941
                %v943 = vld [vmem:[%s155 + $0x3488] sm:$0xff]
                %944 = vst [vmem:[%s156 + $0xd28] sm:$0xff] %v943
                %v945 = vld [vmem:[%s155 + $0x3490] sm:$0xff]
                %946 = vst [vmem:[%s156 + $0xd30] sm:$0xff] %v945
                %v947 = vld [vmem:[%s155 + $0x3498] sm:$0xff]
                %948 = vst [vmem:[%s156 + $0xd38] sm:$0xff] %v947
                %v949 = vld [vmem:[%s155 + $0x34a0] sm:$0xff]
                %950 = vst [vmem:[%s156 + $0xd40] sm:$0xff] %v949
                %v951 = vld [vmem:[%s155 + $0x34a8] sm:$0xff]
                %952 = vst [vmem:[%s156 + $0xd48] sm:$0xff] %v951
                %v953 = vld [vmem:[%s155 + $0x34b0] sm:$0xff]
                %954 = vst [vmem:[%s156 + $0xd50] sm:$0xff] %v953
                %v955 = vld [vmem:[%s155 + $0x3570] sm:$0xff]
                %956 = vst [vmem:[%s156 + $0xd5c] sm:$0xff] %v955
                %v957 = vld [vmem:[%s155 + $0x3578] sm:$0xff]
                %958 = vst [vmem:[%s156 + $0xd64] sm:$0xff] %v957
                %v959 = vld [vmem:[%s155 + $0x3580] sm:$0xff]
                %960 = vst [vmem:[%s156 + $0xd6c] sm:$0xff] %v959
                %v961 = vld [vmem:[%s155 + $0x3588] sm:$0xff]
                %962 = vst [vmem:[%s156 + $0xd74] sm:$0xff] %v961
                %v963 = vld [vmem:[%s155 + $0x3590] sm:$0xff]
                %964 = vst [vmem:[%s156 + $0xd7c] sm:$0xff] %v963
                %v965 = vld [vmem:[%s155 + $0x3598] sm:$0xff]
                %966 = vst [vmem:[%s156 + $0xd84] sm:$0xff] %v965
                %v967 = vld [vmem:[%s155 + $0x35a0] sm:$0xff]
                %968 = vst [vmem:[%s156 + $0xd8c] sm:$0xff] %v967
                %v969 = vld [vmem:[%s155 + $0x3660] sm:$0xff]
                %970 = vst [vmem:[%s156 + $0xd98] sm:$0xff] %v969
                %v971 = vld [vmem:[%s155 + $0x3668] sm:$0xff]
                %972 = vst [vmem:[%s156 + $0xda0] sm:$0xff] %v971
                %v973 = vld [vmem:[%s155 + $0x3670] sm:$0xff]
                %974 = vst [vmem:[%s156 + $0xda8] sm:$0xff] %v973
                %v975 = vld [vmem:[%s155 + $0x3678] sm:$0xff]
                %976 = vst [vmem:[%s156 + $0xdb0] sm:$0xff] %v975
                %v977 = vld [vmem:[%s155 + $0x3680] sm:$0xff]
                %978 = vst [vmem:[%s156 + $0xdb8] sm:$0xff] %v977
                %v979 = vld [vmem:[%s155 + $0x3688] sm:$0xff]
                %980 = vst [vmem:[%s156 + $0xdc0] sm:$0xff] %v979
                %v981 = vld [vmem:[%s155 + $0x3690] sm:$0xff]
                %982 = vst [vmem:[%s156 + $0xdc8] sm:$0xff] %v981
                %v983 = vld [vmem:[%s155 + $0x3750] sm:$0xff]
                %984 = vst [vmem:[%s156 + $0xdd4] sm:$0xff] %v983
                %v985 = vld [vmem:[%s155 + $0x3758] sm:$0xff]
                %986 = vst [vmem:[%s156 + $0xddc] sm:$0xff] %v985
                %v987 = vld [vmem:[%s155 + $0x3760] sm:$0xff]
                %988 = vst [vmem:[%s156 + $0xde4] sm:$0xff] %v987
                %v989 = vld [vmem:[%s155 + $0x3768] sm:$0xff]
                %990 = vst [vmem:[%s156 + $0xdec] sm:$0xff] %v989
                %v991 = vld [vmem:[%s155 + $0x3770] sm:$0xff]
                %992 = vst [vmem:[%s156 + $0xdf4] sm:$0xff] %v991
                %v993 = vld [vmem:[%s155 + $0x3778] sm:$0xff]
                %994 = vst [vmem:[%s156 + $0xdfc] sm:$0xff] %v993
                %v995 = vld [vmem:[%s155 + $0x3780] sm:$0xff]
                %996 = vst [vmem:[%s156 + $0xe04] sm:$0xff] %v995
                %v997 = vld [vmem:[%s155 + $0x3840] sm:$0xff]
                %998 = vst [vmem:[%s156 + $0xe10] sm:$0xff] %v997
                %v999 = vld [vmem:[%s155 + $0x3848] sm:$0xff]
                %1000 = vst [vmem:[%s156 + $0xe18] sm:$0xff] %v999
                %v1001 = vld [vmem:[%s155 + $0x3850] sm:$0xff]
                %1002 = vst [vmem:[%s156 + $0xe20] sm:$0xff] %v1001
                %v1003 = vld [vmem:[%s155 + $0x3858] sm:$0xff]
                %1004 = vst [vmem:[%s156 + $0xe28] sm:$0xff] %v1003
                %v1005 = vld [vmem:[%s155 + $0x3860] sm:$0xff]
                %1006 = vst [vmem:[%s156 + $0xe30] sm:$0xff] %v1005
                %v1007 = vld [vmem:[%s155 + $0x3868] sm:$0xff]
                %1008 = vst [vmem:[%s156 + $0xe38] sm:$0xff] %v1007
                %v1009 = vld [vmem:[%s155 + $0x3870] sm:$0xff]
                %1010 = vst [vmem:[%s156 + $0xe40] sm:$0xff] %v1009
                %v1011 = vld [vmem:[%s155 + $0x3930] sm:$0xff]
                %1012 = vst [vmem:[%s156 + $0xe4c] sm:$0xff] %v1011
                %v1013 = vld [vmem:[%s155 + $0x3938] sm:$0xff]
                %1014 = vst [vmem:[%s156 + $0xe54] sm:$0xff] %v1013
                %v1015 = vld [vmem:[%s155 + $0x3940] sm:$0xff]
                %1016 = vst [vmem:[%s156 + $0xe5c] sm:$0xff] %v1015
                %v1017 = vld [vmem:[%s155 + $0x3948] sm:$0xff]
                %1018 = vst [vmem:[%s156 + $0xe64] sm:$0xff] %v1017
                %v1019 = vld [vmem:[%s155 + $0x3950] sm:$0xff]
                %1020 = vst [vmem:[%s156 + $0xe6c] sm:$0xff] %v1019
                %v1021 = vld [vmem:[%s155 + $0x3958] sm:$0xff]
                %1022 = vst [vmem:[%s156 + $0xe74] sm:$0xff] %v1021
                %v1023 = vld [vmem:[%s155 + $0x3960] sm:$0xff]
                %1024 = vst [vmem:[%s156 + $0xe7c] sm:$0xff] %v1023
                %v1025 = vld [vmem:[%s155 + $0x3a20] sm:$0xff]
                %1026 = vst [vmem:[%s156 + $0xe88] sm:$0xff] %v1025
                %v1027 = vld [vmem:[%s155 + $0x3a28] sm:$0xff]
                %1028 = vst [vmem:[%s156 + $0xe90] sm:$0xff] %v1027
                %v1029 = vld [vmem:[%s155 + $0x3a30] sm:$0xff]
                %1030 = vst [vmem:[%s156 + $0xe98] sm:$0xff] %v1029
                %v1031 = vld [vmem:[%s155 + $0x3a38] sm:$0xff]
                %1032 = vst [vmem:[%s156 + $0xea0] sm:$0xff] %v1031
                %v1033 = vld [vmem:[%s155 + $0x3a40] sm:$0xff]
                %1034 = vst [vmem:[%s156 + $0xea8] sm:$0xff] %v1033
                %v1035 = vld [vmem:[%s155 + $0x3a48] sm:$0xff]
                %1036 = vst [vmem:[%s156 + $0xeb0] sm:$0xff] %v1035
                %v1037 = vld [vmem:[%s155 + $0x3a50] sm:$0xff]
                %1038 = vst [vmem:[%s156 + $0xeb8] sm:$0xff] %v1037
                %v1039 = vld [vmem:[%s155 + $0x3b10] sm:$0xff]
                %1040 = vst [vmem:[%s156 + $0xec4] sm:$0xff] %v1039
                %v1041 = vld [vmem:[%s155 + $0x3b18] sm:$0xff]
                %1042 = vst [vmem:[%s156 + $0xecc] sm:$0xff] %v1041
                %v1043 = vld [vmem:[%s155 + $0x3b20] sm:$0xff]
                %1044 = vst [vmem:[%s156 + $0xed4] sm:$0xff] %v1043
                %v1045 = vld [vmem:[%s155 + $0x3b28] sm:$0xff]
                %1046 = vst [vmem:[%s156 + $0xedc] sm:$0xff] %v1045
                %v1047 = vld [vmem:[%s155 + $0x3b30] sm:$0xff]
                %1048 = vst [vmem:[%s156 + $0xee4] sm:$0xff] %v1047
                %v1049 = vld [vmem:[%s155 + $0x3b38] sm:$0xff]
                %1050 = vst [vmem:[%s156 + $0xeec] sm:$0xff] %v1049
                %v1051 = vld [vmem:[%s155 + $0x3b40] sm:$0xff]
                %1052 = vst [vmem:[%s156 + $0xef4] sm:$0xff] %v1051
              $region37: #{mlp_mapper_forward.1} parent=31 // loop_footer
                %s154 = sadd.s32 1, %s150
              $region38: #{mlp_mapper_forward.1} parent=31 // loop_footer_branch
                %149 = sbr.rel target = $region34
              $region39: #{mlp_mapper_forward.1} parent=31 // loop_exit
                _
              %s1054 = ssub.s32 16, 1
              loop: start=0, step=1, limit=1
              $region40: #{mlp_mapper_forward.1} parent=31 // loop_pre_header
                _
              $region41: #{mlp_mapper_forward.1} parent=31 // loop_header
                %s1056 = sphi 0, %s1060
                %p1057 = scmp.ge.s32.totalorder %s1056, 1
                %s1061 = sphi %s147, %s147
                %s1062 = sphi %s148, %s148
              $region42: #{mlp_mapper_forward.1} parent=31 // loop_header_branch
                %1059 = sbr.rel (%p1057) target = $region46
              $region43: #{mlp_mapper_forward.1} parent=31 // loop_body
                %v1063 = vld [vmem:[%s1061] sm:%s1054]
                %1064 = vst [vmem:[%s1062] sm:%s1054] %v1063
                %v1065 = vld [vmem:[%s1061 + $0xf0] sm:%s1054]
                %1066 = vst [vmem:[%s1062 + $0x3c] sm:%s1054] %v1065
                %v1067 = vld [vmem:[%s1061 + $0x1e0] sm:%s1054]
                %1068 = vst [vmem:[%s1062 + $0x78] sm:%s1054] %v1067
                %v1069 = vld [vmem:[%s1061 + $0x2d0] sm:%s1054]
                %1070 = vst [vmem:[%s1062 + $0xb4] sm:%s1054] %v1069
                %v1071 = vld [vmem:[%s1061 + $0x3c0] sm:%s1054]
                %1072 = vst [vmem:[%s1062 + $0xf0] sm:%s1054] %v1071
                %v1073 = vld [vmem:[%s1061 + $0x4b0] sm:%s1054]
                %1074 = vst [vmem:[%s1062 + $0x12c] sm:%s1054] %v1073
                %v1075 = vld [vmem:[%s1061 + $0x5a0] sm:%s1054]
                %1076 = vst [vmem:[%s1062 + $0x168] sm:%s1054] %v1075
                %v1077 = vld [vmem:[%s1061 + $0x690] sm:%s1054]
                %1078 = vst [vmem:[%s1062 + $0x1a4] sm:%s1054] %v1077
                %v1079 = vld [vmem:[%s1061 + $0x780] sm:%s1054]
                %1080 = vst [vmem:[%s1062 + $0x1e0] sm:%s1054] %v1079
                %v1081 = vld [vmem:[%s1061 + $0x870] sm:%s1054]
                %1082 = vst [vmem:[%s1062 + $0x21c] sm:%s1054] %v1081
                %v1083 = vld [vmem:[%s1061 + $0x960] sm:%s1054]
                %1084 = vst [vmem:[%s1062 + $0x258] sm:%s1054] %v1083
                %v1085 = vld [vmem:[%s1061 + $0xa50] sm:%s1054]
                %1086 = vst [vmem:[%s1062 + $0x294] sm:%s1054] %v1085
                %v1087 = vld [vmem:[%s1061 + $0xb40] sm:%s1054]
                %1088 = vst [vmem:[%s1062 + $0x2d0] sm:%s1054] %v1087
                %v1089 = vld [vmem:[%s1061 + $0xc30] sm:%s1054]
                %1090 = vst [vmem:[%s1062 + $0x30c] sm:%s1054] %v1089
                %v1091 = vld [vmem:[%s1061 + $0xd20] sm:%s1054]
                %1092 = vst [vmem:[%s1062 + $0x348] sm:%s1054] %v1091
                %v1093 = vld [vmem:[%s1061 + $0xe10] sm:%s1054]
                %1094 = vst [vmem:[%s1062 + $0x384] sm:%s1054] %v1093
                %v1095 = vld [vmem:[%s1061 + $0xf00] sm:%s1054]
                %1096 = vst [vmem:[%s1062 + $0x3c0] sm:%s1054] %v1095
                %v1097 = vld [vmem:[%s1061 + $0xff0] sm:%s1054]
                %1098 = vst [vmem:[%s1062 + $0x3fc] sm:%s1054] %v1097
                %v1099 = vld [vmem:[%s1061 + $0x10e0] sm:%s1054]
                %1100 = vst [vmem:[%s1062 + $0x438] sm:%s1054] %v1099
                %v1101 = vld [vmem:[%s1061 + $0x11d0] sm:%s1054]
                %1102 = vst [vmem:[%s1062 + $0x474] sm:%s1054] %v1101
                %v1103 = vld [vmem:[%s1061 + $0x12c0] sm:%s1054]
                %1104 = vst [vmem:[%s1062 + $0x4b0] sm:%s1054] %v1103
                %v1105 = vld [vmem:[%s1061 + $0x13b0] sm:%s1054]
                %1106 = vst [vmem:[%s1062 + $0x4ec] sm:%s1054] %v1105
                %v1107 = vld [vmem:[%s1061 + $0x14a0] sm:%s1054]
                %1108 = vst [vmem:[%s1062 + $0x528] sm:%s1054] %v1107
                %v1109 = vld [vmem:[%s1061 + $0x1590] sm:%s1054]
                %1110 = vst [vmem:[%s1062 + $0x564] sm:%s1054] %v1109
                %v1111 = vld [vmem:[%s1061 + $0x1680] sm:%s1054]
                %1112 = vst [vmem:[%s1062 + $0x5a0] sm:%s1054] %v1111
                %v1113 = vld [vmem:[%s1061 + $0x1770] sm:%s1054]
                %1114 = vst [vmem:[%s1062 + $0x5dc] sm:%s1054] %v1113
                %v1115 = vld [vmem:[%s1061 + $0x1860] sm:%s1054]
                %1116 = vst [vmem:[%s1062 + $0x618] sm:%s1054] %v1115
                %v1117 = vld [vmem:[%s1061 + $0x1950] sm:%s1054]
                %1118 = vst [vmem:[%s1062 + $0x654] sm:%s1054] %v1117
                %v1119 = vld [vmem:[%s1061 + $0x1a40] sm:%s1054]
                %1120 = vst [vmem:[%s1062 + $0x690] sm:%s1054] %v1119
                %v1121 = vld [vmem:[%s1061 + $0x1b30] sm:%s1054]
                %1122 = vst [vmem:[%s1062 + $0x6cc] sm:%s1054] %v1121
                %v1123 = vld [vmem:[%s1061 + $0x1c20] sm:%s1054]
                %1124 = vst [vmem:[%s1062 + $0x708] sm:%s1054] %v1123
                %v1125 = vld [vmem:[%s1061 + $0x1d10] sm:%s1054]
                %1126 = vst [vmem:[%s1062 + $0x744] sm:%s1054] %v1125
                %v1127 = vld [vmem:[%s1061 + $0x1e00] sm:%s1054]
                %1128 = vst [vmem:[%s1062 + $0x780] sm:%s1054] %v1127
                %v1129 = vld [vmem:[%s1061 + $0x1ef0] sm:%s1054]
                %1130 = vst [vmem:[%s1062 + $0x7bc] sm:%s1054] %v1129
                %v1131 = vld [vmem:[%s1061 + $0x1fe0] sm:%s1054]
                %1132 = vst [vmem:[%s1062 + $0x7f8] sm:%s1054] %v1131
                %v1133 = vld [vmem:[%s1061 + $0x20d0] sm:%s1054]
                %1134 = vst [vmem:[%s1062 + $0x834] sm:%s1054] %v1133
                %v1135 = vld [vmem:[%s1061 + $0x21c0] sm:%s1054]
                %1136 = vst [vmem:[%s1062 + $0x870] sm:%s1054] %v1135
                %v1137 = vld [vmem:[%s1061 + $0x22b0] sm:%s1054]
                %1138 = vst [vmem:[%s1062 + $0x8ac] sm:%s1054] %v1137
                %v1139 = vld [vmem:[%s1061 + $0x23a0] sm:%s1054]
                %1140 = vst [vmem:[%s1062 + $0x8e8] sm:%s1054] %v1139
                %v1141 = vld [vmem:[%s1061 + $0x2490] sm:%s1054]
                %1142 = vst [vmem:[%s1062 + $0x924] sm:%s1054] %v1141
                %v1143 = vld [vmem:[%s1061 + $0x2580] sm:%s1054]
                %1144 = vst [vmem:[%s1062 + $0x960] sm:%s1054] %v1143
                %v1145 = vld [vmem:[%s1061 + $0x2670] sm:%s1054]
                %1146 = vst [vmem:[%s1062 + $0x99c] sm:%s1054] %v1145
                %v1147 = vld [vmem:[%s1061 + $0x2760] sm:%s1054]
                %1148 = vst [vmem:[%s1062 + $0x9d8] sm:%s1054] %v1147
                %v1149 = vld [vmem:[%s1061 + $0x2850] sm:%s1054]
                %1150 = vst [vmem:[%s1062 + $0xa14] sm:%s1054] %v1149
                %v1151 = vld [vmem:[%s1061 + $0x2940] sm:%s1054]
                %1152 = vst [vmem:[%s1062 + $0xa50] sm:%s1054] %v1151
                %v1153 = vld [vmem:[%s1061 + $0x2a30] sm:%s1054]
                %1154 = vst [vmem:[%s1062 + $0xa8c] sm:%s1054] %v1153
                %v1155 = vld [vmem:[%s1061 + $0x2b20] sm:%s1054]
                %1156 = vst [vmem:[%s1062 + $0xac8] sm:%s1054] %v1155
                %v1157 = vld [vmem:[%s1061 + $0x2c10] sm:%s1054]
                %1158 = vst [vmem:[%s1062 + $0xb04] sm:%s1054] %v1157
                %v1159 = vld [vmem:[%s1061 + $0x2d00] sm:%s1054]
                %1160 = vst [vmem:[%s1062 + $0xb40] sm:%s1054] %v1159
                %v1161 = vld [vmem:[%s1061 + $0x2df0] sm:%s1054]
                %1162 = vst [vmem:[%s1062 + $0xb7c] sm:%s1054] %v1161
                %v1163 = vld [vmem:[%s1061 + $0x2ee0] sm:%s1054]
                %1164 = vst [vmem:[%s1062 + $0xbb8] sm:%s1054] %v1163
                %v1165 = vld [vmem:[%s1061 + $0x2fd0] sm:%s1054]
                %1166 = vst [vmem:[%s1062 + $0xbf4] sm:%s1054] %v1165
                %v1167 = vld [vmem:[%s1061 + $0x30c0] sm:%s1054]
                %1168 = vst [vmem:[%s1062 + $0xc30] sm:%s1054] %v1167
                %v1169 = vld [vmem:[%s1061 + $0x31b0] sm:%s1054]
                %1170 = vst [vmem:[%s1062 + $0xc6c] sm:%s1054] %v1169
                %v1171 = vld [vmem:[%s1061 + $0x32a0] sm:%s1054]
                %1172 = vst [vmem:[%s1062 + $0xca8] sm:%s1054] %v1171
                %v1173 = vld [vmem:[%s1061 + $0x3390] sm:%s1054]
                %1174 = vst [vmem:[%s1062 + $0xce4] sm:%s1054] %v1173
                %v1175 = vld [vmem:[%s1061 + $0x3480] sm:%s1054]
                %1176 = vst [vmem:[%s1062 + $0xd20] sm:%s1054] %v1175
                %v1177 = vld [vmem:[%s1061 + $0x3570] sm:%s1054]
                %1178 = vst [vmem:[%s1062 + $0xd5c] sm:%s1054] %v1177
                %v1179 = vld [vmem:[%s1061 + $0x3660] sm:%s1054]
                %1180 = vst [vmem:[%s1062 + $0xd98] sm:%s1054] %v1179
                %v1181 = vld [vmem:[%s1061 + $0x3750] sm:%s1054]
                %1182 = vst [vmem:[%s1062 + $0xdd4] sm:%s1054] %v1181
                %v1183 = vld [vmem:[%s1061 + $0x3840] sm:%s1054]
                %1184 = vst [vmem:[%s1062 + $0xe10] sm:%s1054] %v1183
                %v1185 = vld [vmem:[%s1061 + $0x3930] sm:%s1054]
                %1186 = vst [vmem:[%s1062 + $0xe4c] sm:%s1054] %v1185
                %v1187 = vld [vmem:[%s1061 + $0x3a20] sm:%s1054]
                %1188 = vst [vmem:[%s1062 + $0xe88] sm:%s1054] %v1187
                %v1189 = vld [vmem:[%s1061 + $0x3b10] sm:%s1054]
                %1190 = vst [vmem:[%s1062 + $0xec4] sm:%s1054] %v1189
              $region44: #{mlp_mapper_forward.1} parent=31 // loop_footer
                %s1060 = sadd.s32 1, %s1056
              $region45: #{mlp_mapper_forward.1} parent=31 // loop_footer_branch
                %1055 = sbr.rel target = $region41
              $region46: #{mlp_mapper_forward.1} parent=31 // loop_exit
                _
            $region32: #{mlp_mapper_forward.1} parent=27 // pred_fallthru
              _
          $region28: #{mlp_mapper_forward.1} parent=23 // pred_fallthru
            _
          %1191 = vnop
        $region24: #{mlp_mapper_forward.1} parent=19 // pred_fallthru
          _
        // Predicated region
        $region47: #{mlp_mapper_forward.1} parent=19 // pred_check
          %p1192 = pneg %p79
        $region48: #{mlp_mapper_forward.1} parent=19 // pred_check_branch
          %1194 = sbr.rel (%p1192) target = $region50
        $region49: #{mlp_mapper_forward.1} parent=19 // pred_region
          %s1195 = smul.u32 15, %s12
          %p1196 = scmp.lt.s32.totalorder %s1195, 59
          %s1197 = scalar_select %p1196, %s1195, 59
          %s1198 = scalar_lea.vmem %s2, %s1197
          %s1199 = smul.u32 15, %s12
        $region50: #{mlp_mapper_forward.1} parent=19 // pred_fallthru
          _
      $region20: #{mlp_mapper_forward.1} parent=5 // pred_fallthru
        _
      %p1200 = scmp.le.s32.totalorder 1, %s12
      %p1201 = scmp.lt.s32.totalorder %s12, 5
      %p1202 = pnand %p1200, %p1201
      %p1203 = pneg %p1202
      // Predicated region
      $region51: #{mlp_mapper_forward.1} parent=5 // pred_check
        _
      $region52: #{mlp_mapper_forward.1} parent=5 // pred_check_branch
        %1205 = sbr.rel (%p1202) target = $region54
      $region53: #{mlp_mapper_forward.1} parent=5 // pred_region
        %s1206 = ssub.s32 %s12, 1
        %s1207 = sand.u32 %s46, 1
        %s1208 = sand.u32 %s46, 1
        %s1209 = smul.addr %s1208, 3840
        %s1210 = scalar_lea.vmem [#allocation2], %s1209
        // Predicated region
        $region55: #{mlp_mapper_forward.1} parent=53 // pred_check
          %p1211 = pneg %p59
        $region56: #{mlp_mapper_forward.1} parent=53 // pred_check_branch
          %1213 = sbr.rel (%p1211) target = $region58
        $region57: #{mlp_mapper_forward.1} parent=53 // pred_region
          _
        $region58: #{mlp_mapper_forward.1} parent=53 // pred_fallthru
          _
        %p1214 = pneg %p33
        %p1215 = pneg %p30
        %s1216 = sand.u32 %s46, 1
        %s1217 = sand.u32 %s46, 1
        %s1218 = smul.addr %s1217, 3840
        %s1219 = scalar_lea.vmem [#allocation2], %s1218
        %p1220 = pneg %p59
        %p1221 = pneg %p56
        %s1222 = smul.u32 15, %s17
        %p1223 = scmp.lt.s32.totalorder %s1222, 59
        %s1224 = scalar_select %p1223, %s1222, 59
        %s1225 = scalar_lea.vmem %s2, %s1224
        %p1226 = pneg %p85
        %p1227 = pneg %p82
        %p1228 = pneg %p111
        %p1229 = pneg %p108
        %s1230 = sand.u32 %s98, 1
        %s1231 = scalar_lea.sflag [#allocation4], %s1230
        %s1232 = sand.u32 %s98, 1
        %s1233 = smul.addr %s1232, 30
        %s1234 = scalar_lea.vmem [#allocation3], %s1233
        %s1235 = smul.u32 15, %s17
        %s1236 = smul.u32 15, %s17
        %p1237 = scmp.lt.s32.totalorder %s1236, 59
        %s1238 = scalar_select %p1237, %s1236, 59
        %s1239 = scalar_lea.vmem %s2, %s1238
        %s1240 = smul.u32 15, %s17
        %s1241 = smul.u32 15, %s17
        %v1243 = vld [vmem:[%s0] sm:$0xf]
        %v1244 = vld [vmem:[%s1210] sm:$0xff]
        %v1245 = vld [vmem:[%s1210 + $0x8] sm:$0xff]
        %v1246 = vld [vmem:[%s1210 + $0x10] sm:$0xff]
        %v1247 = vld [vmem:[%s1210 + $0x18] sm:$0xff]
        %v1248 = vld [vmem:[%s1210 + $0x20] sm:$0xff]
        %v1249 = vld [vmem:[%s1210 + $0x28] sm:$0xff]
        %v1250 = vld [vmem:[%s1210 + $0x30] sm:$0xff]
        %v1251 = vld [vmem:[%s1210 + $0x38] sm:$0xf]
        %v1252 = vld [vmem:[%s1210 + $0x3c] sm:$0xff]
        %v1253 = vld [vmem:[%s1210 + $0x44] sm:$0xff]
        %v1254 = vld [vmem:[%s1210 + $0x4c] sm:$0xff]
        %v1255 = vld [vmem:[%s1210 + $0x54] sm:$0xff]
        %v1256 = vld [vmem:[%s1210 + $0x5c] sm:$0xff]
        %v1257 = vld [vmem:[%s1210 + $0x64] sm:$0xff]
        %v1258 = vld [vmem:[%s1210 + $0x6c] sm:$0xff]
        %v1259 = vld [vmem:[%s1210 + $0x74] sm:$0xf]
        %v1260 = vld [vmem:[%s1210 + $0x78] sm:$0xff]
        %v1261 = vld [vmem:[%s1210 + $0x80] sm:$0xff]
        %v1262 = vld [vmem:[%s1210 + $0x88] sm:$0xff]
        %v1263 = vld [vmem:[%s1210 + $0x90] sm:$0xff]
        %v1264 = vld [vmem:[%s1210 + $0x98] sm:$0xff]
        %v1265 = vld [vmem:[%s1210 + $0xa0] sm:$0xff]
        %v1266 = vld [vmem:[%s1210 + $0xa8] sm:$0xff]
        %v1267 = vld [vmem:[%s1210 + $0xb0] sm:$0xf]
        %v1268 = vld [vmem:[%s1210 + $0xb4] sm:$0xff]
        %v1269 = vld [vmem:[%s1210 + $0xbc] sm:$0xff]
        %v1270 = vld [vmem:[%s1210 + $0xc4] sm:$0xff]
        %v1271 = vld [vmem:[%s1210 + $0xcc] sm:$0xff]
        %v1272 = vld [vmem:[%s1210 + $0xd4] sm:$0xff]
        %v1273 = vld [vmem:[%s1210 + $0xdc] sm:$0xff]
        %v1274 = vld [vmem:[%s1210 + $0xe4] sm:$0xff]
        %v1275 = vld [vmem:[%s1210 + $0xec] sm:$0xf]
        %v1276 = vld [vmem:[%s1210 + $0xf0] sm:$0xff]
        %v1277 = vld [vmem:[%s1210 + $0xf8] sm:$0xff]
        %v1278 = vld [vmem:[%s1210 + $0x100] sm:$0xff]
        %v1279 = vld [vmem:[%s1210 + $0x108] sm:$0xff]
        %v1280 = vld [vmem:[%s1210 + $0x110] sm:$0xff]
        %v1281 = vld [vmem:[%s1210 + $0x118] sm:$0xff]
        %v1282 = vld [vmem:[%s1210 + $0x120] sm:$0xff]
        %v1283 = vld [vmem:[%s1210 + $0x128] sm:$0xf]
        %v1284 = vld [vmem:[%s1210 + $0x12c] sm:$0xff]
        %v1285 = vld [vmem:[%s1210 + $0x134] sm:$0xff]
        %v1286 = vld [vmem:[%s1210 + $0x13c] sm:$0xff]
        %v1287 = vld [vmem:[%s1210 + $0x144] sm:$0xff]
        %v1288 = vld [vmem:[%s1210 + $0x14c] sm:$0xff]
        %v1289 = vld [vmem:[%s1210 + $0x154] sm:$0xff]
        %v1290 = vld [vmem:[%s1210 + $0x15c] sm:$0xff]
        %v1291 = vld [vmem:[%s1210 + $0x164] sm:$0xf]
        %v1292 = vld [vmem:[%s1210 + $0x168] sm:$0xff]
        %v1293 = vld [vmem:[%s1210 + $0x170] sm:$0xff]
        %v1294 = vld [vmem:[%s1210 + $0x178] sm:$0xff]
        %v1295 = vld [vmem:[%s1210 + $0x180] sm:$0xff]
        %v1296 = vld [vmem:[%s1210 + $0x188] sm:$0xff]
        %v1297 = vld [vmem:[%s1210 + $0x190] sm:$0xff]
        %v1298 = vld [vmem:[%s1210 + $0x198] sm:$0xff]
        %v1299 = vld [vmem:[%s1210 + $0x1a0] sm:$0xf]
        %v1300 = vld [vmem:[%s1210 + $0x1a4] sm:$0xff]
        %v1301 = vld [vmem:[%s1210 + $0x1ac] sm:$0xff]
        %v1302 = vld [vmem:[%s1210 + $0x1b4] sm:$0xff]
        %v1303 = vld [vmem:[%s1210 + $0x1bc] sm:$0xff]
        %v1304 = vld [vmem:[%s1210 + $0x1c4] sm:$0xff]
        %v1305 = vld [vmem:[%s1210 + $0x1cc] sm:$0xff]
        %v1306 = vld [vmem:[%s1210 + $0x1d4] sm:$0xff]
        %v1307 = vld [vmem:[%s1210 + $0x1dc] sm:$0xf]
        %v1308 = vld [vmem:[%s1210 + $0x1e0] sm:$0xff]
        %v1309 = vld [vmem:[%s1210 + $0x1e8] sm:$0xff]
        %v1310 = vld [vmem:[%s1210 + $0x1f0] sm:$0xff]
        %v1311 = vld [vmem:[%s1210 + $0x1f8] sm:$0xff]
        %v1312 = vld [vmem:[%s1210 + $0x200] sm:$0xff]
        %v1313 = vld [vmem:[%s1210 + $0x208] sm:$0xff]
        %v1314 = vld [vmem:[%s1210 + $0x210] sm:$0xff]
        %v1315 = vld [vmem:[%s1210 + $0x218] sm:$0xf]
        %v1316 = vld [vmem:[%s1210 + $0x21c] sm:$0xff]
        %v1317 = vld [vmem:[%s1210 + $0x224] sm:$0xff]
        %v1318 = vld [vmem:[%s1210 + $0x22c] sm:$0xff]
        %v1319 = vld [vmem:[%s1210 + $0x234] sm:$0xff]
        %v1320 = vld [vmem:[%s1210 + $0x23c] sm:$0xff]
        %v1321 = vld [vmem:[%s1210 + $0x244] sm:$0xff]
        %v1322 = vld [vmem:[%s1210 + $0x24c] sm:$0xff]
        %v1323 = vld [vmem:[%s1210 + $0x254] sm:$0xf]
        %v1324 = vld [vmem:[%s1210 + $0x258] sm:$0xff]
        %v1325 = vld [vmem:[%s1210 + $0x260] sm:$0xff]
        %v1326 = vld [vmem:[%s1210 + $0x268] sm:$0xff]
        %v1327 = vld [vmem:[%s1210 + $0x270] sm:$0xff]
        %v1328 = vld [vmem:[%s1210 + $0x278] sm:$0xff]
        %v1329 = vld [vmem:[%s1210 + $0x280] sm:$0xff]
        %v1330 = vld [vmem:[%s1210 + $0x288] sm:$0xff]
        %v1331 = vld [vmem:[%s1210 + $0x290] sm:$0xf]
        %v1332 = vld [vmem:[%s1210 + $0x294] sm:$0xff]
        %v1333 = vld [vmem:[%s1210 + $0x29c] sm:$0xff]
        %v1334 = vld [vmem:[%s1210 + $0x2a4] sm:$0xff]
        %v1335 = vld [vmem:[%s1210 + $0x2ac] sm:$0xff]
        %v1336 = vld [vmem:[%s1210 + $0x2b4] sm:$0xff]
        %v1337 = vld [vmem:[%s1210 + $0x2bc] sm:$0xff]
        %v1338 = vld [vmem:[%s1210 + $0x2c4] sm:$0xff]
        %v1339 = vld [vmem:[%s1210 + $0x2cc] sm:$0xf]
        %v1340 = vld [vmem:[%s1210 + $0x2d0] sm:$0xff]
        %v1341 = vld [vmem:[%s1210 + $0x2d8] sm:$0xff]
        %v1342 = vld [vmem:[%s1210 + $0x2e0] sm:$0xff]
        %v1343 = vld [vmem:[%s1210 + $0x2e8] sm:$0xff]
        %v1344 = vld [vmem:[%s1210 + $0x2f0] sm:$0xff]
        %v1345 = vld [vmem:[%s1210 + $0x2f8] sm:$0xff]
        %v1346 = vld [vmem:[%s1210 + $0x300] sm:$0xff]
        %v1347 = vld [vmem:[%s1210 + $0x308] sm:$0xf]
        %v1348 = vld [vmem:[%s1210 + $0x30c] sm:$0xff]
        %v1349 = vld [vmem:[%s1210 + $0x314] sm:$0xff]
        %v1350 = vld [vmem:[%s1210 + $0x31c] sm:$0xff]
        %v1351 = vld [vmem:[%s1210 + $0x324] sm:$0xff]
        %v1352 = vld [vmem:[%s1210 + $0x32c] sm:$0xff]
        %v1353 = vld [vmem:[%s1210 + $0x334] sm:$0xff]
        %v1354 = vld [vmem:[%s1210 + $0x33c] sm:$0xff]
        %v1355 = vld [vmem:[%s1210 + $0x344] sm:$0xf]
        %v1356 = vld [vmem:[%s1210 + $0x348] sm:$0xff]
        %v1357 = vld [vmem:[%s1210 + $0x350] sm:$0xff]
        %v1358 = vld [vmem:[%s1210 + $0x358] sm:$0xff]
        %v1359 = vld [vmem:[%s1210 + $0x360] sm:$0xff]
        %v1360 = vld [vmem:[%s1210 + $0x368] sm:$0xff]
        %v1361 = vld [vmem:[%s1210 + $0x370] sm:$0xff]
        %v1362 = vld [vmem:[%s1210 + $0x378] sm:$0xff]
        %v1363 = vld [vmem:[%s1210 + $0x380] sm:$0xf]
        %v1364 = vld [vmem:[%s1210 + $0x384] sm:$0xff]
        %v1365 = vld [vmem:[%s1210 + $0x38c] sm:$0xff]
        %v1366 = vld [vmem:[%s1210 + $0x394] sm:$0xff]
        %v1367 = vld [vmem:[%s1210 + $0x39c] sm:$0xff]
        %v1368 = vld [vmem:[%s1210 + $0x3a4] sm:$0xff]
        %v1369 = vld [vmem:[%s1210 + $0x3ac] sm:$0xff]
        %v1370 = vld [vmem:[%s1210 + $0x3b4] sm:$0xff]
        %v1371 = vld [vmem:[%s1210 + $0x3bc] sm:$0xf]
        %v1372 = vld [vmem:[%s1210 + $0x3c0] sm:$0xff]
        %v1373 = vld [vmem:[%s1210 + $0x3c8] sm:$0xff]
        %v1374 = vld [vmem:[%s1210 + $0x3d0] sm:$0xff]
        %v1375 = vld [vmem:[%s1210 + $0x3d8] sm:$0xff]
        %v1376 = vld [vmem:[%s1210 + $0x3e0] sm:$0xff]
        %v1377 = vld [vmem:[%s1210 + $0x3e8] sm:$0xff]
        %v1378 = vld [vmem:[%s1210 + $0x3f0] sm:$0xff]
        %v1379 = vld [vmem:[%s1210 + $0x3f8] sm:$0xf]
        %v1380 = vld [vmem:[%s1210 + $0x3fc] sm:$0xff]
        %v1381 = vld [vmem:[%s1210 + $0x404] sm:$0xff]
        %v1382 = vld [vmem:[%s1210 + $0x40c] sm:$0xff]
        %v1383 = vld [vmem:[%s1210 + $0x414] sm:$0xff]
        %v1384 = vld [vmem:[%s1210 + $0x41c] sm:$0xff]
        %v1385 = vld [vmem:[%s1210 + $0x424] sm:$0xff]
        %v1386 = vld [vmem:[%s1210 + $0x42c] sm:$0xff]
        %v1387 = vld [vmem:[%s1210 + $0x434] sm:$0xf]
        %v1388 = vld [vmem:[%s1210 + $0x438] sm:$0xff]
        %v1389 = vld [vmem:[%s1210 + $0x440] sm:$0xff]
        %v1390 = vld [vmem:[%s1210 + $0x448] sm:$0xff]
        %v1391 = vld [vmem:[%s1210 + $0x450] sm:$0xff]
        %v1392 = vld [vmem:[%s1210 + $0x458] sm:$0xff]
        %v1393 = vld [vmem:[%s1210 + $0x460] sm:$0xff]
        %v1394 = vld [vmem:[%s1210 + $0x468] sm:$0xff]
        %v1395 = vld [vmem:[%s1210 + $0x470] sm:$0xf]
        %v1396 = vld [vmem:[%s1210 + $0x474] sm:$0xff]
        %v1397 = vld [vmem:[%s1210 + $0x47c] sm:$0xff]
        %v1398 = vld [vmem:[%s1210 + $0x484] sm:$0xff]
        %v1399 = vld [vmem:[%s1210 + $0x48c] sm:$0xff]
        %v1400 = vld [vmem:[%s1210 + $0x494] sm:$0xff]
        %v1401 = vld [vmem:[%s1210 + $0x49c] sm:$0xff]
        %v1402 = vld [vmem:[%s1210 + $0x4a4] sm:$0xff]
        %v1403 = vld [vmem:[%s1210 + $0x4ac] sm:$0xf]
        %v1404 = vld [vmem:[%s1210 + $0x4b0] sm:$0xff]
        %v1405 = vld [vmem:[%s1210 + $0x4b8] sm:$0xff]
        %v1406 = vld [vmem:[%s1210 + $0x4c0] sm:$0xff]
        %v1407 = vld [vmem:[%s1210 + $0x4c8] sm:$0xff]
        %v1408 = vld [vmem:[%s1210 + $0x4d0] sm:$0xff]
        %v1409 = vld [vmem:[%s1210 + $0x4d8] sm:$0xff]
        %v1410 = vld [vmem:[%s1210 + $0x4e0] sm:$0xff]
        %v1411 = vld [vmem:[%s1210 + $0x4e8] sm:$0xf]
        %v1412 = vld [vmem:[%s1210 + $0x4ec] sm:$0xff]
        %v1413 = vld [vmem:[%s1210 + $0x4f4] sm:$0xff]
        %v1414 = vld [vmem:[%s1210 + $0x4fc] sm:$0xff]
        %v1415 = vld [vmem:[%s1210 + $0x504] sm:$0xff]
        %v1416 = vld [vmem:[%s1210 + $0x50c] sm:$0xff]
        %v1417 = vld [vmem:[%s1210 + $0x514] sm:$0xff]
        %v1418 = vld [vmem:[%s1210 + $0x51c] sm:$0xff]
        %v1419 = vld [vmem:[%s1210 + $0x524] sm:$0xf]
        %v1420 = vld [vmem:[%s1210 + $0x528] sm:$0xff]
        %v1421 = vld [vmem:[%s1210 + $0x530] sm:$0xff]
        %v1422 = vld [vmem:[%s1210 + $0x538] sm:$0xff]
        %v1423 = vld [vmem:[%s1210 + $0x540] sm:$0xff]
        %v1424 = vld [vmem:[%s1210 + $0x548] sm:$0xff]
        %v1425 = vld [vmem:[%s1210 + $0x550] sm:$0xff]
        %v1426 = vld [vmem:[%s1210 + $0x558] sm:$0xff]
        %v1427 = vld [vmem:[%s1210 + $0x560] sm:$0xf]
        %v1428 = vld [vmem:[%s1210 + $0x564] sm:$0xff]
        %v1429 = vld [vmem:[%s1210 + $0x56c] sm:$0xff]
        %v1430 = vld [vmem:[%s1210 + $0x574] sm:$0xff]
        %v1431 = vld [vmem:[%s1210 + $0x57c] sm:$0xff]
        %v1432 = vld [vmem:[%s1210 + $0x584] sm:$0xff]
        %v1433 = vld [vmem:[%s1210 + $0x58c] sm:$0xff]
        %v1434 = vld [vmem:[%s1210 + $0x594] sm:$0xff]
        %v1435 = vld [vmem:[%s1210 + $0x59c] sm:$0xf]
        %v1436 = vld [vmem:[%s1210 + $0x5a0] sm:$0xff]
        %v1437 = vld [vmem:[%s1210 + $0x5a8] sm:$0xff]
        %v1438 = vld [vmem:[%s1210 + $0x5b0] sm:$0xff]
        %v1439 = vld [vmem:[%s1210 + $0x5b8] sm:$0xff]
        %v1440 = vld [vmem:[%s1210 + $0x5c0] sm:$0xff]
        %v1441 = vld [vmem:[%s1210 + $0x5c8] sm:$0xff]
        %v1442 = vld [vmem:[%s1210 + $0x5d0] sm:$0xff]
        %v1443 = vld [vmem:[%s1210 + $0x5d8] sm:$0xf]
        %v1444 = vld [vmem:[%s1210 + $0x5dc] sm:$0xff]
        %v1445 = vld [vmem:[%s1210 + $0x5e4] sm:$0xff]
        %v1446 = vld [vmem:[%s1210 + $0x5ec] sm:$0xff]
        %v1447 = vld [vmem:[%s1210 + $0x5f4] sm:$0xff]
        %v1448 = vld [vmem:[%s1210 + $0x5fc] sm:$0xff]
        %v1449 = vld [vmem:[%s1210 + $0x604] sm:$0xff]
        %v1450 = vld [vmem:[%s1210 + $0x60c] sm:$0xff]
        %v1451 = vld [vmem:[%s1210 + $0x614] sm:$0xf]
        %v1452 = vld [vmem:[%s1210 + $0x618] sm:$0xff]
        %v1453 = vld [vmem:[%s1210 + $0x620] sm:$0xff]
        %v1454 = vld [vmem:[%s1210 + $0x628] sm:$0xff]
        %v1455 = vld [vmem:[%s1210 + $0x630] sm:$0xff]
        %v1456 = vld [vmem:[%s1210 + $0x638] sm:$0xff]
        %v1457 = vld [vmem:[%s1210 + $0x640] sm:$0xff]
        %v1458 = vld [vmem:[%s1210 + $0x648] sm:$0xff]
        %v1459 = vld [vmem:[%s1210 + $0x650] sm:$0xf]
        %v1460 = vld [vmem:[%s1210 + $0x654] sm:$0xff]
        %v1461 = vld [vmem:[%s1210 + $0x65c] sm:$0xff]
        %v1462 = vld [vmem:[%s1210 + $0x664] sm:$0xff]
        %v1463 = vld [vmem:[%s1210 + $0x66c] sm:$0xff]
        %v1464 = vld [vmem:[%s1210 + $0x674] sm:$0xff]
        %v1465 = vld [vmem:[%s1210 + $0x67c] sm:$0xff]
        %v1466 = vld [vmem:[%s1210 + $0x684] sm:$0xff]
        %v1467 = vld [vmem:[%s1210 + $0x68c] sm:$0xf]
        %v1468 = vld [vmem:[%s1210 + $0x690] sm:$0xff]
        %v1469 = vld [vmem:[%s1210 + $0x698] sm:$0xff]
        %v1470 = vld [vmem:[%s1210 + $0x6a0] sm:$0xff]
        %v1471 = vld [vmem:[%s1210 + $0x6a8] sm:$0xff]
        %v1472 = vld [vmem:[%s1210 + $0x6b0] sm:$0xff]
        %v1473 = vld [vmem:[%s1210 + $0x6b8] sm:$0xff]
        %v1474 = vld [vmem:[%s1210 + $0x6c0] sm:$0xff]
        %v1475 = vld [vmem:[%s1210 + $0x6c8] sm:$0xf]
        %v1476 = vld [vmem:[%s1210 + $0x6cc] sm:$0xff]
        %v1477 = vld [vmem:[%s1210 + $0x6d4] sm:$0xff]
        %v1478 = vld [vmem:[%s1210 + $0x6dc] sm:$0xff]
        %v1479 = vld [vmem:[%s1210 + $0x6e4] sm:$0xff]
        %v1480 = vld [vmem:[%s1210 + $0x6ec] sm:$0xff]
        %v1481 = vld [vmem:[%s1210 + $0x6f4] sm:$0xff]
        %v1482 = vld [vmem:[%s1210 + $0x6fc] sm:$0xff]
        %v1483 = vld [vmem:[%s1210 + $0x704] sm:$0xf]
        %v1484 = vld [vmem:[%s1210 + $0x708] sm:$0xff]
        %v1485 = vld [vmem:[%s1210 + $0x710] sm:$0xff]
        %v1486 = vld [vmem:[%s1210 + $0x718] sm:$0xff]
        %v1487 = vld [vmem:[%s1210 + $0x720] sm:$0xff]
        %v1488 = vld [vmem:[%s1210 + $0x728] sm:$0xff]
        %v1489 = vld [vmem:[%s1210 + $0x730] sm:$0xff]
        %v1490 = vld [vmem:[%s1210 + $0x738] sm:$0xff]
        %v1491 = vld [vmem:[%s1210 + $0x740] sm:$0xf]
        %v1492 = vld [vmem:[%s1210 + $0x744] sm:$0xff]
        %v1493 = vld [vmem:[%s1210 + $0x74c] sm:$0xff]
        %v1494 = vld [vmem:[%s1210 + $0x754] sm:$0xff]
        %v1495 = vld [vmem:[%s1210 + $0x75c] sm:$0xff]
        %v1496 = vld [vmem:[%s1210 + $0x764] sm:$0xff]
        %v1497 = vld [vmem:[%s1210 + $0x76c] sm:$0xff]
        %v1498 = vld [vmem:[%s1210 + $0x774] sm:$0xff]
        %v1499 = vld [vmem:[%s1210 + $0x77c] sm:$0xf]
        %v1500 = vld [vmem:[%s1210 + $0x780] sm:$0xff]
        %v1501 = vld [vmem:[%s1210 + $0x788] sm:$0xff]
        %v1502 = vld [vmem:[%s1210 + $0x790] sm:$0xff]
        %v1503 = vld [vmem:[%s1210 + $0x798] sm:$0xff]
        %v1504 = vld [vmem:[%s1210 + $0x7a0] sm:$0xff]
        %v1505 = vld [vmem:[%s1210 + $0x7a8] sm:$0xff]
        %v1506 = vld [vmem:[%s1210 + $0x7b0] sm:$0xff]
        %v1507 = vld [vmem:[%s1210 + $0x7b8] sm:$0xf]
        %v1508 = vld [vmem:[%s1210 + $0x7bc] sm:$0xff]
        %v1509 = vld [vmem:[%s1210 + $0x7c4] sm:$0xff]
        %v1510 = vld [vmem:[%s1210 + $0x7cc] sm:$0xff]
        %v1511 = vld [vmem:[%s1210 + $0x7d4] sm:$0xff]
        %v1512 = vld [vmem:[%s1210 + $0x7dc] sm:$0xff]
        %v1513 = vld [vmem:[%s1210 + $0x7e4] sm:$0xff]
        %v1514 = vld [vmem:[%s1210 + $0x7ec] sm:$0xff]
        %v1515 = vld [vmem:[%s1210 + $0x7f4] sm:$0xf]
        %v1516 = vld [vmem:[%s1210 + $0x7f8] sm:$0xff]
        %v1517 = vld [vmem:[%s1210 + $0x800] sm:$0xff]
        %v1518 = vld [vmem:[%s1210 + $0x808] sm:$0xff]
        %v1519 = vld [vmem:[%s1210 + $0x810] sm:$0xff]
        %v1520 = vld [vmem:[%s1210 + $0x818] sm:$0xff]
        %v1521 = vld [vmem:[%s1210 + $0x820] sm:$0xff]
        %v1522 = vld [vmem:[%s1210 + $0x828] sm:$0xff]
        %v1523 = vld [vmem:[%s1210 + $0x830] sm:$0xf]
        %v1524 = vld [vmem:[%s1210 + $0x834] sm:$0xff]
        %v1525 = vld [vmem:[%s1210 + $0x83c] sm:$0xff]
        %v1526 = vld [vmem:[%s1210 + $0x844] sm:$0xff]
        %v1527 = vld [vmem:[%s1210 + $0x84c] sm:$0xff]
        %v1528 = vld [vmem:[%s1210 + $0x854] sm:$0xff]
        %v1529 = vld [vmem:[%s1210 + $0x85c] sm:$0xff]
        %v1530 = vld [vmem:[%s1210 + $0x864] sm:$0xff]
        %v1531 = vld [vmem:[%s1210 + $0x86c] sm:$0xf]
        %v1532 = vld [vmem:[%s1210 + $0x870] sm:$0xff]
        %v1533 = vld [vmem:[%s1210 + $0x878] sm:$0xff]
        %v1534 = vld [vmem:[%s1210 + $0x880] sm:$0xff]
        %v1535 = vld [vmem:[%s1210 + $0x888] sm:$0xff]
        %v1536 = vld [vmem:[%s1210 + $0x890] sm:$0xff]
        %v1537 = vld [vmem:[%s1210 + $0x898] sm:$0xff]
        %v1538 = vld [vmem:[%s1210 + $0x8a0] sm:$0xff]
        %v1539 = vld [vmem:[%s1210 + $0x8a8] sm:$0xf]
        %v1540 = vld [vmem:[%s1210 + $0x8ac] sm:$0xff]
        %v1541 = vld [vmem:[%s1210 + $0x8b4] sm:$0xff]
        %v1542 = vld [vmem:[%s1210 + $0x8bc] sm:$0xff]
        %v1543 = vld [vmem:[%s1210 + $0x8c4] sm:$0xff]
        %v1544 = vld [vmem:[%s1210 + $0x8cc] sm:$0xff]
        %v1545 = vld [vmem:[%s1210 + $0x8d4] sm:$0xff]
        %v1546 = vld [vmem:[%s1210 + $0x8dc] sm:$0xff]
        %v1547 = vld [vmem:[%s1210 + $0x8e4] sm:$0xf]
        %v1548 = vld [vmem:[%s1210 + $0x8e8] sm:$0xff]
        %v1549 = vld [vmem:[%s1210 + $0x8f0] sm:$0xff]
        %v1550 = vld [vmem:[%s1210 + $0x8f8] sm:$0xff]
        %v1551 = vld [vmem:[%s1210 + $0x900] sm:$0xff]
        %v1552 = vld [vmem:[%s1210 + $0x908] sm:$0xff]
        %v1553 = vld [vmem:[%s1210 + $0x910] sm:$0xff]
        %v1554 = vld [vmem:[%s1210 + $0x918] sm:$0xff]
        %v1555 = vld [vmem:[%s1210 + $0x920] sm:$0xf]
        %v1556 = vld [vmem:[%s1210 + $0x924] sm:$0xff]
        %v1557 = vld [vmem:[%s1210 + $0x92c] sm:$0xff]
        %v1558 = vld [vmem:[%s1210 + $0x934] sm:$0xff]
        %v1559 = vld [vmem:[%s1210 + $0x93c] sm:$0xff]
        %v1560 = vld [vmem:[%s1210 + $0x944] sm:$0xff]
        %v1561 = vld [vmem:[%s1210 + $0x94c] sm:$0xff]
        %v1562 = vld [vmem:[%s1210 + $0x954] sm:$0xff]
        %v1563 = vld [vmem:[%s1210 + $0x95c] sm:$0xf]
        %v1564 = vld [vmem:[%s1210 + $0x960] sm:$0xff]
        %v1565 = vld [vmem:[%s1210 + $0x968] sm:$0xff]
        %v1566 = vld [vmem:[%s1210 + $0x970] sm:$0xff]
        %v1567 = vld [vmem:[%s1210 + $0x978] sm:$0xff]
        %v1568 = vld [vmem:[%s1210 + $0x980] sm:$0xff]
        %v1569 = vld [vmem:[%s1210 + $0x988] sm:$0xff]
        %v1570 = vld [vmem:[%s1210 + $0x990] sm:$0xff]
        %v1571 = vld [vmem:[%s1210 + $0x998] sm:$0xf]
        %v1572 = vld [vmem:[%s1210 + $0x99c] sm:$0xff]
        %v1573 = vld [vmem:[%s1210 + $0x9a4] sm:$0xff]
        %v1574 = vld [vmem:[%s1210 + $0x9ac] sm:$0xff]
        %v1575 = vld [vmem:[%s1210 + $0x9b4] sm:$0xff]
        %v1576 = vld [vmem:[%s1210 + $0x9bc] sm:$0xff]
        %v1577 = vld [vmem:[%s1210 + $0x9c4] sm:$0xff]
        %v1578 = vld [vmem:[%s1210 + $0x9cc] sm:$0xff]
        %v1579 = vld [vmem:[%s1210 + $0x9d4] sm:$0xf]
        %v1580 = vld [vmem:[%s1210 + $0x9d8] sm:$0xff]
        %v1581 = vld [vmem:[%s1210 + $0x9e0] sm:$0xff]
        %v1582 = vld [vmem:[%s1210 + $0x9e8] sm:$0xff]
        %v1583 = vld [vmem:[%s1210 + $0x9f0] sm:$0xff]
        %v1584 = vld [vmem:[%s1210 + $0x9f8] sm:$0xff]
        %v1585 = vld [vmem:[%s1210 + $0xa00] sm:$0xff]
        %v1586 = vld [vmem:[%s1210 + $0xa08] sm:$0xff]
        %v1587 = vld [vmem:[%s1210 + $0xa10] sm:$0xf]
        %v1588 = vld [vmem:[%s1210 + $0xa14] sm:$0xff]
        %v1589 = vld [vmem:[%s1210 + $0xa1c] sm:$0xff]
        %v1590 = vld [vmem:[%s1210 + $0xa24] sm:$0xff]
        %v1591 = vld [vmem:[%s1210 + $0xa2c] sm:$0xff]
        %v1592 = vld [vmem:[%s1210 + $0xa34] sm:$0xff]
        %v1593 = vld [vmem:[%s1210 + $0xa3c] sm:$0xff]
        %v1594 = vld [vmem:[%s1210 + $0xa44] sm:$0xff]
        %v1595 = vld [vmem:[%s1210 + $0xa4c] sm:$0xf]
        %v1596 = vld [vmem:[%s1210 + $0xa50] sm:$0xff]
        %v1597 = vld [vmem:[%s1210 + $0xa58] sm:$0xff]
        %v1598 = vld [vmem:[%s1210 + $0xa60] sm:$0xff]
        %v1599 = vld [vmem:[%s1210 + $0xa68] sm:$0xff]
        %v1600 = vld [vmem:[%s1210 + $0xa70] sm:$0xff]
        %v1601 = vld [vmem:[%s1210 + $0xa78] sm:$0xff]
        %v1602 = vld [vmem:[%s1210 + $0xa80] sm:$0xff]
        %v1603 = vld [vmem:[%s1210 + $0xa88] sm:$0xf]
        %v1604 = vld [vmem:[%s1210 + $0xa8c] sm:$0xff]
        %v1605 = vld [vmem:[%s1210 + $0xa94] sm:$0xff]
        %v1606 = vld [vmem:[%s1210 + $0xa9c] sm:$0xff]
        %v1607 = vld [vmem:[%s1210 + $0xaa4] sm:$0xff]
        %v1608 = vld [vmem:[%s1210 + $0xaac] sm:$0xff]
        %v1609 = vld [vmem:[%s1210 + $0xab4] sm:$0xff]
        %v1610 = vld [vmem:[%s1210 + $0xabc] sm:$0xff]
        %v1611 = vld [vmem:[%s1210 + $0xac4] sm:$0xf]
        %v1612 = vld [vmem:[%s1210 + $0xac8] sm:$0xff]
        %v1613 = vld [vmem:[%s1210 + $0xad0] sm:$0xff]
        %v1614 = vld [vmem:[%s1210 + $0xad8] sm:$0xff]
        %v1615 = vld [vmem:[%s1210 + $0xae0] sm:$0xff]
        %v1616 = vld [vmem:[%s1210 + $0xae8] sm:$0xff]
        %v1617 = vld [vmem:[%s1210 + $0xaf0] sm:$0xff]
        %v1618 = vld [vmem:[%s1210 + $0xaf8] sm:$0xff]
        %v1619 = vld [vmem:[%s1210 + $0xb00] sm:$0xf]
        %v1620 = vld [vmem:[%s1210 + $0xb04] sm:$0xff]
        %v1621 = vld [vmem:[%s1210 + $0xb0c] sm:$0xff]
        %v1622 = vld [vmem:[%s1210 + $0xb14] sm:$0xff]
        %v1623 = vld [vmem:[%s1210 + $0xb1c] sm:$0xff]
        %v1624 = vld [vmem:[%s1210 + $0xb24] sm:$0xff]
        %v1625 = vld [vmem:[%s1210 + $0xb2c] sm:$0xff]
        %v1626 = vld [vmem:[%s1210 + $0xb34] sm:$0xff]
        %v1627 = vld [vmem:[%s1210 + $0xb3c] sm:$0xf]
        %v1628 = vld [vmem:[%s1210 + $0xb40] sm:$0xff]
        %v1629 = vld [vmem:[%s1210 + $0xb48] sm:$0xff]
        %v1630 = vld [vmem:[%s1210 + $0xb50] sm:$0xff]
        %v1631 = vld [vmem:[%s1210 + $0xb58] sm:$0xff]
        %v1632 = vld [vmem:[%s1210 + $0xb60] sm:$0xff]
        %v1633 = vld [vmem:[%s1210 + $0xb68] sm:$0xff]
        %v1634 = vld [vmem:[%s1210 + $0xb70] sm:$0xff]
        %v1635 = vld [vmem:[%s1210 + $0xb78] sm:$0xf]
        %v1636 = vld [vmem:[%s1210 + $0xb7c] sm:$0xff]
        %v1637 = vld [vmem:[%s1210 + $0xb84] sm:$0xff]
        %v1638 = vld [vmem:[%s1210 + $0xb8c] sm:$0xff]
        %v1639 = vld [vmem:[%s1210 + $0xb94] sm:$0xff]
        %v1640 = vld [vmem:[%s1210 + $0xb9c] sm:$0xff]
        %v1641 = vld [vmem:[%s1210 + $0xba4] sm:$0xff]
        %v1642 = vld [vmem:[%s1210 + $0xbac] sm:$0xff]
        %v1643 = vld [vmem:[%s1210 + $0xbb4] sm:$0xf]
        %v1644 = vld [vmem:[%s1210 + $0xbb8] sm:$0xff]
        %v1645 = vld [vmem:[%s1210 + $0xbc0] sm:$0xff]
        %v1646 = vld [vmem:[%s1210 + $0xbc8] sm:$0xff]
        %v1647 = vld [vmem:[%s1210 + $0xbd0] sm:$0xff]
        %v1648 = vld [vmem:[%s1210 + $0xbd8] sm:$0xff]
        %v1649 = vld [vmem:[%s1210 + $0xbe0] sm:$0xff]
        %v1650 = vld [vmem:[%s1210 + $0xbe8] sm:$0xff]
        %v1651 = vld [vmem:[%s1210 + $0xbf0] sm:$0xf]
        %v1652 = vld [vmem:[%s1210 + $0xbf4] sm:$0xff]
        %v1653 = vld [vmem:[%s1210 + $0xbfc] sm:$0xff]
        %v1654 = vld [vmem:[%s1210 + $0xc04] sm:$0xff]
        %v1655 = vld [vmem:[%s1210 + $0xc0c] sm:$0xff]
        %v1656 = vld [vmem:[%s1210 + $0xc14] sm:$0xff]
        %v1657 = vld [vmem:[%s1210 + $0xc1c] sm:$0xff]
        %v1658 = vld [vmem:[%s1210 + $0xc24] sm:$0xff]
        %v1659 = vld [vmem:[%s1210 + $0xc2c] sm:$0xf]
        %v1660 = vld [vmem:[%s1210 + $0xc30] sm:$0xff]
        %v1661 = vld [vmem:[%s1210 + $0xc38] sm:$0xff]
        %v1662 = vld [vmem:[%s1210 + $0xc40] sm:$0xff]
        %v1663 = vld [vmem:[%s1210 + $0xc48] sm:$0xff]
        %v1664 = vld [vmem:[%s1210 + $0xc50] sm:$0xff]
        %v1665 = vld [vmem:[%s1210 + $0xc58] sm:$0xff]
        %v1666 = vld [vmem:[%s1210 + $0xc60] sm:$0xff]
        %v1667 = vld [vmem:[%s1210 + $0xc68] sm:$0xf]
        %v1668 = vld [vmem:[%s1210 + $0xc6c] sm:$0xff]
        %v1669 = vld [vmem:[%s1210 + $0xc74] sm:$0xff]
        %v1670 = vld [vmem:[%s1210 + $0xc7c] sm:$0xff]
        %v1671 = vld [vmem:[%s1210 + $0xc84] sm:$0xff]
        %v1672 = vld [vmem:[%s1210 + $0xc8c] sm:$0xff]
        %v1673 = vld [vmem:[%s1210 + $0xc94] sm:$0xff]
        %v1674 = vld [vmem:[%s1210 + $0xc9c] sm:$0xff]
        %v1675 = vld [vmem:[%s1210 + $0xca4] sm:$0xf]
        %v1676 = vld [vmem:[%s1210 + $0xca8] sm:$0xff]
        %v1677 = vld [vmem:[%s1210 + $0xcb0] sm:$0xff]
        %v1678 = vld [vmem:[%s1210 + $0xcb8] sm:$0xff]
        %v1679 = vld [vmem:[%s1210 + $0xcc0] sm:$0xff]
        %v1680 = vld [vmem:[%s1210 + $0xcc8] sm:$0xff]
        %v1681 = vld [vmem:[%s1210 + $0xcd0] sm:$0xff]
        %v1682 = vld [vmem:[%s1210 + $0xcd8] sm:$0xff]
        %v1683 = vld [vmem:[%s1210 + $0xce0] sm:$0xf]
        %v1684 = vld [vmem:[%s1210 + $0xce4] sm:$0xff]
        %v1685 = vld [vmem:[%s1210 + $0xcec] sm:$0xff]
        %v1686 = vld [vmem:[%s1210 + $0xcf4] sm:$0xff]
        %v1687 = vld [vmem:[%s1210 + $0xcfc] sm:$0xff]
        %v1688 = vld [vmem:[%s1210 + $0xd04] sm:$0xff]
        %v1689 = vld [vmem:[%s1210 + $0xd0c] sm:$0xff]
        %v1690 = vld [vmem:[%s1210 + $0xd14] sm:$0xff]
        %v1691 = vld [vmem:[%s1210 + $0xd1c] sm:$0xf]
        %v1692 = vld [vmem:[%s1210 + $0xd20] sm:$0xff]
        %v1693 = vld [vmem:[%s1210 + $0xd28] sm:$0xff]
        %v1694 = vld [vmem:[%s1210 + $0xd30] sm:$0xff]
        %v1695 = vld [vmem:[%s1210 + $0xd38] sm:$0xff]
        %v1696 = vld [vmem:[%s1210 + $0xd40] sm:$0xff]
        %v1697 = vld [vmem:[%s1210 + $0xd48] sm:$0xff]
        %v1698 = vld [vmem:[%s1210 + $0xd50] sm:$0xff]
        %v1699 = vld [vmem:[%s1210 + $0xd58] sm:$0xf]
        %v1700 = vld [vmem:[%s1210 + $0xd5c] sm:$0xff]
        %v1701 = vld [vmem:[%s1210 + $0xd64] sm:$0xff]
        %v1702 = vld [vmem:[%s1210 + $0xd6c] sm:$0xff]
        %v1703 = vld [vmem:[%s1210 + $0xd74] sm:$0xff]
        %v1704 = vld [vmem:[%s1210 + $0xd7c] sm:$0xff]
        %v1705 = vld [vmem:[%s1210 + $0xd84] sm:$0xff]
        %v1706 = vld [vmem:[%s1210 + $0xd8c] sm:$0xff]
        %v1707 = vld [vmem:[%s1210 + $0xd94] sm:$0xf]
        %v1708 = vld [vmem:[%s1210 + $0xd98] sm:$0xff]
        %v1709 = vld [vmem:[%s1210 + $0xda0] sm:$0xff]
        %v1710 = vld [vmem:[%s1210 + $0xda8] sm:$0xff]
        %v1711 = vld [vmem:[%s1210 + $0xdb0] sm:$0xff]
        %v1712 = vld [vmem:[%s1210 + $0xdb8] sm:$0xff]
        %v1713 = vld [vmem:[%s1210 + $0xdc0] sm:$0xff]
        %v1714 = vld [vmem:[%s1210 + $0xdc8] sm:$0xff]
        %v1715 = vld [vmem:[%s1210 + $0xdd0] sm:$0xf]
        %v1716 = vld [vmem:[%s1210 + $0xdd4] sm:$0xff]
        %v1717 = vld [vmem:[%s1210 + $0xddc] sm:$0xff]
        %v1718 = vld [vmem:[%s1210 + $0xde4] sm:$0xff]
        %v1719 = vld [vmem:[%s1210 + $0xdec] sm:$0xff]
        %v1720 = vld [vmem:[%s1210 + $0xdf4] sm:$0xff]
        %v1721 = vld [vmem:[%s1210 + $0xdfc] sm:$0xff]
        %v1722 = vld [vmem:[%s1210 + $0xe04] sm:$0xff]
        %v1723 = vld [vmem:[%s1210 + $0xe0c] sm:$0xf]
        %v1724 = vld [vmem:[%s1210 + $0xe10] sm:$0xff]
        %v1725 = vld [vmem:[%s1210 + $0xe18] sm:$0xff]
        %v1726 = vld [vmem:[%s1210 + $0xe20] sm:$0xff]
        %v1727 = vld [vmem:[%s1210 + $0xe28] sm:$0xff]
        %v1728 = vld [vmem:[%s1210 + $0xe30] sm:$0xff]
        %v1729 = vld [vmem:[%s1210 + $0xe38] sm:$0xff]
        %v1730 = vld [vmem:[%s1210 + $0xe40] sm:$0xff]
        %v1731 = vld [vmem:[%s1210 + $0xe48] sm:$0xf]
        %v1732 = vld [vmem:[%s1210 + $0xe4c] sm:$0xff]
        %v1733 = vld [vmem:[%s1210 + $0xe54] sm:$0xff]
        %v1734 = vld [vmem:[%s1210 + $0xe5c] sm:$0xff]
        %v1735 = vld [vmem:[%s1210 + $0xe64] sm:$0xff]
        %v1736 = vld [vmem:[%s1210 + $0xe6c] sm:$0xff]
        %v1737 = vld [vmem:[%s1210 + $0xe74] sm:$0xff]
        %v1738 = vld [vmem:[%s1210 + $0xe7c] sm:$0xff]
        %v1739 = vld [vmem:[%s1210 + $0xe84] sm:$0xf]
        %v1740 = vld [vmem:[%s1210 + $0xe88] sm:$0xff]
        %v1741 = vld [vmem:[%s1210 + $0xe90] sm:$0xff]
        %v1742 = vld [vmem:[%s1210 + $0xe98] sm:$0xff]
        %v1743 = vld [vmem:[%s1210 + $0xea0] sm:$0xff]
        %v1744 = vld [vmem:[%s1210 + $0xea8] sm:$0xff]
        %v1745 = vld [vmem:[%s1210 + $0xeb0] sm:$0xff]
        %v1746 = vld [vmem:[%s1210 + $0xeb8] sm:$0xff]
        %v1747 = vld [vmem:[%s1210 + $0xec0] sm:$0xf]
        %v1748 = vld [vmem:[%s1210 + $0xec4] sm:$0xff]
        %v1749 = vld [vmem:[%s1210 + $0xecc] sm:$0xff]
        %v1750 = vld [vmem:[%s1210 + $0xed4] sm:$0xff]
        %v1751 = vld [vmem:[%s1210 + $0xedc] sm:$0xff]
        %v1752 = vld [vmem:[%s1210 + $0xee4] sm:$0xff]
        %v1753 = vld [vmem:[%s1210 + $0xeec] sm:$0xff]
        %v1754 = vld [vmem:[%s1210 + $0xef4] sm:$0xff]
        %v1755 = vld [vmem:[%s1210 + $0xefc] sm:$0xf]
        %v1756 = vld [vmem:[%s1239] sm:$0xff]
        %v1757 = vld [vmem:[%s1239 + $0x8] sm:$0xff]
        %v1760 = vlaneseq
        %v1761 = vshrl.u32 %v1760, 7
        %v1762 = vsub.s32 0, %v1761
        %v1763 = vrot.slane %v1756, %v1762
        %v1764 = vlaneseq
        %v1765 = vshrl.u32 %v1764, 7
        %v1766 = vsub.s32 1, %v1765
        %v1767 = vrot.slane %v1756, %v1766
        %v1768 = vlaneseq
        %v1769 = vshrl.u32 %v1768, 7
        %v1770 = vsub.s32 2, %v1769
        %v1771 = vrot.slane %v1756, %v1770
        %v1772 = vlaneseq
        %v1773 = vshrl.u32 %v1772, 7
        %v1774 = vsub.s32 3, %v1773
        %v1775 = vrot.slane %v1756, %v1774
        %v1776 = vlaneseq
        %v1777 = vshrl.u32 %v1776, 7
        %v1778 = vsub.s32 4, %v1777
        %v1779 = vrot.slane %v1756, %v1778
        %v1780 = vlaneseq
        %v1781 = vshrl.u32 %v1780, 7
        %v1782 = vsub.s32 5, %v1781
        %v1783 = vrot.slane %v1756, %v1782
        %v1784 = vlaneseq
        %v1785 = vshrl.u32 %v1784, 7
        %v1786 = vsub.s32 6, %v1785
        %v1787 = vrot.slane %v1756, %v1786
        %v1788 = vlaneseq
        %v1789 = vshrl.u32 %v1788, 7
        %v1790 = vsub.s32 7, %v1789
        %v1791 = vrot.slane %v1756, %v1790
        %v1792 = vlaneseq
        %v1793 = vshrl.u32 %v1792, 7
        %v1794 = vsub.s32 0, %v1793
        %v1795 = vrot.slane %v1757, %v1794
        %v1796 = vlaneseq
        %v1797 = vshrl.u32 %v1796, 7
        %v1798 = vsub.s32 1, %v1797
        %v1799 = vrot.slane %v1757, %v1798
        %v1800 = vlaneseq
        %v1801 = vshrl.u32 %v1800, 7
        %v1802 = vsub.s32 2, %v1801
        %v1803 = vrot.slane %v1757, %v1802
        %v1804 = vlaneseq
        %v1805 = vshrl.u32 %v1804, 7
        %v1806 = vsub.s32 3, %v1805
        %v1807 = vrot.slane %v1757, %v1806
        %v1808 = vlaneseq
        %v1809 = vshrl.u32 %v1808, 7
        %v1810 = vsub.s32 4, %v1809
        %v1811 = vrot.slane %v1757, %v1810
        %v1812 = vlaneseq
        %v1813 = vshrl.u32 %v1812, 7
        %v1814 = vsub.s32 5, %v1813
        %v1815 = vrot.slane %v1757, %v1814
        %v1816 = vlaneseq
        %v1817 = vshrl.u32 %v1816, 7
        %v1818 = vsub.s32 6, %v1817
        %v1819 = vrot.slane %v1757, %v1818
        %v1837 = vunpack.c.l.s4 1966171168
        %v1838 = vunpack.c.0.s8 %v1837
        %v1839 = vlaneseq
        %v1840 = vshrl.u32 %v1839, 7
        %v1841 = vsub.s32 %v1838, %v1840
        %v1842 = vrot.slane %v1243, %v1841
        %v1843 = vcombine.high %v1842, %v1842
        %v1845 = vunpack.c.l.s4 1966171168
        %v1846 = vunpack.c.0.s8 %v1845
        %v1847 = vlaneseq
        %v1848 = vshrl.u32 %v1847, 7
        %v1849 = vsub.s32 %v1846, %v1848
        %v1850 = vrot.slane %v1842, %v1849
        %v1852 = vunpack.c.l.s4 1966171168
        %v1853 = vunpack.c.0.s8 %v1852
        %v1854 = vlaneseq
        %v1855 = vshrl.u32 %v1854, 7
        %v1856 = vsub.s32 %v1853, %v1855
        %v1857 = vrot.slane %v1843, %v1856
        %v1858 = vcombine.high %v1850, %v1850
        %v1859 = vcombine.high %v1857, %v1857
        %v2376 = vunpack.c.l.b16 %v1244
        %v2377 = vunpack.c.h.b16 %v1244
        %v2378 = vunpack.c.l.b16 %v1245
        %v2379 = vunpack.c.h.b16 %v1245
        %v2380 = vunpack.c.l.b16 %v1246
        %v2381 = vunpack.c.h.b16 %v1246
        %v2382 = vunpack.c.l.b16 %v1247
        %v2383 = vunpack.c.h.b16 %v1247
        %v2384 = vunpack.c.l.b16 %v1248
        %v2385 = vunpack.c.h.b16 %v1248
        %v2386 = vunpack.c.l.b16 %v1249
        %v2387 = vunpack.c.h.b16 %v1249
        %v2388 = vunpack.c.l.b16 %v1250
        %v2389 = vunpack.c.h.b16 %v1250
        %v2390 = vunpack.c.l.b16 %v1251
        %v2391 = vunpack.c.l.b16 %v1252
        %v2392 = vunpack.c.h.b16 %v1252
        %v2393 = vunpack.c.l.b16 %v1253
        %v2394 = vunpack.c.h.b16 %v1253
        %v2395 = vunpack.c.l.b16 %v1254
        %v2396 = vunpack.c.h.b16 %v1254
        %v2397 = vunpack.c.l.b16 %v1255
        %v2398 = vunpack.c.h.b16 %v1255
        %v2399 = vunpack.c.l.b16 %v1256
        %v2400 = vunpack.c.h.b16 %v1256
        %v2401 = vunpack.c.l.b16 %v1257
        %v2402 = vunpack.c.h.b16 %v1257
        %v2403 = vunpack.c.l.b16 %v1258
        %v2404 = vunpack.c.h.b16 %v1258
        %v2405 = vunpack.c.l.b16 %v1259
        %v2406 = vunpack.c.l.b16 %v1260
        %v2407 = vunpack.c.h.b16 %v1260
        %v2408 = vunpack.c.l.b16 %v1261
        %v2409 = vunpack.c.h.b16 %v1261
        %v2410 = vunpack.c.l.b16 %v1262
        %v2411 = vunpack.c.h.b16 %v1262
        %v2412 = vunpack.c.l.b16 %v1263
        %v2413 = vunpack.c.h.b16 %v1263
        %v2414 = vunpack.c.l.b16 %v1264
        %v2415 = vunpack.c.h.b16 %v1264
        %v2416 = vunpack.c.l.b16 %v1265
        %v2417 = vunpack.c.h.b16 %v1265
        %v2418 = vunpack.c.l.b16 %v1266
        %v2419 = vunpack.c.h.b16 %v1266
        %v2420 = vunpack.c.l.b16 %v1267
        %v2421 = vunpack.c.l.b16 %v1268
        %v2422 = vunpack.c.h.b16 %v1268
        %v2423 = vunpack.c.l.b16 %v1269
        %v2424 = vunpack.c.h.b16 %v1269
        %v2425 = vunpack.c.l.b16 %v1270
        %v2426 = vunpack.c.h.b16 %v1270
        %v2427 = vunpack.c.l.b16 %v1271
        %v2428 = vunpack.c.h.b16 %v1271
        %v2429 = vunpack.c.l.b16 %v1272
        %v2430 = vunpack.c.h.b16 %v1272
        %v2431 = vunpack.c.l.b16 %v1273
        %v2432 = vunpack.c.h.b16 %v1273
        %v2433 = vunpack.c.l.b16 %v1274
        %v2434 = vunpack.c.h.b16 %v1274
        %v2435 = vunpack.c.l.b16 %v1275
        %v2436 = vunpack.c.l.b16 %v1276
        %v2437 = vunpack.c.h.b16 %v1276
        %v2438 = vunpack.c.l.b16 %v1277
        %v2439 = vunpack.c.h.b16 %v1277
        %v2440 = vunpack.c.l.b16 %v1278
        %v2441 = vunpack.c.h.b16 %v1278
        %v2442 = vunpack.c.l.b16 %v1279
        %v2443 = vunpack.c.h.b16 %v1279
        %v2444 = vunpack.c.l.b16 %v1280
        %v2445 = vunpack.c.h.b16 %v1280
        %v2446 = vunpack.c.l.b16 %v1281
        %v2447 = vunpack.c.h.b16 %v1281
        %v2448 = vunpack.c.l.b16 %v1282
        %v2449 = vunpack.c.h.b16 %v1282
        %v2450 = vunpack.c.l.b16 %v1283
        %v2451 = vunpack.c.l.b16 %v1284
        %v2452 = vunpack.c.h.b16 %v1284
        %v2453 = vunpack.c.l.b16 %v1285
        %v2454 = vunpack.c.h.b16 %v1285
        %v2455 = vunpack.c.l.b16 %v1286
        %v2456 = vunpack.c.h.b16 %v1286
        %v2457 = vunpack.c.l.b16 %v1287
        %v2458 = vunpack.c.h.b16 %v1287
        %v2459 = vunpack.c.l.b16 %v1288
        %v2460 = vunpack.c.h.b16 %v1288
        %v2461 = vunpack.c.l.b16 %v1289
        %v2462 = vunpack.c.h.b16 %v1289
        %v2463 = vunpack.c.l.b16 %v1290
        %v2464 = vunpack.c.h.b16 %v1290
        %v2465 = vunpack.c.l.b16 %v1291
        %v2466 = vunpack.c.l.b16 %v1292
        %v2467 = vunpack.c.h.b16 %v1292
        %v2468 = vunpack.c.l.b16 %v1293
        %v2469 = vunpack.c.h.b16 %v1293
        %v2470 = vunpack.c.l.b16 %v1294
        %v2471 = vunpack.c.h.b16 %v1294
        %v2472 = vunpack.c.l.b16 %v1295
        %v2473 = vunpack.c.h.b16 %v1295
        %v2474 = vunpack.c.l.b16 %v1296
        %v2475 = vunpack.c.h.b16 %v1296
        %v2476 = vunpack.c.l.b16 %v1297
        %v2477 = vunpack.c.h.b16 %v1297
        %v2478 = vunpack.c.l.b16 %v1298
        %v2479 = vunpack.c.h.b16 %v1298
        %v2480 = vunpack.c.l.b16 %v1299
        %v2481 = vunpack.c.l.b16 %v1300
        %v2482 = vunpack.c.h.b16 %v1300
        %v2483 = vunpack.c.l.b16 %v1301
        %v2484 = vunpack.c.h.b16 %v1301
        %v2485 = vunpack.c.l.b16 %v1302
        %v2486 = vunpack.c.h.b16 %v1302
        %v2487 = vunpack.c.l.b16 %v1303
        %v2488 = vunpack.c.h.b16 %v1303
        %v2489 = vunpack.c.l.b16 %v1304
        %v2490 = vunpack.c.h.b16 %v1304
        %v2491 = vunpack.c.l.b16 %v1305
        %v2492 = vunpack.c.h.b16 %v1305
        %v2493 = vunpack.c.l.b16 %v1306
        %v2494 = vunpack.c.h.b16 %v1306
        %v2495 = vunpack.c.l.b16 %v1307
        %v2496 = vunpack.c.l.b16 %v1308
        %v2497 = vunpack.c.h.b16 %v1308
        %v2498 = vunpack.c.l.b16 %v1309
        %v2499 = vunpack.c.h.b16 %v1309
        %v2500 = vunpack.c.l.b16 %v1310
        %v2501 = vunpack.c.h.b16 %v1310
        %v2502 = vunpack.c.l.b16 %v1311
        %v2503 = vunpack.c.h.b16 %v1311
        %v2504 = vunpack.c.l.b16 %v1312
        %v2505 = vunpack.c.h.b16 %v1312
        %v2506 = vunpack.c.l.b16 %v1313
        %v2507 = vunpack.c.h.b16 %v1313
        %v2508 = vunpack.c.l.b16 %v1314
        %v2509 = vunpack.c.h.b16 %v1314
        %v2510 = vunpack.c.l.b16 %v1315
        %v2511 = vunpack.c.l.b16 %v1316
        %v2512 = vunpack.c.h.b16 %v1316
        %v2513 = vunpack.c.l.b16 %v1317
        %v2514 = vunpack.c.h.b16 %v1317
        %v2515 = vunpack.c.l.b16 %v1318
        %v2516 = vunpack.c.h.b16 %v1318
        %v2517 = vunpack.c.l.b16 %v1319
        %v2518 = vunpack.c.h.b16 %v1319
        %v2519 = vunpack.c.l.b16 %v1320
        %v2520 = vunpack.c.h.b16 %v1320
        %v2521 = vunpack.c.l.b16 %v1321
        %v2522 = vunpack.c.h.b16 %v1321
        %v2523 = vunpack.c.l.b16 %v1322
        %v2524 = vunpack.c.h.b16 %v1322
        %v2525 = vunpack.c.l.b16 %v1323
        %v2526 = vunpack.c.l.b16 %v1324
        %v2527 = vunpack.c.h.b16 %v1324
        %v2528 = vunpack.c.l.b16 %v1325
        %v2529 = vunpack.c.h.b16 %v1325
        %v2530 = vunpack.c.l.b16 %v1326
        %v2531 = vunpack.c.h.b16 %v1326
        %v2532 = vunpack.c.l.b16 %v1327
        %v2533 = vunpack.c.h.b16 %v1327
        %v2534 = vunpack.c.l.b16 %v1328
        %v2535 = vunpack.c.h.b16 %v1328
        %v2536 = vunpack.c.l.b16 %v1329
        %v2537 = vunpack.c.h.b16 %v1329
        %v2538 = vunpack.c.l.b16 %v1330
        %v2539 = vunpack.c.h.b16 %v1330
        %v2540 = vunpack.c.l.b16 %v1331
        %v2541 = vunpack.c.l.b16 %v1332
        %v2542 = vunpack.c.h.b16 %v1332
        %v2543 = vunpack.c.l.b16 %v1333
        %v2544 = vunpack.c.h.b16 %v1333
        %v2545 = vunpack.c.l.b16 %v1334
        %v2546 = vunpack.c.h.b16 %v1334
        %v2547 = vunpack.c.l.b16 %v1335
        %v2548 = vunpack.c.h.b16 %v1335
        %v2549 = vunpack.c.l.b16 %v1336
        %v2550 = vunpack.c.h.b16 %v1336
        %v2551 = vunpack.c.l.b16 %v1337
        %v2552 = vunpack.c.h.b16 %v1337
        %v2553 = vunpack.c.l.b16 %v1338
        %v2554 = vunpack.c.h.b16 %v1338
        %v2555 = vunpack.c.l.b16 %v1339
        %v2556 = vunpack.c.l.b16 %v1340
        %v2557 = vunpack.c.h.b16 %v1340
        %v2558 = vunpack.c.l.b16 %v1341
        %v2559 = vunpack.c.h.b16 %v1341
        %v2560 = vunpack.c.l.b16 %v1342
        %v2561 = vunpack.c.h.b16 %v1342
        %v2562 = vunpack.c.l.b16 %v1343
        %v2563 = vunpack.c.h.b16 %v1343
        %v2564 = vunpack.c.l.b16 %v1344
        %v2565 = vunpack.c.h.b16 %v1344
        %v2566 = vunpack.c.l.b16 %v1345
        %v2567 = vunpack.c.h.b16 %v1345
        %v2568 = vunpack.c.l.b16 %v1346
        %v2569 = vunpack.c.h.b16 %v1346
        %v2570 = vunpack.c.l.b16 %v1347
        %v2571 = vunpack.c.l.b16 %v1348
        %v2572 = vunpack.c.h.b16 %v1348
        %v2573 = vunpack.c.l.b16 %v1349
        %v2574 = vunpack.c.h.b16 %v1349
        %v2575 = vunpack.c.l.b16 %v1350
        %v2576 = vunpack.c.h.b16 %v1350
        %v2577 = vunpack.c.l.b16 %v1351
        %v2578 = vunpack.c.h.b16 %v1351
        %v2579 = vunpack.c.l.b16 %v1352
        %v2580 = vunpack.c.h.b16 %v1352
        %v2581 = vunpack.c.l.b16 %v1353
        %v2582 = vunpack.c.h.b16 %v1353
        %v2583 = vunpack.c.l.b16 %v1354
        %v2584 = vunpack.c.h.b16 %v1354
        %v2585 = vunpack.c.l.b16 %v1355
        %v2586 = vunpack.c.l.b16 %v1356
        %v2587 = vunpack.c.h.b16 %v1356
        %v2588 = vunpack.c.l.b16 %v1357
        %v2589 = vunpack.c.h.b16 %v1357
        %v2590 = vunpack.c.l.b16 %v1358
        %v2591 = vunpack.c.h.b16 %v1358
        %v2592 = vunpack.c.l.b16 %v1359
        %v2593 = vunpack.c.h.b16 %v1359
        %v2594 = vunpack.c.l.b16 %v1360
        %v2595 = vunpack.c.h.b16 %v1360
        %v2596 = vunpack.c.l.b16 %v1361
        %v2597 = vunpack.c.h.b16 %v1361
        %v2598 = vunpack.c.l.b16 %v1362
        %v2599 = vunpack.c.h.b16 %v1362
        %v2600 = vunpack.c.l.b16 %v1363
        %v2601 = vunpack.c.l.b16 %v1364
        %v2602 = vunpack.c.h.b16 %v1364
        %v2603 = vunpack.c.l.b16 %v1365
        %v2604 = vunpack.c.h.b16 %v1365
        %v2605 = vunpack.c.l.b16 %v1366
        %v2606 = vunpack.c.h.b16 %v1366
        %v2607 = vunpack.c.l.b16 %v1367
        %v2608 = vunpack.c.h.b16 %v1367
        %v2609 = vunpack.c.l.b16 %v1368
        %v2610 = vunpack.c.h.b16 %v1368
        %v2611 = vunpack.c.l.b16 %v1369
        %v2612 = vunpack.c.h.b16 %v1369
        %v2613 = vunpack.c.l.b16 %v1370
        %v2614 = vunpack.c.h.b16 %v1370
        %v2615 = vunpack.c.l.b16 %v1371
        %v2616 = vunpack.c.l.b16 %v1372
        %v2617 = vunpack.c.h.b16 %v1372
        %v2618 = vunpack.c.l.b16 %v1373
        %v2619 = vunpack.c.h.b16 %v1373
        %v2620 = vunpack.c.l.b16 %v1374
        %v2621 = vunpack.c.h.b16 %v1374
        %v2622 = vunpack.c.l.b16 %v1375
        %v2623 = vunpack.c.h.b16 %v1375
        %v2624 = vunpack.c.l.b16 %v1376
        %v2625 = vunpack.c.h.b16 %v1376
        %v2626 = vunpack.c.l.b16 %v1377
        %v2627 = vunpack.c.h.b16 %v1377
        %v2628 = vunpack.c.l.b16 %v1378
        %v2629 = vunpack.c.h.b16 %v1378
        %v2630 = vunpack.c.l.b16 %v1379
        %v2631 = vunpack.c.l.b16 %v1380
        %v2632 = vunpack.c.h.b16 %v1380
        %v2633 = vunpack.c.l.b16 %v1381
        %v2634 = vunpack.c.h.b16 %v1381
        %v2635 = vunpack.c.l.b16 %v1382
        %v2636 = vunpack.c.h.b16 %v1382
        %v2637 = vunpack.c.l.b16 %v1383
        %v2638 = vunpack.c.h.b16 %v1383
        %v2639 = vunpack.c.l.b16 %v1384
        %v2640 = vunpack.c.h.b16 %v1384
        %v2641 = vunpack.c.l.b16 %v1385
        %v2642 = vunpack.c.h.b16 %v1385
        %v2643 = vunpack.c.l.b16 %v1386
        %v2644 = vunpack.c.h.b16 %v1386
        %v2645 = vunpack.c.l.b16 %v1387
        %v2646 = vunpack.c.l.b16 %v1388
        %v2647 = vunpack.c.h.b16 %v1388
        %v2648 = vunpack.c.l.b16 %v1389
        %v2649 = vunpack.c.h.b16 %v1389
        %v2650 = vunpack.c.l.b16 %v1390
        %v2651 = vunpack.c.h.b16 %v1390
        %v2652 = vunpack.c.l.b16 %v1391
        %v2653 = vunpack.c.h.b16 %v1391
        %v2654 = vunpack.c.l.b16 %v1392
        %v2655 = vunpack.c.h.b16 %v1392
        %v2656 = vunpack.c.l.b16 %v1393
        %v2657 = vunpack.c.h.b16 %v1393
        %v2658 = vunpack.c.l.b16 %v1394
        %v2659 = vunpack.c.h.b16 %v1394
        %v2660 = vunpack.c.l.b16 %v1395
        %v2661 = vunpack.c.l.b16 %v1396
        %v2662 = vunpack.c.h.b16 %v1396
        %v2663 = vunpack.c.l.b16 %v1397
        %v2664 = vunpack.c.h.b16 %v1397
        %v2665 = vunpack.c.l.b16 %v1398
        %v2666 = vunpack.c.h.b16 %v1398
        %v2667 = vunpack.c.l.b16 %v1399
        %v2668 = vunpack.c.h.b16 %v1399
        %v2669 = vunpack.c.l.b16 %v1400
        %v2670 = vunpack.c.h.b16 %v1400
        %v2671 = vunpack.c.l.b16 %v1401
        %v2672 = vunpack.c.h.b16 %v1401
        %v2673 = vunpack.c.l.b16 %v1402
        %v2674 = vunpack.c.h.b16 %v1402
        %v2675 = vunpack.c.l.b16 %v1403
        %v2676 = vunpack.c.l.b16 %v1404
        %v2677 = vunpack.c.h.b16 %v1404
        %v2678 = vunpack.c.l.b16 %v1405
        %v2679 = vunpack.c.h.b16 %v1405
        %v2680 = vunpack.c.l.b16 %v1406
        %v2681 = vunpack.c.h.b16 %v1406
        %v2682 = vunpack.c.l.b16 %v1407
        %v2683 = vunpack.c.h.b16 %v1407
        %v2684 = vunpack.c.l.b16 %v1408
        %v2685 = vunpack.c.h.b16 %v1408
        %v2686 = vunpack.c.l.b16 %v1409
        %v2687 = vunpack.c.h.b16 %v1409
        %v2688 = vunpack.c.l.b16 %v1410
        %v2689 = vunpack.c.h.b16 %v1410
        %v2690 = vunpack.c.l.b16 %v1411
        %v2691 = vunpack.c.l.b16 %v1412
        %v2692 = vunpack.c.h.b16 %v1412
        %v2693 = vunpack.c.l.b16 %v1413
        %v2694 = vunpack.c.h.b16 %v1413
        %v2695 = vunpack.c.l.b16 %v1414
        %v2696 = vunpack.c.h.b16 %v1414
        %v2697 = vunpack.c.l.b16 %v1415
        %v2698 = vunpack.c.h.b16 %v1415
        %v2699 = vunpack.c.l.b16 %v1416
        %v2700 = vunpack.c.h.b16 %v1416
        %v2701 = vunpack.c.l.b16 %v1417
        %v2702 = vunpack.c.h.b16 %v1417
        %v2703 = vunpack.c.l.b16 %v1418
        %v2704 = vunpack.c.h.b16 %v1418
        %v2705 = vunpack.c.l.b16 %v1419
        %v2706 = vunpack.c.l.b16 %v1420
        %v2707 = vunpack.c.h.b16 %v1420
        %v2708 = vunpack.c.l.b16 %v1421
        %v2709 = vunpack.c.h.b16 %v1421
        %v2710 = vunpack.c.l.b16 %v1422
        %v2711 = vunpack.c.h.b16 %v1422
        %v2712 = vunpack.c.l.b16 %v1423
        %v2713 = vunpack.c.h.b16 %v1423
        %v2714 = vunpack.c.l.b16 %v1424
        %v2715 = vunpack.c.h.b16 %v1424
        %v2716 = vunpack.c.l.b16 %v1425
        %v2717 = vunpack.c.h.b16 %v1425
        %v2718 = vunpack.c.l.b16 %v1426
        %v2719 = vunpack.c.h.b16 %v1426
        %v2720 = vunpack.c.l.b16 %v1427
        %v2721 = vunpack.c.l.b16 %v1428
        %v2722 = vunpack.c.h.b16 %v1428
        %v2723 = vunpack.c.l.b16 %v1429
        %v2724 = vunpack.c.h.b16 %v1429
        %v2725 = vunpack.c.l.b16 %v1430
        %v2726 = vunpack.c.h.b16 %v1430
        %v2727 = vunpack.c.l.b16 %v1431
        %v2728 = vunpack.c.h.b16 %v1431
        %v2729 = vunpack.c.l.b16 %v1432
        %v2730 = vunpack.c.h.b16 %v1432
        %v2731 = vunpack.c.l.b16 %v1433
        %v2732 = vunpack.c.h.b16 %v1433
        %v2733 = vunpack.c.l.b16 %v1434
        %v2734 = vunpack.c.h.b16 %v1434
        %v2735 = vunpack.c.l.b16 %v1435
        %v2736 = vunpack.c.l.b16 %v1436
        %v2737 = vunpack.c.h.b16 %v1436
        %v2738 = vunpack.c.l.b16 %v1437
        %v2739 = vunpack.c.h.b16 %v1437
        %v2740 = vunpack.c.l.b16 %v1438
        %v2741 = vunpack.c.h.b16 %v1438
        %v2742 = vunpack.c.l.b16 %v1439
        %v2743 = vunpack.c.h.b16 %v1439
        %v2744 = vunpack.c.l.b16 %v1440
        %v2745 = vunpack.c.h.b16 %v1440
        %v2746 = vunpack.c.l.b16 %v1441
        %v2747 = vunpack.c.h.b16 %v1441
        %v2748 = vunpack.c.l.b16 %v1442
        %v2749 = vunpack.c.h.b16 %v1442
        %v2750 = vunpack.c.l.b16 %v1443
        %v2751 = vunpack.c.l.b16 %v1444
        %v2752 = vunpack.c.h.b16 %v1444
        %v2753 = vunpack.c.l.b16 %v1445
        %v2754 = vunpack.c.h.b16 %v1445
        %v2755 = vunpack.c.l.b16 %v1446
        %v2756 = vunpack.c.h.b16 %v1446
        %v2757 = vunpack.c.l.b16 %v1447
        %v2758 = vunpack.c.h.b16 %v1447
        %v2759 = vunpack.c.l.b16 %v1448
        %v2760 = vunpack.c.h.b16 %v1448
        %v2761 = vunpack.c.l.b16 %v1449
        %v2762 = vunpack.c.h.b16 %v1449
        %v2763 = vunpack.c.l.b16 %v1450
        %v2764 = vunpack.c.h.b16 %v1450
        %v2765 = vunpack.c.l.b16 %v1451
        %v2766 = vunpack.c.l.b16 %v1452
        %v2767 = vunpack.c.h.b16 %v1452
        %v2768 = vunpack.c.l.b16 %v1453
        %v2769 = vunpack.c.h.b16 %v1453
        %v2770 = vunpack.c.l.b16 %v1454
        %v2771 = vunpack.c.h.b16 %v1454
        %v2772 = vunpack.c.l.b16 %v1455
        %v2773 = vunpack.c.h.b16 %v1455
        %v2774 = vunpack.c.l.b16 %v1456
        %v2775 = vunpack.c.h.b16 %v1456
        %v2776 = vunpack.c.l.b16 %v1457
        %v2777 = vunpack.c.h.b16 %v1457
        %v2778 = vunpack.c.l.b16 %v1458
        %v2779 = vunpack.c.h.b16 %v1458
        %v2780 = vunpack.c.l.b16 %v1459
        %v2781 = vunpack.c.l.b16 %v1460
        %v2782 = vunpack.c.h.b16 %v1460
        %v2783 = vunpack.c.l.b16 %v1461
        %v2784 = vunpack.c.h.b16 %v1461
        %v2785 = vunpack.c.l.b16 %v1462
        %v2786 = vunpack.c.h.b16 %v1462
        %v2787 = vunpack.c.l.b16 %v1463
        %v2788 = vunpack.c.h.b16 %v1463
        %v2789 = vunpack.c.l.b16 %v1464
        %v2790 = vunpack.c.h.b16 %v1464
        %v2791 = vunpack.c.l.b16 %v1465
        %v2792 = vunpack.c.h.b16 %v1465
        %v2793 = vunpack.c.l.b16 %v1466
        %v2794 = vunpack.c.h.b16 %v1466
        %v2795 = vunpack.c.l.b16 %v1467
        %v2796 = vunpack.c.l.b16 %v1468
        %v2797 = vunpack.c.h.b16 %v1468
        %v2798 = vunpack.c.l.b16 %v1469
        %v2799 = vunpack.c.h.b16 %v1469
        %v2800 = vunpack.c.l.b16 %v1470
        %v2801 = vunpack.c.h.b16 %v1470
        %v2802 = vunpack.c.l.b16 %v1471
        %v2803 = vunpack.c.h.b16 %v1471
        %v2804 = vunpack.c.l.b16 %v1472
        %v2805 = vunpack.c.h.b16 %v1472
        %v2806 = vunpack.c.l.b16 %v1473
        %v2807 = vunpack.c.h.b16 %v1473
        %v2808 = vunpack.c.l.b16 %v1474
        %v2809 = vunpack.c.h.b16 %v1474
        %v2810 = vunpack.c.l.b16 %v1475
        %v2811 = vunpack.c.l.b16 %v1476
        %v2812 = vunpack.c.h.b16 %v1476
        %v2813 = vunpack.c.l.b16 %v1477
        %v2814 = vunpack.c.h.b16 %v1477
        %v2815 = vunpack.c.l.b16 %v1478
        %v2816 = vunpack.c.h.b16 %v1478
        %v2817 = vunpack.c.l.b16 %v1479
        %v2818 = vunpack.c.h.b16 %v1479
        %v2819 = vunpack.c.l.b16 %v1480
        %v2820 = vunpack.c.h.b16 %v1480
        %v2821 = vunpack.c.l.b16 %v1481
        %v2822 = vunpack.c.h.b16 %v1481
        %v2823 = vunpack.c.l.b16 %v1482
        %v2824 = vunpack.c.h.b16 %v1482
        %v2825 = vunpack.c.l.b16 %v1483
        %v2826 = vunpack.c.l.b16 %v1484
        %v2827 = vunpack.c.h.b16 %v1484
        %v2828 = vunpack.c.l.b16 %v1485
        %v2829 = vunpack.c.h.b16 %v1485
        %v2830 = vunpack.c.l.b16 %v1486
        %v2831 = vunpack.c.h.b16 %v1486
        %v2832 = vunpack.c.l.b16 %v1487
        %v2833 = vunpack.c.h.b16 %v1487
        %v2834 = vunpack.c.l.b16 %v1488
        %v2835 = vunpack.c.h.b16 %v1488
        %v2836 = vunpack.c.l.b16 %v1489
        %v2837 = vunpack.c.h.b16 %v1489
        %v2838 = vunpack.c.l.b16 %v1490
        %v2839 = vunpack.c.h.b16 %v1490
        %v2840 = vunpack.c.l.b16 %v1491
        %v2841 = vunpack.c.l.b16 %v1492
        %v2842 = vunpack.c.h.b16 %v1492
        %v2843 = vunpack.c.l.b16 %v1493
        %v2844 = vunpack.c.h.b16 %v1493
        %v2845 = vunpack.c.l.b16 %v1494
        %v2846 = vunpack.c.h.b16 %v1494
        %v2847 = vunpack.c.l.b16 %v1495
        %v2848 = vunpack.c.h.b16 %v1495
        %v2849 = vunpack.c.l.b16 %v1496
        %v2850 = vunpack.c.h.b16 %v1496
        %v2851 = vunpack.c.l.b16 %v1497
        %v2852 = vunpack.c.h.b16 %v1497
        %v2853 = vunpack.c.l.b16 %v1498
        %v2854 = vunpack.c.h.b16 %v1498
        %v2855 = vunpack.c.l.b16 %v1499
        %v2856 = vunpack.c.l.b16 %v1500
        %v2857 = vunpack.c.h.b16 %v1500
        %v2858 = vunpack.c.l.b16 %v1501
        %v2859 = vunpack.c.h.b16 %v1501
        %v2860 = vunpack.c.l.b16 %v1502
        %v2861 = vunpack.c.h.b16 %v1502
        %v2862 = vunpack.c.l.b16 %v1503
        %v2863 = vunpack.c.h.b16 %v1503
        %v2864 = vunpack.c.l.b16 %v1504
        %v2865 = vunpack.c.h.b16 %v1504
        %v2866 = vunpack.c.l.b16 %v1505
        %v2867 = vunpack.c.h.b16 %v1505
        %v2868 = vunpack.c.l.b16 %v1506
        %v2869 = vunpack.c.h.b16 %v1506
        %v2870 = vunpack.c.l.b16 %v1507
        %v2871 = vunpack.c.l.b16 %v1508
        %v2872 = vunpack.c.h.b16 %v1508
        %v2873 = vunpack.c.l.b16 %v1509
        %v2874 = vunpack.c.h.b16 %v1509
        %v2875 = vunpack.c.l.b16 %v1510
        %v2876 = vunpack.c.h.b16 %v1510
        %v2877 = vunpack.c.l.b16 %v1511
        %v2878 = vunpack.c.h.b16 %v1511
        %v2879 = vunpack.c.l.b16 %v1512
        %v2880 = vunpack.c.h.b16 %v1512
        %v2881 = vunpack.c.l.b16 %v1513
        %v2882 = vunpack.c.h.b16 %v1513
        %v2883 = vunpack.c.l.b16 %v1514
        %v2884 = vunpack.c.h.b16 %v1514
        %v2885 = vunpack.c.l.b16 %v1515
        %v2886 = vunpack.c.l.b16 %v1516
        %v2887 = vunpack.c.h.b16 %v1516
        %v2888 = vunpack.c.l.b16 %v1517
        %v2889 = vunpack.c.h.b16 %v1517
        %v2890 = vunpack.c.l.b16 %v1518
        %v2891 = vunpack.c.h.b16 %v1518
        %v2892 = vunpack.c.l.b16 %v1519
        %v2893 = vunpack.c.h.b16 %v1519
        %v2894 = vunpack.c.l.b16 %v1520
        %v2895 = vunpack.c.h.b16 %v1520
        %v2896 = vunpack.c.l.b16 %v1521
        %v2897 = vunpack.c.h.b16 %v1521
        %v2898 = vunpack.c.l.b16 %v1522
        %v2899 = vunpack.c.h.b16 %v1522
        %v2900 = vunpack.c.l.b16 %v1523
        %v2901 = vunpack.c.l.b16 %v1524
        %v2902 = vunpack.c.h.b16 %v1524
        %v2903 = vunpack.c.l.b16 %v1525
        %v2904 = vunpack.c.h.b16 %v1525
        %v2905 = vunpack.c.l.b16 %v1526
        %v2906 = vunpack.c.h.b16 %v1526
        %v2907 = vunpack.c.l.b16 %v1527
        %v2908 = vunpack.c.h.b16 %v1527
        %v2909 = vunpack.c.l.b16 %v1528
        %v2910 = vunpack.c.h.b16 %v1528
        %v2911 = vunpack.c.l.b16 %v1529
        %v2912 = vunpack.c.h.b16 %v1529
        %v2913 = vunpack.c.l.b16 %v1530
        %v2914 = vunpack.c.h.b16 %v1530
        %v2915 = vunpack.c.l.b16 %v1531
        %v2916 = vunpack.c.l.b16 %v1532
        %v2917 = vunpack.c.h.b16 %v1532
        %v2918 = vunpack.c.l.b16 %v1533
        %v2919 = vunpack.c.h.b16 %v1533
        %v2920 = vunpack.c.l.b16 %v1534
        %v2921 = vunpack.c.h.b16 %v1534
        %v2922 = vunpack.c.l.b16 %v1535
        %v2923 = vunpack.c.h.b16 %v1535
        %v2924 = vunpack.c.l.b16 %v1536
        %v2925 = vunpack.c.h.b16 %v1536
        %v2926 = vunpack.c.l.b16 %v1537
        %v2927 = vunpack.c.h.b16 %v1537
        %v2928 = vunpack.c.l.b16 %v1538
        %v2929 = vunpack.c.h.b16 %v1538
        %v2930 = vunpack.c.l.b16 %v1539
        %v2931 = vunpack.c.l.b16 %v1540
        %v2932 = vunpack.c.h.b16 %v1540
        %v2933 = vunpack.c.l.b16 %v1541
        %v2934 = vunpack.c.h.b16 %v1541
        %v2935 = vunpack.c.l.b16 %v1542
        %v2936 = vunpack.c.h.b16 %v1542
        %v2937 = vunpack.c.l.b16 %v1543
        %v2938 = vunpack.c.h.b16 %v1543
        %v2939 = vunpack.c.l.b16 %v1544
        %v2940 = vunpack.c.h.b16 %v1544
        %v2941 = vunpack.c.l.b16 %v1545
        %v2942 = vunpack.c.h.b16 %v1545
        %v2943 = vunpack.c.l.b16 %v1546
        %v2944 = vunpack.c.h.b16 %v1546
        %v2945 = vunpack.c.l.b16 %v1547
        %v2946 = vunpack.c.l.b16 %v1548
        %v2947 = vunpack.c.h.b16 %v1548
        %v2948 = vunpack.c.l.b16 %v1549
        %v2949 = vunpack.c.h.b16 %v1549
        %v2950 = vunpack.c.l.b16 %v1550
        %v2951 = vunpack.c.h.b16 %v1550
        %v2952 = vunpack.c.l.b16 %v1551
        %v2953 = vunpack.c.h.b16 %v1551
        %v2954 = vunpack.c.l.b16 %v1552
        %v2955 = vunpack.c.h.b16 %v1552
        %v2956 = vunpack.c.l.b16 %v1553
        %v2957 = vunpack.c.h.b16 %v1553
        %v2958 = vunpack.c.l.b16 %v1554
        %v2959 = vunpack.c.h.b16 %v1554
        %v2960 = vunpack.c.l.b16 %v1555
        %v2961 = vunpack.c.l.b16 %v1556
        %v2962 = vunpack.c.h.b16 %v1556
        %v2963 = vunpack.c.l.b16 %v1557
        %v2964 = vunpack.c.h.b16 %v1557
        %v2965 = vunpack.c.l.b16 %v1558
        %v2966 = vunpack.c.h.b16 %v1558
        %v2967 = vunpack.c.l.b16 %v1559
        %v2968 = vunpack.c.h.b16 %v1559
        %v2969 = vunpack.c.l.b16 %v1560
        %v2970 = vunpack.c.h.b16 %v1560
        %v2971 = vunpack.c.l.b16 %v1561
        %v2972 = vunpack.c.h.b16 %v1561
        %v2973 = vunpack.c.l.b16 %v1562
        %v2974 = vunpack.c.h.b16 %v1562
        %v2975 = vunpack.c.l.b16 %v1563
        %v2976 = vunpack.c.l.b16 %v1564
        %v2977 = vunpack.c.h.b16 %v1564
        %v2978 = vunpack.c.l.b16 %v1565
        %v2979 = vunpack.c.h.b16 %v1565
        %v2980 = vunpack.c.l.b16 %v1566
        %v2981 = vunpack.c.h.b16 %v1566
        %v2982 = vunpack.c.l.b16 %v1567
        %v2983 = vunpack.c.h.b16 %v1567
        %v2984 = vunpack.c.l.b16 %v1568
        %v2985 = vunpack.c.h.b16 %v1568
        %v2986 = vunpack.c.l.b16 %v1569
        %v2987 = vunpack.c.h.b16 %v1569
        %v2988 = vunpack.c.l.b16 %v1570
        %v2989 = vunpack.c.h.b16 %v1570
        %v2990 = vunpack.c.l.b16 %v1571
        %v2991 = vunpack.c.l.b16 %v1572
        %v2992 = vunpack.c.h.b16 %v1572
        %v2993 = vunpack.c.l.b16 %v1573
        %v2994 = vunpack.c.h.b16 %v1573
        %v2995 = vunpack.c.l.b16 %v1574
        %v2996 = vunpack.c.h.b16 %v1574
        %v2997 = vunpack.c.l.b16 %v1575
        %v2998 = vunpack.c.h.b16 %v1575
        %v2999 = vunpack.c.l.b16 %v1576
        %v3000 = vunpack.c.h.b16 %v1576
        %v3001 = vunpack.c.l.b16 %v1577
        %v3002 = vunpack.c.h.b16 %v1577
        %v3003 = vunpack.c.l.b16 %v1578
        %v3004 = vunpack.c.h.b16 %v1578
        %v3005 = vunpack.c.l.b16 %v1579
        %v3006 = vunpack.c.l.b16 %v1580
        %v3007 = vunpack.c.h.b16 %v1580
        %v3008 = vunpack.c.l.b16 %v1581
        %v3009 = vunpack.c.h.b16 %v1581
        %v3010 = vunpack.c.l.b16 %v1582
        %v3011 = vunpack.c.h.b16 %v1582
        %v3012 = vunpack.c.l.b16 %v1583
        %v3013 = vunpack.c.h.b16 %v1583
        %v3014 = vunpack.c.l.b16 %v1584
        %v3015 = vunpack.c.h.b16 %v1584
        %v3016 = vunpack.c.l.b16 %v1585
        %v3017 = vunpack.c.h.b16 %v1585
        %v3018 = vunpack.c.l.b16 %v1586
        %v3019 = vunpack.c.h.b16 %v1586
        %v3020 = vunpack.c.l.b16 %v1587
        %v3021 = vunpack.c.l.b16 %v1588
        %v3022 = vunpack.c.h.b16 %v1588
        %v3023 = vunpack.c.l.b16 %v1589
        %v3024 = vunpack.c.h.b16 %v1589
        %v3025 = vunpack.c.l.b16 %v1590
        %v3026 = vunpack.c.h.b16 %v1590
        %v3027 = vunpack.c.l.b16 %v1591
        %v3028 = vunpack.c.h.b16 %v1591
        %v3029 = vunpack.c.l.b16 %v1592
        %v3030 = vunpack.c.h.b16 %v1592
        %v3031 = vunpack.c.l.b16 %v1593
        %v3032 = vunpack.c.h.b16 %v1593
        %v3033 = vunpack.c.l.b16 %v1594
        %v3034 = vunpack.c.h.b16 %v1594
        %v3035 = vunpack.c.l.b16 %v1595
        %v3036 = vunpack.c.l.b16 %v1596
        %v3037 = vunpack.c.h.b16 %v1596
        %v3038 = vunpack.c.l.b16 %v1597
        %v3039 = vunpack.c.h.b16 %v1597
        %v3040 = vunpack.c.l.b16 %v1598
        %v3041 = vunpack.c.h.b16 %v1598
        %v3042 = vunpack.c.l.b16 %v1599
        %v3043 = vunpack.c.h.b16 %v1599
        %v3044 = vunpack.c.l.b16 %v1600
        %v3045 = vunpack.c.h.b16 %v1600
        %v3046 = vunpack.c.l.b16 %v1601
        %v3047 = vunpack.c.h.b16 %v1601
        %v3048 = vunpack.c.l.b16 %v1602
        %v3049 = vunpack.c.h.b16 %v1602
        %v3050 = vunpack.c.l.b16 %v1603
        %v3051 = vunpack.c.l.b16 %v1604
        %v3052 = vunpack.c.h.b16 %v1604
        %v3053 = vunpack.c.l.b16 %v1605
        %v3054 = vunpack.c.h.b16 %v1605
        %v3055 = vunpack.c.l.b16 %v1606
        %v3056 = vunpack.c.h.b16 %v1606
        %v3057 = vunpack.c.l.b16 %v1607
        %v3058 = vunpack.c.h.b16 %v1607
        %v3059 = vunpack.c.l.b16 %v1608
        %v3060 = vunpack.c.h.b16 %v1608
        %v3061 = vunpack.c.l.b16 %v1609
        %v3062 = vunpack.c.h.b16 %v1609
        %v3063 = vunpack.c.l.b16 %v1610
        %v3064 = vunpack.c.h.b16 %v1610
        %v3065 = vunpack.c.l.b16 %v1611
        %v3066 = vunpack.c.l.b16 %v1612
        %v3067 = vunpack.c.h.b16 %v1612
        %v3068 = vunpack.c.l.b16 %v1613
        %v3069 = vunpack.c.h.b16 %v1613
        %v3070 = vunpack.c.l.b16 %v1614
        %v3071 = vunpack.c.h.b16 %v1614
        %v3072 = vunpack.c.l.b16 %v1615
        %v3073 = vunpack.c.h.b16 %v1615
        %v3074 = vunpack.c.l.b16 %v1616
        %v3075 = vunpack.c.h.b16 %v1616
        %v3076 = vunpack.c.l.b16 %v1617
        %v3077 = vunpack.c.h.b16 %v1617
        %v3078 = vunpack.c.l.b16 %v1618
        %v3079 = vunpack.c.h.b16 %v1618
        %v3080 = vunpack.c.l.b16 %v1619
        %v3081 = vunpack.c.l.b16 %v1620
        %v3082 = vunpack.c.h.b16 %v1620
        %v3083 = vunpack.c.l.b16 %v1621
        %v3084 = vunpack.c.h.b16 %v1621
        %v3085 = vunpack.c.l.b16 %v1622
        %v3086 = vunpack.c.h.b16 %v1622
        %v3087 = vunpack.c.l.b16 %v1623
        %v3088 = vunpack.c.h.b16 %v1623
        %v3089 = vunpack.c.l.b16 %v1624
        %v3090 = vunpack.c.h.b16 %v1624
        %v3091 = vunpack.c.l.b16 %v1625
        %v3092 = vunpack.c.h.b16 %v1625
        %v3093 = vunpack.c.l.b16 %v1626
        %v3094 = vunpack.c.h.b16 %v1626
        %v3095 = vunpack.c.l.b16 %v1627
        %v3096 = vunpack.c.l.b16 %v1628
        %v3097 = vunpack.c.h.b16 %v1628
        %v3098 = vunpack.c.l.b16 %v1629
        %v3099 = vunpack.c.h.b16 %v1629
        %v3100 = vunpack.c.l.b16 %v1630
        %v3101 = vunpack.c.h.b16 %v1630
        %v3102 = vunpack.c.l.b16 %v1631
        %v3103 = vunpack.c.h.b16 %v1631
        %v3104 = vunpack.c.l.b16 %v1632
        %v3105 = vunpack.c.h.b16 %v1632
        %v3106 = vunpack.c.l.b16 %v1633
        %v3107 = vunpack.c.h.b16 %v1633
        %v3108 = vunpack.c.l.b16 %v1634
        %v3109 = vunpack.c.h.b16 %v1634
        %v3110 = vunpack.c.l.b16 %v1635
        %v3111 = vunpack.c.l.b16 %v1636
        %v3112 = vunpack.c.h.b16 %v1636
        %v3113 = vunpack.c.l.b16 %v1637
        %v3114 = vunpack.c.h.b16 %v1637
        %v3115 = vunpack.c.l.b16 %v1638
        %v3116 = vunpack.c.h.b16 %v1638
        %v3117 = vunpack.c.l.b16 %v1639
        %v3118 = vunpack.c.h.b16 %v1639
        %v3119 = vunpack.c.l.b16 %v1640
        %v3120 = vunpack.c.h.b16 %v1640
        %v3121 = vunpack.c.l.b16 %v1641
        %v3122 = vunpack.c.h.b16 %v1641
        %v3123 = vunpack.c.l.b16 %v1642
        %v3124 = vunpack.c.h.b16 %v1642
        %v3125 = vunpack.c.l.b16 %v1643
        %v3126 = vunpack.c.l.b16 %v1644
        %v3127 = vunpack.c.h.b16 %v1644
        %v3128 = vunpack.c.l.b16 %v1645
        %v3129 = vunpack.c.h.b16 %v1645
        %v3130 = vunpack.c.l.b16 %v1646
        %v3131 = vunpack.c.h.b16 %v1646
        %v3132 = vunpack.c.l.b16 %v1647
        %v3133 = vunpack.c.h.b16 %v1647
        %v3134 = vunpack.c.l.b16 %v1648
        %v3135 = vunpack.c.h.b16 %v1648
        %v3136 = vunpack.c.l.b16 %v1649
        %v3137 = vunpack.c.h.b16 %v1649
        %v3138 = vunpack.c.l.b16 %v1650
        %v3139 = vunpack.c.h.b16 %v1650
        %v3140 = vunpack.c.l.b16 %v1651
        %v3141 = vunpack.c.l.b16 %v1652
        %v3142 = vunpack.c.h.b16 %v1652
        %v3143 = vunpack.c.l.b16 %v1653
        %v3144 = vunpack.c.h.b16 %v1653
        %v3145 = vunpack.c.l.b16 %v1654
        %v3146 = vunpack.c.h.b16 %v1654
        %v3147 = vunpack.c.l.b16 %v1655
        %v3148 = vunpack.c.h.b16 %v1655
        %v3149 = vunpack.c.l.b16 %v1656
        %v3150 = vunpack.c.h.b16 %v1656
        %v3151 = vunpack.c.l.b16 %v1657
        %v3152 = vunpack.c.h.b16 %v1657
        %v3153 = vunpack.c.l.b16 %v1658
        %v3154 = vunpack.c.h.b16 %v1658
        %v3155 = vunpack.c.l.b16 %v1659
        %v3156 = vunpack.c.l.b16 %v1660
        %v3157 = vunpack.c.h.b16 %v1660
        %v3158 = vunpack.c.l.b16 %v1661
        %v3159 = vunpack.c.h.b16 %v1661
        %v3160 = vunpack.c.l.b16 %v1662
        %v3161 = vunpack.c.h.b16 %v1662
        %v3162 = vunpack.c.l.b16 %v1663
        %v3163 = vunpack.c.h.b16 %v1663
        %v3164 = vunpack.c.l.b16 %v1664
        %v3165 = vunpack.c.h.b16 %v1664
        %v3166 = vunpack.c.l.b16 %v1665
        %v3167 = vunpack.c.h.b16 %v1665
        %v3168 = vunpack.c.l.b16 %v1666
        %v3169 = vunpack.c.h.b16 %v1666
        %v3170 = vunpack.c.l.b16 %v1667
        %v3171 = vunpack.c.l.b16 %v1668
        %v3172 = vunpack.c.h.b16 %v1668
        %v3173 = vunpack.c.l.b16 %v1669
        %v3174 = vunpack.c.h.b16 %v1669
        %v3175 = vunpack.c.l.b16 %v1670
        %v3176 = vunpack.c.h.b16 %v1670
        %v3177 = vunpack.c.l.b16 %v1671
        %v3178 = vunpack.c.h.b16 %v1671
        %v3179 = vunpack.c.l.b16 %v1672
        %v3180 = vunpack.c.h.b16 %v1672
        %v3181 = vunpack.c.l.b16 %v1673
        %v3182 = vunpack.c.h.b16 %v1673
        %v3183 = vunpack.c.l.b16 %v1674
        %v3184 = vunpack.c.h.b16 %v1674
        %v3185 = vunpack.c.l.b16 %v1675
        %v3186 = vunpack.c.l.b16 %v1676
        %v3187 = vunpack.c.h.b16 %v1676
        %v3188 = vunpack.c.l.b16 %v1677
        %v3189 = vunpack.c.h.b16 %v1677
        %v3190 = vunpack.c.l.b16 %v1678
        %v3191 = vunpack.c.h.b16 %v1678
        %v3192 = vunpack.c.l.b16 %v1679
        %v3193 = vunpack.c.h.b16 %v1679
        %v3194 = vunpack.c.l.b16 %v1680
        %v3195 = vunpack.c.h.b16 %v1680
        %v3196 = vunpack.c.l.b16 %v1681
        %v3197 = vunpack.c.h.b16 %v1681
        %v3198 = vunpack.c.l.b16 %v1682
        %v3199 = vunpack.c.h.b16 %v1682
        %v3200 = vunpack.c.l.b16 %v1683
        %v3201 = vunpack.c.l.b16 %v1684
        %v3202 = vunpack.c.h.b16 %v1684
        %v3203 = vunpack.c.l.b16 %v1685
        %v3204 = vunpack.c.h.b16 %v1685
        %v3205 = vunpack.c.l.b16 %v1686
        %v3206 = vunpack.c.h.b16 %v1686
        %v3207 = vunpack.c.l.b16 %v1687
        %v3208 = vunpack.c.h.b16 %v1687
        %v3209 = vunpack.c.l.b16 %v1688
        %v3210 = vunpack.c.h.b16 %v1688
        %v3211 = vunpack.c.l.b16 %v1689
        %v3212 = vunpack.c.h.b16 %v1689
        %v3213 = vunpack.c.l.b16 %v1690
        %v3214 = vunpack.c.h.b16 %v1690
        %v3215 = vunpack.c.l.b16 %v1691
        %v3216 = vunpack.c.l.b16 %v1692
        %v3217 = vunpack.c.h.b16 %v1692
        %v3218 = vunpack.c.l.b16 %v1693
        %v3219 = vunpack.c.h.b16 %v1693
        %v3220 = vunpack.c.l.b16 %v1694
        %v3221 = vunpack.c.h.b16 %v1694
        %v3222 = vunpack.c.l.b16 %v1695
        %v3223 = vunpack.c.h.b16 %v1695
        %v3224 = vunpack.c.l.b16 %v1696
        %v3225 = vunpack.c.h.b16 %v1696
        %v3226 = vunpack.c.l.b16 %v1697
        %v3227 = vunpack.c.h.b16 %v1697
        %v3228 = vunpack.c.l.b16 %v1698
        %v3229 = vunpack.c.h.b16 %v1698
        %v3230 = vunpack.c.l.b16 %v1699
        %v3231 = vunpack.c.l.b16 %v1700
        %v3232 = vunpack.c.h.b16 %v1700
        %v3233 = vunpack.c.l.b16 %v1701
        %v3234 = vunpack.c.h.b16 %v1701
        %v3235 = vunpack.c.l.b16 %v1702
        %v3236 = vunpack.c.h.b16 %v1702
        %v3237 = vunpack.c.l.b16 %v1703
        %v3238 = vunpack.c.h.b16 %v1703
        %v3239 = vunpack.c.l.b16 %v1704
        %v3240 = vunpack.c.h.b16 %v1704
        %v3241 = vunpack.c.l.b16 %v1705
        %v3242 = vunpack.c.h.b16 %v1705
        %v3243 = vunpack.c.l.b16 %v1706
        %v3244 = vunpack.c.h.b16 %v1706
        %v3245 = vunpack.c.l.b16 %v1707
        %v3246 = vunpack.c.l.b16 %v1708
        %v3247 = vunpack.c.h.b16 %v1708
        %v3248 = vunpack.c.l.b16 %v1709
        %v3249 = vunpack.c.h.b16 %v1709
        %v3250 = vunpack.c.l.b16 %v1710
        %v3251 = vunpack.c.h.b16 %v1710
        %v3252 = vunpack.c.l.b16 %v1711
        %v3253 = vunpack.c.h.b16 %v1711
        %v3254 = vunpack.c.l.b16 %v1712
        %v3255 = vunpack.c.h.b16 %v1712
        %v3256 = vunpack.c.l.b16 %v1713
        %v3257 = vunpack.c.h.b16 %v1713
        %v3258 = vunpack.c.l.b16 %v1714
        %v3259 = vunpack.c.h.b16 %v1714
        %v3260 = vunpack.c.l.b16 %v1715
        %v3261 = vunpack.c.l.b16 %v1716
        %v3262 = vunpack.c.h.b16 %v1716
        %v3263 = vunpack.c.l.b16 %v1717
        %v3264 = vunpack.c.h.b16 %v1717
        %v3265 = vunpack.c.l.b16 %v1718
        %v3266 = vunpack.c.h.b16 %v1718
        %v3267 = vunpack.c.l.b16 %v1719
        %v3268 = vunpack.c.h.b16 %v1719
        %v3269 = vunpack.c.l.b16 %v1720
        %v3270 = vunpack.c.h.b16 %v1720
        %v3271 = vunpack.c.l.b16 %v1721
        %v3272 = vunpack.c.h.b16 %v1721
        %v3273 = vunpack.c.l.b16 %v1722
        %v3274 = vunpack.c.h.b16 %v1722
        %v3275 = vunpack.c.l.b16 %v1723
        %v3276 = vunpack.c.l.b16 %v1724
        %v3277 = vunpack.c.h.b16 %v1724
        %v3278 = vunpack.c.l.b16 %v1725
        %v3279 = vunpack.c.h.b16 %v1725
        %v3280 = vunpack.c.l.b16 %v1726
        %v3281 = vunpack.c.h.b16 %v1726
        %v3282 = vunpack.c.l.b16 %v1727
        %v3283 = vunpack.c.h.b16 %v1727
        %v3284 = vunpack.c.l.b16 %v1728
        %v3285 = vunpack.c.h.b16 %v1728
        %v3286 = vunpack.c.l.b16 %v1729
        %v3287 = vunpack.c.h.b16 %v1729
        %v3288 = vunpack.c.l.b16 %v1730
        %v3289 = vunpack.c.h.b16 %v1730
        %v3290 = vunpack.c.l.b16 %v1731
        %v3291 = vunpack.c.l.b16 %v1732
        %v3292 = vunpack.c.h.b16 %v1732
        %v3293 = vunpack.c.l.b16 %v1733
        %v3294 = vunpack.c.h.b16 %v1733
        %v3295 = vunpack.c.l.b16 %v1734
        %v3296 = vunpack.c.h.b16 %v1734
        %v3297 = vunpack.c.l.b16 %v1735
        %v3298 = vunpack.c.h.b16 %v1735
        %v3299 = vunpack.c.l.b16 %v1736
        %v3300 = vunpack.c.h.b16 %v1736
        %v3301 = vunpack.c.l.b16 %v1737
        %v3302 = vunpack.c.h.b16 %v1737
        %v3303 = vunpack.c.l.b16 %v1738
        %v3304 = vunpack.c.h.b16 %v1738
        %v3305 = vunpack.c.l.b16 %v1739
        %v3306 = vunpack.c.l.b16 %v1740
        %v3307 = vunpack.c.h.b16 %v1740
        %v3308 = vunpack.c.l.b16 %v1741
        %v3309 = vunpack.c.h.b16 %v1741
        %v3310 = vunpack.c.l.b16 %v1742
        %v3311 = vunpack.c.h.b16 %v1742
        %v3312 = vunpack.c.l.b16 %v1743
        %v3313 = vunpack.c.h.b16 %v1743
        %v3314 = vunpack.c.l.b16 %v1744
        %v3315 = vunpack.c.h.b16 %v1744
        %v3316 = vunpack.c.l.b16 %v1745
        %v3317 = vunpack.c.h.b16 %v1745
        %v3318 = vunpack.c.l.b16 %v1746
        %v3319 = vunpack.c.h.b16 %v1746
        %v3320 = vunpack.c.l.b16 %v1747
        %v3321 = vunpack.c.l.b16 %v1748
        %v3322 = vunpack.c.h.b16 %v1748
        %v3323 = vunpack.c.l.b16 %v1749
        %v3324 = vunpack.c.h.b16 %v1749
        %v3325 = vunpack.c.l.b16 %v1750
        %v3326 = vunpack.c.h.b16 %v1750
        %v3327 = vunpack.c.l.b16 %v1751
        %v3328 = vunpack.c.h.b16 %v1751
        %v3329 = vunpack.c.l.b16 %v1752
        %v3330 = vunpack.c.h.b16 %v1752
        %v3331 = vunpack.c.l.b16 %v1753
        %v3332 = vunpack.c.h.b16 %v1753
        %v3333 = vunpack.c.l.b16 %v1754
        %v3334 = vunpack.c.h.b16 %v1754
        %v3335 = vunpack.c.l.b16 %v1755
        %v3336 = vpack.c.b16 %v2391, %v2376
        %v3337 = vpack.c.b16 %v2392, %v2377
        %v3338 = vpack.c.b16 %v2393, %v2378
        %v3339 = vpack.c.b16 %v2394, %v2379
        %v3340 = vpack.c.b16 %v2395, %v2380
        %v3341 = vpack.c.b16 %v2396, %v2381
        %v3342 = vpack.c.b16 %v2397, %v2382
        %v3343 = vpack.c.b16 %v2398, %v2383
        %v3344 = vpack.c.b16 %v2399, %v2384
        %v3345 = vpack.c.b16 %v2400, %v2385
        %v3346 = vpack.c.b16 %v2401, %v2386
        %v3347 = vpack.c.b16 %v2402, %v2387
        %v3348 = vpack.c.b16 %v2403, %v2388
        %v3349 = vpack.c.b16 %v2404, %v2389
        %v3350 = vpack.c.b16 %v2405, %v2390
        %v3351 = vpack.c.b16 %v2421, %v2406
        %v3352 = vpack.c.b16 %v2422, %v2407
        %v3353 = vpack.c.b16 %v2423, %v2408
        %v3354 = vpack.c.b16 %v2424, %v2409
        %v3355 = vpack.c.b16 %v2425, %v2410
        %v3356 = vpack.c.b16 %v2426, %v2411
        %v3357 = vpack.c.b16 %v2427, %v2412
        %v3358 = vpack.c.b16 %v2428, %v2413
        %v3359 = vpack.c.b16 %v2429, %v2414
        %v3360 = vpack.c.b16 %v2430, %v2415
        %v3361 = vpack.c.b16 %v2431, %v2416
        %v3362 = vpack.c.b16 %v2432, %v2417
        %v3363 = vpack.c.b16 %v2433, %v2418
        %v3364 = vpack.c.b16 %v2434, %v2419
        %v3365 = vpack.c.b16 %v2435, %v2420
        %v3366 = vpack.c.b16 %v2451, %v2436
        %v3367 = vpack.c.b16 %v2452, %v2437
        %v3368 = vpack.c.b16 %v2453, %v2438
        %v3369 = vpack.c.b16 %v2454, %v2439
        %v3370 = vpack.c.b16 %v2455, %v2440
        %v3371 = vpack.c.b16 %v2456, %v2441
        %v3372 = vpack.c.b16 %v2457, %v2442
        %v3373 = vpack.c.b16 %v2458, %v2443
        %v3374 = vpack.c.b16 %v2459, %v2444
        %v3375 = vpack.c.b16 %v2460, %v2445
        %v3376 = vpack.c.b16 %v2461, %v2446
        %v3377 = vpack.c.b16 %v2462, %v2447
        %v3378 = vpack.c.b16 %v2463, %v2448
        %v3379 = vpack.c.b16 %v2464, %v2449
        %v3380 = vpack.c.b16 %v2465, %v2450
        %v3381 = vpack.c.b16 %v2481, %v2466
        %v3382 = vpack.c.b16 %v2482, %v2467
        %v3383 = vpack.c.b16 %v2483, %v2468
        %v3384 = vpack.c.b16 %v2484, %v2469
        %v3385 = vpack.c.b16 %v2485, %v2470
        %v3386 = vpack.c.b16 %v2486, %v2471
        %v3387 = vpack.c.b16 %v2487, %v2472
        %v3388 = vpack.c.b16 %v2488, %v2473
        %v3389 = vpack.c.b16 %v2489, %v2474
        %v3390 = vpack.c.b16 %v2490, %v2475
        %v3391 = vpack.c.b16 %v2491, %v2476
        %v3392 = vpack.c.b16 %v2492, %v2477
        %v3393 = vpack.c.b16 %v2493, %v2478
        %v3394 = vpack.c.b16 %v2494, %v2479
        %v3395 = vpack.c.b16 %v2495, %v2480
        %v3396 = vpack.c.b16 %v2511, %v2496
        %v3397 = vpack.c.b16 %v2512, %v2497
        %v3398 = vpack.c.b16 %v2513, %v2498
        %v3399 = vpack.c.b16 %v2514, %v2499
        %v3400 = vpack.c.b16 %v2515, %v2500
        %v3401 = vpack.c.b16 %v2516, %v2501
        %v3402 = vpack.c.b16 %v2517, %v2502
        %v3403 = vpack.c.b16 %v2518, %v2503
        %v3404 = vpack.c.b16 %v2519, %v2504
        %v3405 = vpack.c.b16 %v2520, %v2505
        %v3406 = vpack.c.b16 %v2521, %v2506
        %v3407 = vpack.c.b16 %v2522, %v2507
        %v3408 = vpack.c.b16 %v2523, %v2508
        %v3409 = vpack.c.b16 %v2524, %v2509
        %v3410 = vpack.c.b16 %v2525, %v2510
        %v3411 = vpack.c.b16 %v2541, %v2526
        %v3412 = vpack.c.b16 %v2542, %v2527
        %v3413 = vpack.c.b16 %v2543, %v2528
        %v3414 = vpack.c.b16 %v2544, %v2529
        %v3415 = vpack.c.b16 %v2545, %v2530
        %v3416 = vpack.c.b16 %v2546, %v2531
        %v3417 = vpack.c.b16 %v2547, %v2532
        %v3418 = vpack.c.b16 %v2548, %v2533
        %v3419 = vpack.c.b16 %v2549, %v2534
        %v3420 = vpack.c.b16 %v2550, %v2535
        %v3421 = vpack.c.b16 %v2551, %v2536
        %v3422 = vpack.c.b16 %v2552, %v2537
        %v3423 = vpack.c.b16 %v2553, %v2538
        %v3424 = vpack.c.b16 %v2554, %v2539
        %v3425 = vpack.c.b16 %v2555, %v2540
        %v3426 = vpack.c.b16 %v2571, %v2556
        %v3427 = vpack.c.b16 %v2572, %v2557
        %v3428 = vpack.c.b16 %v2573, %v2558
        %v3429 = vpack.c.b16 %v2574, %v2559
        %v3430 = vpack.c.b16 %v2575, %v2560
        %v3431 = vpack.c.b16 %v2576, %v2561
        %v3432 = vpack.c.b16 %v2577, %v2562
        %v3433 = vpack.c.b16 %v2578, %v2563
        %v3434 = vpack.c.b16 %v2579, %v2564
        %v3435 = vpack.c.b16 %v2580, %v2565
        %v3436 = vpack.c.b16 %v2581, %v2566
        %v3437 = vpack.c.b16 %v2582, %v2567
        %v3438 = vpack.c.b16 %v2583, %v2568
        %v3439 = vpack.c.b16 %v2584, %v2569
        %v3440 = vpack.c.b16 %v2585, %v2570
        %v3441 = vpack.c.b16 %v2601, %v2586
        %v3442 = vpack.c.b16 %v2602, %v2587
        %v3443 = vpack.c.b16 %v2603, %v2588
        %v3444 = vpack.c.b16 %v2604, %v2589
        %v3445 = vpack.c.b16 %v2605, %v2590
        %v3446 = vpack.c.b16 %v2606, %v2591
        %v3447 = vpack.c.b16 %v2607, %v2592
        %v3448 = vpack.c.b16 %v2608, %v2593
        %v3449 = vpack.c.b16 %v2609, %v2594
        %v3450 = vpack.c.b16 %v2610, %v2595
        %v3451 = vpack.c.b16 %v2611, %v2596
        %v3452 = vpack.c.b16 %v2612, %v2597
        %v3453 = vpack.c.b16 %v2613, %v2598
        %v3454 = vpack.c.b16 %v2614, %v2599
        %v3455 = vpack.c.b16 %v2615, %v2600
        %v3456 = vpack.c.b16 %v2631, %v2616
        %v3457 = vpack.c.b16 %v2632, %v2617
        %v3458 = vpack.c.b16 %v2633, %v2618
        %v3459 = vpack.c.b16 %v2634, %v2619
        %v3460 = vpack.c.b16 %v2635, %v2620
        %v3461 = vpack.c.b16 %v2636, %v2621
        %v3462 = vpack.c.b16 %v2637, %v2622
        %v3463 = vpack.c.b16 %v2638, %v2623
        %v3464 = vpack.c.b16 %v2639, %v2624
        %v3465 = vpack.c.b16 %v2640, %v2625
        %v3466 = vpack.c.b16 %v2641, %v2626
        %v3467 = vpack.c.b16 %v2642, %v2627
        %v3468 = vpack.c.b16 %v2643, %v2628
        %v3469 = vpack.c.b16 %v2644, %v2629
        %v3470 = vpack.c.b16 %v2645, %v2630
        %v3471 = vpack.c.b16 %v2661, %v2646
        %v3472 = vpack.c.b16 %v2662, %v2647
        %v3473 = vpack.c.b16 %v2663, %v2648
        %v3474 = vpack.c.b16 %v2664, %v2649
        %v3475 = vpack.c.b16 %v2665, %v2650
        %v3476 = vpack.c.b16 %v2666, %v2651
        %v3477 = vpack.c.b16 %v2667, %v2652
        %v3478 = vpack.c.b16 %v2668, %v2653
        %v3479 = vpack.c.b16 %v2669, %v2654
        %v3480 = vpack.c.b16 %v2670, %v2655
        %v3481 = vpack.c.b16 %v2671, %v2656
        %v3482 = vpack.c.b16 %v2672, %v2657
        %v3483 = vpack.c.b16 %v2673, %v2658
        %v3484 = vpack.c.b16 %v2674, %v2659
        %v3485 = vpack.c.b16 %v2675, %v2660
        %v3486 = vpack.c.b16 %v2691, %v2676
        %v3487 = vpack.c.b16 %v2692, %v2677
        %v3488 = vpack.c.b16 %v2693, %v2678
        %v3489 = vpack.c.b16 %v2694, %v2679
        %v3490 = vpack.c.b16 %v2695, %v2680
        %v3491 = vpack.c.b16 %v2696, %v2681
        %v3492 = vpack.c.b16 %v2697, %v2682
        %v3493 = vpack.c.b16 %v2698, %v2683
        %v3494 = vpack.c.b16 %v2699, %v2684
        %v3495 = vpack.c.b16 %v2700, %v2685
        %v3496 = vpack.c.b16 %v2701, %v2686
        %v3497 = vpack.c.b16 %v2702, %v2687
        %v3498 = vpack.c.b16 %v2703, %v2688
        %v3499 = vpack.c.b16 %v2704, %v2689
        %v3500 = vpack.c.b16 %v2705, %v2690
        %v3501 = vpack.c.b16 %v2721, %v2706
        %v3502 = vpack.c.b16 %v2722, %v2707
        %v3503 = vpack.c.b16 %v2723, %v2708
        %v3504 = vpack.c.b16 %v2724, %v2709
        %v3505 = vpack.c.b16 %v2725, %v2710
        %v3506 = vpack.c.b16 %v2726, %v2711
        %v3507 = vpack.c.b16 %v2727, %v2712
        %v3508 = vpack.c.b16 %v2728, %v2713
        %v3509 = vpack.c.b16 %v2729, %v2714
        %v3510 = vpack.c.b16 %v2730, %v2715
        %v3511 = vpack.c.b16 %v2731, %v2716
        %v3512 = vpack.c.b16 %v2732, %v2717
        %v3513 = vpack.c.b16 %v2733, %v2718
        %v3514 = vpack.c.b16 %v2734, %v2719
        %v3515 = vpack.c.b16 %v2735, %v2720
        %v3516 = vpack.c.b16 %v2751, %v2736
        %v3517 = vpack.c.b16 %v2752, %v2737
        %v3518 = vpack.c.b16 %v2753, %v2738
        %v3519 = vpack.c.b16 %v2754, %v2739
        %v3520 = vpack.c.b16 %v2755, %v2740
        %v3521 = vpack.c.b16 %v2756, %v2741
        %v3522 = vpack.c.b16 %v2757, %v2742
        %v3523 = vpack.c.b16 %v2758, %v2743
        %v3524 = vpack.c.b16 %v2759, %v2744
        %v3525 = vpack.c.b16 %v2760, %v2745
        %v3526 = vpack.c.b16 %v2761, %v2746
        %v3527 = vpack.c.b16 %v2762, %v2747
        %v3528 = vpack.c.b16 %v2763, %v2748
        %v3529 = vpack.c.b16 %v2764, %v2749
        %v3530 = vpack.c.b16 %v2765, %v2750
        %v3531 = vpack.c.b16 %v2781, %v2766
        %v3532 = vpack.c.b16 %v2782, %v2767
        %v3533 = vpack.c.b16 %v2783, %v2768
        %v3534 = vpack.c.b16 %v2784, %v2769
        %v3535 = vpack.c.b16 %v2785, %v2770
        %v3536 = vpack.c.b16 %v2786, %v2771
        %v3537 = vpack.c.b16 %v2787, %v2772
        %v3538 = vpack.c.b16 %v2788, %v2773
        %v3539 = vpack.c.b16 %v2789, %v2774
        %v3540 = vpack.c.b16 %v2790, %v2775
        %v3541 = vpack.c.b16 %v2791, %v2776
        %v3542 = vpack.c.b16 %v2792, %v2777
        %v3543 = vpack.c.b16 %v2793, %v2778
        %v3544 = vpack.c.b16 %v2794, %v2779
        %v3545 = vpack.c.b16 %v2795, %v2780
        %v3546 = vpack.c.b16 %v2811, %v2796
        %v3547 = vpack.c.b16 %v2812, %v2797
        %v3548 = vpack.c.b16 %v2813, %v2798
        %v3549 = vpack.c.b16 %v2814, %v2799
        %v3550 = vpack.c.b16 %v2815, %v2800
        %v3551 = vpack.c.b16 %v2816, %v2801
        %v3552 = vpack.c.b16 %v2817, %v2802
        %v3553 = vpack.c.b16 %v2818, %v2803
        %v3554 = vpack.c.b16 %v2819, %v2804
        %v3555 = vpack.c.b16 %v2820, %v2805
        %v3556 = vpack.c.b16 %v2821, %v2806
        %v3557 = vpack.c.b16 %v2822, %v2807
        %v3558 = vpack.c.b16 %v2823, %v2808
        %v3559 = vpack.c.b16 %v2824, %v2809
        %v3560 = vpack.c.b16 %v2825, %v2810
        %v3561 = vpack.c.b16 %v2841, %v2826
        %v3562 = vpack.c.b16 %v2842, %v2827
        %v3563 = vpack.c.b16 %v2843, %v2828
        %v3564 = vpack.c.b16 %v2844, %v2829
        %v3565 = vpack.c.b16 %v2845, %v2830
        %v3566 = vpack.c.b16 %v2846, %v2831
        %v3567 = vpack.c.b16 %v2847, %v2832
        %v3568 = vpack.c.b16 %v2848, %v2833
        %v3569 = vpack.c.b16 %v2849, %v2834
        %v3570 = vpack.c.b16 %v2850, %v2835
        %v3571 = vpack.c.b16 %v2851, %v2836
        %v3572 = vpack.c.b16 %v2852, %v2837
        %v3573 = vpack.c.b16 %v2853, %v2838
        %v3574 = vpack.c.b16 %v2854, %v2839
        %v3575 = vpack.c.b16 %v2855, %v2840
        %v3576 = vpack.c.b16 %v2871, %v2856
        %v3577 = vpack.c.b16 %v2872, %v2857
        %v3578 = vpack.c.b16 %v2873, %v2858
        %v3579 = vpack.c.b16 %v2874, %v2859
        %v3580 = vpack.c.b16 %v2875, %v2860
        %v3581 = vpack.c.b16 %v2876, %v2861
        %v3582 = vpack.c.b16 %v2877, %v2862
        %v3583 = vpack.c.b16 %v2878, %v2863
        %v3584 = vpack.c.b16 %v2879, %v2864
        %v3585 = vpack.c.b16 %v2880, %v2865
        %v3586 = vpack.c.b16 %v2881, %v2866
        %v3587 = vpack.c.b16 %v2882, %v2867
        %v3588 = vpack.c.b16 %v2883, %v2868
        %v3589 = vpack.c.b16 %v2884, %v2869
        %v3590 = vpack.c.b16 %v2885, %v2870
        %v3591 = vpack.c.b16 %v2901, %v2886
        %v3592 = vpack.c.b16 %v2902, %v2887
        %v3593 = vpack.c.b16 %v2903, %v2888
        %v3594 = vpack.c.b16 %v2904, %v2889
        %v3595 = vpack.c.b16 %v2905, %v2890
        %v3596 = vpack.c.b16 %v2906, %v2891
        %v3597 = vpack.c.b16 %v2907, %v2892
        %v3598 = vpack.c.b16 %v2908, %v2893
        %v3599 = vpack.c.b16 %v2909, %v2894
        %v3600 = vpack.c.b16 %v2910, %v2895
        %v3601 = vpack.c.b16 %v2911, %v2896
        %v3602 = vpack.c.b16 %v2912, %v2897
        %v3603 = vpack.c.b16 %v2913, %v2898
        %v3604 = vpack.c.b16 %v2914, %v2899
        %v3605 = vpack.c.b16 %v2915, %v2900
        %v3606 = vpack.c.b16 %v2931, %v2916
        %v3607 = vpack.c.b16 %v2932, %v2917
        %v3608 = vpack.c.b16 %v2933, %v2918
        %v3609 = vpack.c.b16 %v2934, %v2919
        %v3610 = vpack.c.b16 %v2935, %v2920
        %v3611 = vpack.c.b16 %v2936, %v2921
        %v3612 = vpack.c.b16 %v2937, %v2922
        %v3613 = vpack.c.b16 %v2938, %v2923
        %v3614 = vpack.c.b16 %v2939, %v2924
        %v3615 = vpack.c.b16 %v2940, %v2925
        %v3616 = vpack.c.b16 %v2941, %v2926
        %v3617 = vpack.c.b16 %v2942, %v2927
        %v3618 = vpack.c.b16 %v2943, %v2928
        %v3619 = vpack.c.b16 %v2944, %v2929
        %v3620 = vpack.c.b16 %v2945, %v2930
        %v3621 = vpack.c.b16 %v2961, %v2946
        %v3622 = vpack.c.b16 %v2962, %v2947
        %v3623 = vpack.c.b16 %v2963, %v2948
        %v3624 = vpack.c.b16 %v2964, %v2949
        %v3625 = vpack.c.b16 %v2965, %v2950
        %v3626 = vpack.c.b16 %v2966, %v2951
        %v3627 = vpack.c.b16 %v2967, %v2952
        %v3628 = vpack.c.b16 %v2968, %v2953
        %v3629 = vpack.c.b16 %v2969, %v2954
        %v3630 = vpack.c.b16 %v2970, %v2955
        %v3631 = vpack.c.b16 %v2971, %v2956
        %v3632 = vpack.c.b16 %v2972, %v2957
        %v3633 = vpack.c.b16 %v2973, %v2958
        %v3634 = vpack.c.b16 %v2974, %v2959
        %v3635 = vpack.c.b16 %v2975, %v2960
        %v3636 = vpack.c.b16 %v2991, %v2976
        %v3637 = vpack.c.b16 %v2992, %v2977
        %v3638 = vpack.c.b16 %v2993, %v2978
        %v3639 = vpack.c.b16 %v2994, %v2979
        %v3640 = vpack.c.b16 %v2995, %v2980
        %v3641 = vpack.c.b16 %v2996, %v2981
        %v3642 = vpack.c.b16 %v2997, %v2982
        %v3643 = vpack.c.b16 %v2998, %v2983
        %v3644 = vpack.c.b16 %v2999, %v2984
        %v3645 = vpack.c.b16 %v3000, %v2985
        %v3646 = vpack.c.b16 %v3001, %v2986
        %v3647 = vpack.c.b16 %v3002, %v2987
        %v3648 = vpack.c.b16 %v3003, %v2988
        %v3649 = vpack.c.b16 %v3004, %v2989
        %v3650 = vpack.c.b16 %v3005, %v2990
        %v3651 = vpack.c.b16 %v3021, %v3006
        %v3652 = vpack.c.b16 %v3022, %v3007
        %v3653 = vpack.c.b16 %v3023, %v3008
        %v3654 = vpack.c.b16 %v3024, %v3009
        %v3655 = vpack.c.b16 %v3025, %v3010
        %v3656 = vpack.c.b16 %v3026, %v3011
        %v3657 = vpack.c.b16 %v3027, %v3012
        %v3658 = vpack.c.b16 %v3028, %v3013
        %v3659 = vpack.c.b16 %v3029, %v3014
        %v3660 = vpack.c.b16 %v3030, %v3015
        %v3661 = vpack.c.b16 %v3031, %v3016
        %v3662 = vpack.c.b16 %v3032, %v3017
        %v3663 = vpack.c.b16 %v3033, %v3018
        %v3664 = vpack.c.b16 %v3034, %v3019
        %v3665 = vpack.c.b16 %v3035, %v3020
        %v3666 = vpack.c.b16 %v3051, %v3036
        %v3667 = vpack.c.b16 %v3052, %v3037
        %v3668 = vpack.c.b16 %v3053, %v3038
        %v3669 = vpack.c.b16 %v3054, %v3039
        %v3670 = vpack.c.b16 %v3055, %v3040
        %v3671 = vpack.c.b16 %v3056, %v3041
        %v3672 = vpack.c.b16 %v3057, %v3042
        %v3673 = vpack.c.b16 %v3058, %v3043
        %v3674 = vpack.c.b16 %v3059, %v3044
        %v3675 = vpack.c.b16 %v3060, %v3045
        %v3676 = vpack.c.b16 %v3061, %v3046
        %v3677 = vpack.c.b16 %v3062, %v3047
        %v3678 = vpack.c.b16 %v3063, %v3048
        %v3679 = vpack.c.b16 %v3064, %v3049
        %v3680 = vpack.c.b16 %v3065, %v3050
        %v3681 = vpack.c.b16 %v3081, %v3066
        %v3682 = vpack.c.b16 %v3082, %v3067
        %v3683 = vpack.c.b16 %v3083, %v3068
        %v3684 = vpack.c.b16 %v3084, %v3069
        %v3685 = vpack.c.b16 %v3085, %v3070
        %v3686 = vpack.c.b16 %v3086, %v3071
        %v3687 = vpack.c.b16 %v3087, %v3072
        %v3688 = vpack.c.b16 %v3088, %v3073
        %v3689 = vpack.c.b16 %v3089, %v3074
        %v3690 = vpack.c.b16 %v3090, %v3075
        %v3691 = vpack.c.b16 %v3091, %v3076
        %v3692 = vpack.c.b16 %v3092, %v3077
        %v3693 = vpack.c.b16 %v3093, %v3078
        %v3694 = vpack.c.b16 %v3094, %v3079
        %v3695 = vpack.c.b16 %v3095, %v3080
        %v3696 = vpack.c.b16 %v3111, %v3096
        %v3697 = vpack.c.b16 %v3112, %v3097
        %v3698 = vpack.c.b16 %v3113, %v3098
        %v3699 = vpack.c.b16 %v3114, %v3099
        %v3700 = vpack.c.b16 %v3115, %v3100
        %v3701 = vpack.c.b16 %v3116, %v3101
        %v3702 = vpack.c.b16 %v3117, %v3102
        %v3703 = vpack.c.b16 %v3118, %v3103
        %v3704 = vpack.c.b16 %v3119, %v3104
        %v3705 = vpack.c.b16 %v3120, %v3105
        %v3706 = vpack.c.b16 %v3121, %v3106
        %v3707 = vpack.c.b16 %v3122, %v3107
        %v3708 = vpack.c.b16 %v3123, %v3108
        %v3709 = vpack.c.b16 %v3124, %v3109
        %v3710 = vpack.c.b16 %v3125, %v3110
        %v3711 = vpack.c.b16 %v3141, %v3126
        %v3712 = vpack.c.b16 %v3142, %v3127
        %v3713 = vpack.c.b16 %v3143, %v3128
        %v3714 = vpack.c.b16 %v3144, %v3129
        %v3715 = vpack.c.b16 %v3145, %v3130
        %v3716 = vpack.c.b16 %v3146, %v3131
        %v3717 = vpack.c.b16 %v3147, %v3132
        %v3718 = vpack.c.b16 %v3148, %v3133
        %v3719 = vpack.c.b16 %v3149, %v3134
        %v3720 = vpack.c.b16 %v3150, %v3135
        %v3721 = vpack.c.b16 %v3151, %v3136
        %v3722 = vpack.c.b16 %v3152, %v3137
        %v3723 = vpack.c.b16 %v3153, %v3138
        %v3724 = vpack.c.b16 %v3154, %v3139
        %v3725 = vpack.c.b16 %v3155, %v3140
        %v3726 = vpack.c.b16 %v3171, %v3156
        %v3727 = vpack.c.b16 %v3172, %v3157
        %v3728 = vpack.c.b16 %v3173, %v3158
        %v3729 = vpack.c.b16 %v3174, %v3159
        %v3730 = vpack.c.b16 %v3175, %v3160
        %v3731 = vpack.c.b16 %v3176, %v3161
        %v3732 = vpack.c.b16 %v3177, %v3162
        %v3733 = vpack.c.b16 %v3178, %v3163
        %v3734 = vpack.c.b16 %v3179, %v3164
        %v3735 = vpack.c.b16 %v3180, %v3165
        %v3736 = vpack.c.b16 %v3181, %v3166
        %v3737 = vpack.c.b16 %v3182, %v3167
        %v3738 = vpack.c.b16 %v3183, %v3168
        %v3739 = vpack.c.b16 %v3184, %v3169
        %v3740 = vpack.c.b16 %v3185, %v3170
        %v3741 = vpack.c.b16 %v3201, %v3186
        %v3742 = vpack.c.b16 %v3202, %v3187
        %v3743 = vpack.c.b16 %v3203, %v3188
        %v3744 = vpack.c.b16 %v3204, %v3189
        %v3745 = vpack.c.b16 %v3205, %v3190
        %v3746 = vpack.c.b16 %v3206, %v3191
        %v3747 = vpack.c.b16 %v3207, %v3192
        %v3748 = vpack.c.b16 %v3208, %v3193
        %v3749 = vpack.c.b16 %v3209, %v3194
        %v3750 = vpack.c.b16 %v3210, %v3195
        %v3751 = vpack.c.b16 %v3211, %v3196
        %v3752 = vpack.c.b16 %v3212, %v3197
        %v3753 = vpack.c.b16 %v3213, %v3198
        %v3754 = vpack.c.b16 %v3214, %v3199
        %v3755 = vpack.c.b16 %v3215, %v3200
        %v3756 = vpack.c.b16 %v3231, %v3216
        %v3757 = vpack.c.b16 %v3232, %v3217
        %v3758 = vpack.c.b16 %v3233, %v3218
        %v3759 = vpack.c.b16 %v3234, %v3219
        %v3760 = vpack.c.b16 %v3235, %v3220
        %v3761 = vpack.c.b16 %v3236, %v3221
        %v3762 = vpack.c.b16 %v3237, %v3222
        %v3763 = vpack.c.b16 %v3238, %v3223
        %v3764 = vpack.c.b16 %v3239, %v3224
        %v3765 = vpack.c.b16 %v3240, %v3225
        %v3766 = vpack.c.b16 %v3241, %v3226
        %v3767 = vpack.c.b16 %v3242, %v3227
        %v3768 = vpack.c.b16 %v3243, %v3228
        %v3769 = vpack.c.b16 %v3244, %v3229
        %v3770 = vpack.c.b16 %v3245, %v3230
        %v3771 = vpack.c.b16 %v3261, %v3246
        %v3772 = vpack.c.b16 %v3262, %v3247
        %v3773 = vpack.c.b16 %v3263, %v3248
        %v3774 = vpack.c.b16 %v3264, %v3249
        %v3775 = vpack.c.b16 %v3265, %v3250
        %v3776 = vpack.c.b16 %v3266, %v3251
        %v3777 = vpack.c.b16 %v3267, %v3252
        %v3778 = vpack.c.b16 %v3268, %v3253
        %v3779 = vpack.c.b16 %v3269, %v3254
        %v3780 = vpack.c.b16 %v3270, %v3255
        %v3781 = vpack.c.b16 %v3271, %v3256
        %v3782 = vpack.c.b16 %v3272, %v3257
        %v3783 = vpack.c.b16 %v3273, %v3258
        %v3784 = vpack.c.b16 %v3274, %v3259
        %v3785 = vpack.c.b16 %v3275, %v3260
        %v3786 = vpack.c.b16 %v3291, %v3276
        %v3787 = vpack.c.b16 %v3292, %v3277
        %v3788 = vpack.c.b16 %v3293, %v3278
        %v3789 = vpack.c.b16 %v3294, %v3279
        %v3790 = vpack.c.b16 %v3295, %v3280
        %v3791 = vpack.c.b16 %v3296, %v3281
        %v3792 = vpack.c.b16 %v3297, %v3282
        %v3793 = vpack.c.b16 %v3298, %v3283
        %v3794 = vpack.c.b16 %v3299, %v3284
        %v3795 = vpack.c.b16 %v3300, %v3285
        %v3796 = vpack.c.b16 %v3301, %v3286
        %v3797 = vpack.c.b16 %v3302, %v3287
        %v3798 = vpack.c.b16 %v3303, %v3288
        %v3799 = vpack.c.b16 %v3304, %v3289
        %v3800 = vpack.c.b16 %v3305, %v3290
        %v3801 = vpack.c.b16 %v3321, %v3306
        %v3802 = vpack.c.b16 %v3322, %v3307
        %v3803 = vpack.c.b16 %v3323, %v3308
        %v3804 = vpack.c.b16 %v3324, %v3309
        %v3805 = vpack.c.b16 %v3325, %v3310
        %v3806 = vpack.c.b16 %v3326, %v3311
        %v3807 = vpack.c.b16 %v3327, %v3312
        %v3808 = vpack.c.b16 %v3328, %v3313
        %v3809 = vpack.c.b16 %v3329, %v3314
        %v3810 = vpack.c.b16 %v3330, %v3315
        %v3811 = vpack.c.b16 %v3331, %v3316
        %v3812 = vpack.c.b16 %v3332, %v3317
        %v3813 = vpack.c.b16 %v3333, %v3318
        %v3814 = vpack.c.b16 %v3334, %v3319
        %v3815 = vpack.c.b16 %v3335, %v3320
        %4296 = vmatprep.subr.bf16.mxu0 %v3442
        %4297 = vmatpush1.bf16.msra.mxu0 %v3441
        %4298 = vmatprep.subr.bf16.mxu0 %v3427
        %4299 = vmatpush1.bf16.msra.mxu0 %v3426
        %4300 = vmatprep.subr.bf16.mxu0 %v3412
        %4301 = vmatpush1.bf16.msra.mxu0 %v3411
        %4302 = vmatprep.subr.bf16.mxu0 %v3397
        %4303 = vmatpush1.bf16.msra.mxu0 %v3396
        %4304 = vmatprep.subr.bf16.mxu0 %v3382
        %4305 = vmatpush1.bf16.msra.mxu0 %v3381
        %4306 = vmatprep.subr.bf16.mxu0 %v3367
        %4307 = vmatpush1.bf16.msra.mxu0 %v3366
        %4308 = vmatprep.subr.bf16.mxu0 %v3352
        %4309 = vmatpush1.bf16.msra.mxu0 %v3351
        %4310 = vmatprep.subr.bf16.mxu0 %v3337
        %4311 = vmatpush1.bf16.msra.mxu0 %v3336
        %4312 = vmatprep.subr.bf16.mxu0 %v3562
        %4313 = vmatpush2.bf16.msra.mxu0 %v3561
        %4314 = vmatprep.subr.bf16.mxu0 %v3547
        %4315 = vmatpush2.bf16.msra.mxu0 %v3546
        %4316 = vmatprep.subr.bf16.mxu0 %v3532
        %4317 = vmatpush2.bf16.msra.mxu0 %v3531
        %4318 = vmatprep.subr.bf16.mxu0 %v3517
        %4319 = vmatpush2.bf16.msra.mxu0 %v3516
        %4320 = vmatprep.subr.bf16.mxu0 %v3502
        %4321 = vmatpush2.bf16.msra.mxu0 %v3501
        %4322 = vmatprep.subr.bf16.mxu0 %v3487
        %4323 = vmatpush2.bf16.msra.mxu0 %v3486
        %4324 = vmatprep.subr.bf16.mxu0 %v3472
        %4325 = vmatpush2.bf16.msra.mxu0 %v3471
        %4326 = vmatprep.subr.bf16.mxu0 %v3457
        %4327 = vmatpush2.bf16.msra.mxu0 %v3456
        %4328 = vmatprep.mubr.bf16.mxu0 %v1857
        %4329 = vmatmul.mubr.bf16.gmra.mxu0 %v1850
        %v4330 = vpop.f32.mrf.mxu0
        %v4331 = vadd.f32 %v1763, %v4330
        %v4332 = vpop.f32.mrf.mxu0
        %v4333 = vadd.f32 %v1767, %v4332
        %v4334 = vpop.f32.mrf.mxu0
        %v4335 = vpop.f32.mrf.mxu0
        %4336 = vdwg.mxu0
        %4337 = vmatprep.subr.bf16.mxu0 %v3682
        %4338 = vmatpush1.bf16.msra.mxu0 %v3681
        %4339 = vmatprep.subr.bf16.mxu0 %v3667
        %4340 = vmatpush1.bf16.msra.mxu0 %v3666
        %4341 = vmatprep.subr.bf16.mxu0 %v3652
        %4342 = vmatpush1.bf16.msra.mxu0 %v3651
        %4343 = vmatprep.subr.bf16.mxu0 %v3637
        %4344 = vmatpush1.bf16.msra.mxu0 %v3636
        %4345 = vmatprep.subr.bf16.mxu0 %v3622
        %4346 = vmatpush1.bf16.msra.mxu0 %v3621
        %4347 = vmatprep.subr.bf16.mxu0 %v3607
        %4348 = vmatpush1.bf16.msra.mxu0 %v3606
        %4349 = vmatprep.subr.bf16.mxu0 %v3592
        %4350 = vmatpush1.bf16.msra.mxu0 %v3591
        %4351 = vmatprep.subr.bf16.mxu0 %v3577
        %4352 = vmatpush1.bf16.msra.mxu0 %v3576
        %4353 = vmatprep.subr.bf16.mxu0 %v3802
        %4354 = vmatpush2.bf16.msra.mxu0 %v3801
        %4355 = vmatprep.subr.bf16.mxu0 %v3787
        %4356 = vmatpush2.bf16.msra.mxu0 %v3786
        %4357 = vmatprep.subr.bf16.mxu0 %v3772
        %4358 = vmatpush2.bf16.msra.mxu0 %v3771
        %4359 = vmatprep.subr.bf16.mxu0 %v3757
        %4360 = vmatpush2.bf16.msra.mxu0 %v3756
        %4361 = vmatprep.subr.bf16.mxu0 %v3742
        %4362 = vmatpush2.bf16.msra.mxu0 %v3741
        %4363 = vmatprep.subr.bf16.mxu0 %v3727
        %4364 = vmatpush2.bf16.msra.mxu0 %v3726
        %4365 = vmatprep.subr.bf16.mxu0 %v3712
        %4366 = vmatpush2.bf16.msra.mxu0 %v3711
        %4367 = vmatprep.subr.bf16.mxu0 %v3697
        %4368 = vmatpush2.bf16.msra.mxu0 %v3696
        %4369 = vmatprep.mubr.bf16.mxu0 %v1859
        %4370 = vmatmul.mubr.bf16.gmra.mxu0 %v1858
        %v4371 = vpop.f32.mrf.mxu0
        %v4372 = vadd.f32 %v4331, %v4371
        %v4373 = vpop.f32.mrf.mxu0
        %v4374 = vadd.f32 %v4333, %v4373
        %v4375 = vpop.f32.mrf.mxu0
        %v4376 = vpop.f32.mrf.mxu0
        %4377 = vdwg.mxu0
        %4378 = vmatprep.subr.bf16.mxu0 %v3444
        %4379 = vmatpush1.bf16.msra.mxu0 %v3443
        %4380 = vmatprep.subr.bf16.mxu0 %v3429
        %4381 = vmatpush1.bf16.msra.mxu0 %v3428
        %4382 = vmatprep.subr.bf16.mxu0 %v3414
        %4383 = vmatpush1.bf16.msra.mxu0 %v3413
        %4384 = vmatprep.subr.bf16.mxu0 %v3399
        %4385 = vmatpush1.bf16.msra.mxu0 %v3398
        %4386 = vmatprep.subr.bf16.mxu0 %v3384
        %4387 = vmatpush1.bf16.msra.mxu0 %v3383
        %4388 = vmatprep.subr.bf16.mxu0 %v3369
        %4389 = vmatpush1.bf16.msra.mxu0 %v3368
        %4390 = vmatprep.subr.bf16.mxu0 %v3354
        %4391 = vmatpush1.bf16.msra.mxu0 %v3353
        %4392 = vmatprep.subr.bf16.mxu0 %v3339
        %4393 = vmatpush1.bf16.msra.mxu0 %v3338
        %4394 = vmatprep.subr.bf16.mxu0 %v3564
        %4395 = vmatpush2.bf16.msra.mxu0 %v3563
        %4396 = vmatprep.subr.bf16.mxu0 %v3549
        %4397 = vmatpush2.bf16.msra.mxu0 %v3548
        %4398 = vmatprep.subr.bf16.mxu0 %v3534
        %4399 = vmatpush2.bf16.msra.mxu0 %v3533
        %4400 = vmatprep.subr.bf16.mxu0 %v3519
        %4401 = vmatpush2.bf16.msra.mxu0 %v3518
        %4402 = vmatprep.subr.bf16.mxu0 %v3504
        %4403 = vmatpush2.bf16.msra.mxu0 %v3503
        %4404 = vmatprep.subr.bf16.mxu0 %v3489
        %4405 = vmatpush2.bf16.msra.mxu0 %v3488
        %4406 = vmatprep.subr.bf16.mxu0 %v3474
        %4407 = vmatpush2.bf16.msra.mxu0 %v3473
        %4408 = vmatprep.subr.bf16.mxu0 %v3459
        %4409 = vmatpush2.bf16.msra.mxu0 %v3458
        %4410 = vmatprep.mubr.bf16.mxu0 %v1857
        %4411 = vmatmul.mubr.bf16.gmra.mxu0 %v1850
        %v4412 = vpop.f32.mrf.mxu0
        %v4413 = vadd.f32 %v1771, %v4412
        %v4414 = vpop.f32.mrf.mxu0
        %v4415 = vadd.f32 %v1775, %v4414
        %v4416 = vpop.f32.mrf.mxu0
        %v4417 = vpop.f32.mrf.mxu0
        %4418 = vdwg.mxu0
        %4419 = vmatprep.subr.bf16.mxu0 %v3684
        %4420 = vmatpush1.bf16.msra.mxu0 %v3683
        %4421 = vmatprep.subr.bf16.mxu0 %v3669
        %4422 = vmatpush1.bf16.msra.mxu0 %v3668
        %4423 = vmatprep.subr.bf16.mxu0 %v3654
        %4424 = vmatpush1.bf16.msra.mxu0 %v3653
        %4425 = vmatprep.subr.bf16.mxu0 %v3639
        %4426 = vmatpush1.bf16.msra.mxu0 %v3638
        %4427 = vmatprep.subr.bf16.mxu0 %v3624
        %4428 = vmatpush1.bf16.msra.mxu0 %v3623
        %4429 = vmatprep.subr.bf16.mxu0 %v3609
        %4430 = vmatpush1.bf16.msra.mxu0 %v3608
        %4431 = vmatprep.subr.bf16.mxu0 %v3594
        %4432 = vmatpush1.bf16.msra.mxu0 %v3593
        %4433 = vmatprep.subr.bf16.mxu0 %v3579
        %4434 = vmatpush1.bf16.msra.mxu0 %v3578
        %4435 = vmatprep.subr.bf16.mxu0 %v3804
        %4436 = vmatpush2.bf16.msra.mxu0 %v3803
        %4437 = vmatprep.subr.bf16.mxu0 %v3789
        %4438 = vmatpush2.bf16.msra.mxu0 %v3788
        %4439 = vmatprep.subr.bf16.mxu0 %v3774
        %4440 = vmatpush2.bf16.msra.mxu0 %v3773
        %4441 = vmatprep.subr.bf16.mxu0 %v3759
        %4442 = vmatpush2.bf16.msra.mxu0 %v3758
        %4443 = vmatprep.subr.bf16.mxu0 %v3744
        %4444 = vmatpush2.bf16.msra.mxu0 %v3743
        %4445 = vmatprep.subr.bf16.mxu0 %v3729
        %4446 = vmatpush2.bf16.msra.mxu0 %v3728
        %4447 = vmatprep.subr.bf16.mxu0 %v3714
        %4448 = vmatpush2.bf16.msra.mxu0 %v3713
        %4449 = vmatprep.subr.bf16.mxu0 %v3699
        %4450 = vmatpush2.bf16.msra.mxu0 %v3698
        %4451 = vmatprep.mubr.bf16.mxu0 %v1859
        %4452 = vmatmul.mubr.bf16.gmra.mxu0 %v1858
        %v4453 = vpop.f32.mrf.mxu0
        %v4454 = vadd.f32 %v4413, %v4453
        %v4455 = vpop.f32.mrf.mxu0
        %v4456 = vadd.f32 %v4415, %v4455
        %v4457 = vpop.f32.mrf.mxu0
        %v4458 = vpop.f32.mrf.mxu0
        %4459 = vdwg.mxu0
        %4460 = vmatprep.subr.bf16.mxu0 %v3446
        %4461 = vmatpush1.bf16.msra.mxu0 %v3445
        %4462 = vmatprep.subr.bf16.mxu0 %v3431
        %4463 = vmatpush1.bf16.msra.mxu0 %v3430
        %4464 = vmatprep.subr.bf16.mxu0 %v3416
        %4465 = vmatpush1.bf16.msra.mxu0 %v3415
        %4466 = vmatprep.subr.bf16.mxu0 %v3401
        %4467 = vmatpush1.bf16.msra.mxu0 %v3400
        %4468 = vmatprep.subr.bf16.mxu0 %v3386
        %4469 = vmatpush1.bf16.msra.mxu0 %v3385
        %4470 = vmatprep.subr.bf16.mxu0 %v3371
        %4471 = vmatpush1.bf16.msra.mxu0 %v3370
        %4472 = vmatprep.subr.bf16.mxu0 %v3356
        %4473 = vmatpush1.bf16.msra.mxu0 %v3355
        %4474 = vmatprep.subr.bf16.mxu0 %v3341
        %4475 = vmatpush1.bf16.msra.mxu0 %v3340
        %4476 = vmatprep.subr.bf16.mxu0 %v3566
        %4477 = vmatpush2.bf16.msra.mxu0 %v3565
        %4478 = vmatprep.subr.bf16.mxu0 %v3551
        %4479 = vmatpush2.bf16.msra.mxu0 %v3550
        %4480 = vmatprep.subr.bf16.mxu0 %v3536
        %4481 = vmatpush2.bf16.msra.mxu0 %v3535
        %4482 = vmatprep.subr.bf16.mxu0 %v3521
        %4483 = vmatpush2.bf16.msra.mxu0 %v3520
        %4484 = vmatprep.subr.bf16.mxu0 %v3506
        %4485 = vmatpush2.bf16.msra.mxu0 %v3505
        %4486 = vmatprep.subr.bf16.mxu0 %v3491
        %4487 = vmatpush2.bf16.msra.mxu0 %v3490
        %4488 = vmatprep.subr.bf16.mxu0 %v3476
        %4489 = vmatpush2.bf16.msra.mxu0 %v3475
        %4490 = vmatprep.subr.bf16.mxu0 %v3461
        %4491 = vmatpush2.bf16.msra.mxu0 %v3460
        %4492 = vmatprep.mubr.bf16.mxu0 %v1857
        %4493 = vmatmul.mubr.bf16.gmra.mxu0 %v1850
        %v4494 = vpop.f32.mrf.mxu0
        %v4495 = vadd.f32 %v1779, %v4494
        %v4496 = vpop.f32.mrf.mxu0
        %v4497 = vadd.f32 %v1783, %v4496
        %v4498 = vpop.f32.mrf.mxu0
        %v4499 = vpop.f32.mrf.mxu0
        %4500 = vdwg.mxu0
        %4501 = vmatprep.subr.bf16.mxu0 %v3686
        %4502 = vmatpush1.bf16.msra.mxu0 %v3685
        %4503 = vmatprep.subr.bf16.mxu0 %v3671
        %4504 = vmatpush1.bf16.msra.mxu0 %v3670
        %4505 = vmatprep.subr.bf16.mxu0 %v3656
        %4506 = vmatpush1.bf16.msra.mxu0 %v3655
        %4507 = vmatprep.subr.bf16.mxu0 %v3641
        %4508 = vmatpush1.bf16.msra.mxu0 %v3640
        %4509 = vmatprep.subr.bf16.mxu0 %v3626
        %4510 = vmatpush1.bf16.msra.mxu0 %v3625
        %4511 = vmatprep.subr.bf16.mxu0 %v3611
        %4512 = vmatpush1.bf16.msra.mxu0 %v3610
        %4513 = vmatprep.subr.bf16.mxu0 %v3596
        %4514 = vmatpush1.bf16.msra.mxu0 %v3595
        %4515 = vmatprep.subr.bf16.mxu0 %v3581
        %4516 = vmatpush1.bf16.msra.mxu0 %v3580
        %4517 = vmatprep.subr.bf16.mxu0 %v3806
        %4518 = vmatpush2.bf16.msra.mxu0 %v3805
        %4519 = vmatprep.subr.bf16.mxu0 %v3791
        %4520 = vmatpush2.bf16.msra.mxu0 %v3790
        %4521 = vmatprep.subr.bf16.mxu0 %v3776
        %4522 = vmatpush2.bf16.msra.mxu0 %v3775
        %4523 = vmatprep.subr.bf16.mxu0 %v3761
        %4524 = vmatpush2.bf16.msra.mxu0 %v3760
        %4525 = vmatprep.subr.bf16.mxu0 %v3746
        %4526 = vmatpush2.bf16.msra.mxu0 %v3745
        %4527 = vmatprep.subr.bf16.mxu0 %v3731
        %4528 = vmatpush2.bf16.msra.mxu0 %v3730
        %4529 = vmatprep.subr.bf16.mxu0 %v3716
        %4530 = vmatpush2.bf16.msra.mxu0 %v3715
        %4531 = vmatprep.subr.bf16.mxu0 %v3701
        %4532 = vmatpush2.bf16.msra.mxu0 %v3700
        %4533 = vmatprep.mubr.bf16.mxu0 %v1859
        %4534 = vmatmul.mubr.bf16.gmra.mxu0 %v1858
        %v4535 = vpop.f32.mrf.mxu0
        %v4536 = vadd.f32 %v4495, %v4535
        %v4537 = vpop.f32.mrf.mxu0
        %v4538 = vadd.f32 %v4497, %v4537
        %v4539 = vpop.f32.mrf.mxu0
        %v4540 = vpop.f32.mrf.mxu0
        %4541 = vdwg.mxu0
        %4542 = vmatprep.subr.bf16.mxu0 %v3448
        %4543 = vmatpush1.bf16.msra.mxu0 %v3447
        %4544 = vmatprep.subr.bf16.mxu0 %v3433
        %4545 = vmatpush1.bf16.msra.mxu0 %v3432
        %4546 = vmatprep.subr.bf16.mxu0 %v3418
        %4547 = vmatpush1.bf16.msra.mxu0 %v3417
        %4548 = vmatprep.subr.bf16.mxu0 %v3403
        %4549 = vmatpush1.bf16.msra.mxu0 %v3402
        %4550 = vmatprep.subr.bf16.mxu0 %v3388
        %4551 = vmatpush1.bf16.msra.mxu0 %v3387
        %4552 = vmatprep.subr.bf16.mxu0 %v3373
        %4553 = vmatpush1.bf16.msra.mxu0 %v3372
        %4554 = vmatprep.subr.bf16.mxu0 %v3358
        %4555 = vmatpush1.bf16.msra.mxu0 %v3357
        %4556 = vmatprep.subr.bf16.mxu0 %v3343
        %4557 = vmatpush1.bf16.msra.mxu0 %v3342
        %4558 = vmatprep.subr.bf16.mxu0 %v3568
        %4559 = vmatpush2.bf16.msra.mxu0 %v3567
        %4560 = vmatprep.subr.bf16.mxu0 %v3553
        %4561 = vmatpush2.bf16.msra.mxu0 %v3552
        %4562 = vmatprep.subr.bf16.mxu0 %v3538
        %4563 = vmatpush2.bf16.msra.mxu0 %v3537
        %4564 = vmatprep.subr.bf16.mxu0 %v3523
        %4565 = vmatpush2.bf16.msra.mxu0 %v3522
        %4566 = vmatprep.subr.bf16.mxu0 %v3508
        %4567 = vmatpush2.bf16.msra.mxu0 %v3507
        %4568 = vmatprep.subr.bf16.mxu0 %v3493
        %4569 = vmatpush2.bf16.msra.mxu0 %v3492
        %4570 = vmatprep.subr.bf16.mxu0 %v3478
        %4571 = vmatpush2.bf16.msra.mxu0 %v3477
        %4572 = vmatprep.subr.bf16.mxu0 %v3463
        %4573 = vmatpush2.bf16.msra.mxu0 %v3462
        %4574 = vmatprep.mubr.bf16.mxu0 %v1857
        %4575 = vmatmul.mubr.bf16.gmra.mxu0 %v1850
        %v4576 = vpop.f32.mrf.mxu0
        %v4577 = vadd.f32 %v1787, %v4576
        %v4578 = vpop.f32.mrf.mxu0
        %v4579 = vadd.f32 %v1791, %v4578
        %v4580 = vpop.f32.mrf.mxu0
        %v4581 = vpop.f32.mrf.mxu0
        %4582 = vdwg.mxu0
        %4583 = vmatprep.subr.bf16.mxu0 %v3688
        %4584 = vmatpush1.bf16.msra.mxu0 %v3687
        %4585 = vmatprep.subr.bf16.mxu0 %v3673
        %4586 = vmatpush1.bf16.msra.mxu0 %v3672
        %4587 = vmatprep.subr.bf16.mxu0 %v3658
        %4588 = vmatpush1.bf16.msra.mxu0 %v3657
        %4589 = vmatprep.subr.bf16.mxu0 %v3643
        %4590 = vmatpush1.bf16.msra.mxu0 %v3642
        %4591 = vmatprep.subr.bf16.mxu0 %v3628
        %4592 = vmatpush1.bf16.msra.mxu0 %v3627
        %4593 = vmatprep.subr.bf16.mxu0 %v3613
        %4594 = vmatpush1.bf16.msra.mxu0 %v3612
        %4595 = vmatprep.subr.bf16.mxu0 %v3598
        %4596 = vmatpush1.bf16.msra.mxu0 %v3597
        %4597 = vmatprep.subr.bf16.mxu0 %v3583
        %4598 = vmatpush1.bf16.msra.mxu0 %v3582
        %4599 = vmatprep.subr.bf16.mxu0 %v3808
        %4600 = vmatpush2.bf16.msra.mxu0 %v3807
        %4601 = vmatprep.subr.bf16.mxu0 %v3793
        %4602 = vmatpush2.bf16.msra.mxu0 %v3792
        %4603 = vmatprep.subr.bf16.mxu0 %v3778
        %4604 = vmatpush2.bf16.msra.mxu0 %v3777
        %4605 = vmatprep.subr.bf16.mxu0 %v3763
        %4606 = vmatpush2.bf16.msra.mxu0 %v3762
        %4607 = vmatprep.subr.bf16.mxu0 %v3748
        %4608 = vmatpush2.bf16.msra.mxu0 %v3747
        %4609 = vmatprep.subr.bf16.mxu0 %v3733
        %4610 = vmatpush2.bf16.msra.mxu0 %v3732
        %4611 = vmatprep.subr.bf16.mxu0 %v3718
        %4612 = vmatpush2.bf16.msra.mxu0 %v3717
        %4613 = vmatprep.subr.bf16.mxu0 %v3703
        %4614 = vmatpush2.bf16.msra.mxu0 %v3702
        %4615 = vmatprep.mubr.bf16.mxu0 %v1859
        %4616 = vmatmul.mubr.bf16.gmra.mxu0 %v1858
        %v4617 = vpop.f32.mrf.mxu0
        %v4618 = vadd.f32 %v4577, %v4617
        %v4619 = vpop.f32.mrf.mxu0
        %v4620 = vadd.f32 %v4579, %v4619
        %v4621 = vpop.f32.mrf.mxu0
        %v4622 = vpop.f32.mrf.mxu0
        %4623 = vdwg.mxu0
        %4624 = vmatprep.subr.bf16.mxu0 %v3450
        %4625 = vmatpush1.bf16.msra.mxu0 %v3449
        %4626 = vmatprep.subr.bf16.mxu0 %v3435
        %4627 = vmatpush1.bf16.msra.mxu0 %v3434
        %4628 = vmatprep.subr.bf16.mxu0 %v3420
        %4629 = vmatpush1.bf16.msra.mxu0 %v3419
        %4630 = vmatprep.subr.bf16.mxu0 %v3405
        %4631 = vmatpush1.bf16.msra.mxu0 %v3404
        %4632 = vmatprep.subr.bf16.mxu0 %v3390
        %4633 = vmatpush1.bf16.msra.mxu0 %v3389
        %4634 = vmatprep.subr.bf16.mxu0 %v3375
        %4635 = vmatpush1.bf16.msra.mxu0 %v3374
        %4636 = vmatprep.subr.bf16.mxu0 %v3360
        %4637 = vmatpush1.bf16.msra.mxu0 %v3359
        %4638 = vmatprep.subr.bf16.mxu0 %v3345
        %4639 = vmatpush1.bf16.msra.mxu0 %v3344
        %4640 = vmatprep.subr.bf16.mxu0 %v3570
        %4641 = vmatpush2.bf16.msra.mxu0 %v3569
        %4642 = vmatprep.subr.bf16.mxu0 %v3555
        %4643 = vmatpush2.bf16.msra.mxu0 %v3554
        %4644 = vmatprep.subr.bf16.mxu0 %v3540
        %4645 = vmatpush2.bf16.msra.mxu0 %v3539
        %4646 = vmatprep.subr.bf16.mxu0 %v3525
        %4647 = vmatpush2.bf16.msra.mxu0 %v3524
        %4648 = vmatprep.subr.bf16.mxu0 %v3510
        %4649 = vmatpush2.bf16.msra.mxu0 %v3509
        %4650 = vmatprep.subr.bf16.mxu0 %v3495
        %4651 = vmatpush2.bf16.msra.mxu0 %v3494
        %4652 = vmatprep.subr.bf16.mxu0 %v3480
        %4653 = vmatpush2.bf16.msra.mxu0 %v3479
        %4654 = vmatprep.subr.bf16.mxu0 %v3465
        %4655 = vmatpush2.bf16.msra.mxu0 %v3464
        %4656 = vmatprep.mubr.bf16.mxu0 %v1857
        %4657 = vmatmul.mubr.bf16.gmra.mxu0 %v1850
        %v4658 = vpop.f32.mrf.mxu0
        %v4659 = vadd.f32 %v1795, %v4658
        %v4660 = vpop.f32.mrf.mxu0
        %v4661 = vadd.f32 %v1799, %v4660
        %v4662 = vpop.f32.mrf.mxu0
        %v4663 = vpop.f32.mrf.mxu0
        %4664 = vdwg.mxu0
        %4665 = vmatprep.subr.bf16.mxu0 %v3690
        %4666 = vmatpush1.bf16.msra.mxu0 %v3689
        %4667 = vmatprep.subr.bf16.mxu0 %v3675
        %4668 = vmatpush1.bf16.msra.mxu0 %v3674
        %4669 = vmatprep.subr.bf16.mxu0 %v3660
        %4670 = vmatpush1.bf16.msra.mxu0 %v3659
        %4671 = vmatprep.subr.bf16.mxu0 %v3645
        %4672 = vmatpush1.bf16.msra.mxu0 %v3644
        %4673 = vmatprep.subr.bf16.mxu0 %v3630
        %4674 = vmatpush1.bf16.msra.mxu0 %v3629
        %4675 = vmatprep.subr.bf16.mxu0 %v3615
        %4676 = vmatpush1.bf16.msra.mxu0 %v3614
        %4677 = vmatprep.subr.bf16.mxu0 %v3600
        %4678 = vmatpush1.bf16.msra.mxu0 %v3599
        %4679 = vmatprep.subr.bf16.mxu0 %v3585
        %4680 = vmatpush1.bf16.msra.mxu0 %v3584
        %4681 = vmatprep.subr.bf16.mxu0 %v3810
        %4682 = vmatpush2.bf16.msra.mxu0 %v3809
        %4683 = vmatprep.subr.bf16.mxu0 %v3795
        %4684 = vmatpush2.bf16.msra.mxu0 %v3794
        %4685 = vmatprep.subr.bf16.mxu0 %v3780
        %4686 = vmatpush2.bf16.msra.mxu0 %v3779
        %4687 = vmatprep.subr.bf16.mxu0 %v3765
        %4688 = vmatpush2.bf16.msra.mxu0 %v3764
        %4689 = vmatprep.subr.bf16.mxu0 %v3750
        %4690 = vmatpush2.bf16.msra.mxu0 %v3749
        %4691 = vmatprep.subr.bf16.mxu0 %v3735
        %4692 = vmatpush2.bf16.msra.mxu0 %v3734
        %4693 = vmatprep.subr.bf16.mxu0 %v3720
        %4694 = vmatpush2.bf16.msra.mxu0 %v3719
        %4695 = vmatprep.subr.bf16.mxu0 %v3705
        %4696 = vmatpush2.bf16.msra.mxu0 %v3704
        %4697 = vmatprep.mubr.bf16.mxu0 %v1859
        %4698 = vmatmul.mubr.bf16.gmra.mxu0 %v1858
        %v4699 = vpop.f32.mrf.mxu0
        %v4700 = vadd.f32 %v4659, %v4699
        %v4701 = vpop.f32.mrf.mxu0
        %v4702 = vadd.f32 %v4661, %v4701
        %v4703 = vpop.f32.mrf.mxu0
        %v4704 = vpop.f32.mrf.mxu0
        %4705 = vdwg.mxu0
        %4706 = vmatprep.subr.bf16.mxu0 %v3452
        %4707 = vmatpush1.bf16.msra.mxu0 %v3451
        %4708 = vmatprep.subr.bf16.mxu0 %v3437
        %4709 = vmatpush1.bf16.msra.mxu0 %v3436
        %4710 = vmatprep.subr.bf16.mxu0 %v3422
        %4711 = vmatpush1.bf16.msra.mxu0 %v3421
        %4712 = vmatprep.subr.bf16.mxu0 %v3407
        %4713 = vmatpush1.bf16.msra.mxu0 %v3406
        %4714 = vmatprep.subr.bf16.mxu0 %v3392
        %4715 = vmatpush1.bf16.msra.mxu0 %v3391
        %4716 = vmatprep.subr.bf16.mxu0 %v3377
        %4717 = vmatpush1.bf16.msra.mxu0 %v3376
        %4718 = vmatprep.subr.bf16.mxu0 %v3362
        %4719 = vmatpush1.bf16.msra.mxu0 %v3361
        %4720 = vmatprep.subr.bf16.mxu0 %v3347
        %4721 = vmatpush1.bf16.msra.mxu0 %v3346
        %4722 = vmatprep.subr.bf16.mxu0 %v3572
        %4723 = vmatpush2.bf16.msra.mxu0 %v3571
        %4724 = vmatprep.subr.bf16.mxu0 %v3557
        %4725 = vmatpush2.bf16.msra.mxu0 %v3556
        %4726 = vmatprep.subr.bf16.mxu0 %v3542
        %4727 = vmatpush2.bf16.msra.mxu0 %v3541
        %4728 = vmatprep.subr.bf16.mxu0 %v3527
        %4729 = vmatpush2.bf16.msra.mxu0 %v3526
        %4730 = vmatprep.subr.bf16.mxu0 %v3512
        %4731 = vmatpush2.bf16.msra.mxu0 %v3511
        %4732 = vmatprep.subr.bf16.mxu0 %v3497
        %4733 = vmatpush2.bf16.msra.mxu0 %v3496
        %4734 = vmatprep.subr.bf16.mxu0 %v3482
        %4735 = vmatpush2.bf16.msra.mxu0 %v3481
        %4736 = vmatprep.subr.bf16.mxu0 %v3467
        %4737 = vmatpush2.bf16.msra.mxu0 %v3466
        %4738 = vmatprep.mubr.bf16.mxu0 %v1857
        %4739 = vmatmul.mubr.bf16.gmra.mxu0 %v1850
        %v4740 = vpop.f32.mrf.mxu0
        %v4741 = vadd.f32 %v1803, %v4740
        %v4742 = vpop.f32.mrf.mxu0
        %v4743 = vadd.f32 %v1807, %v4742
        %v4744 = vpop.f32.mrf.mxu0
        %v4745 = vpop.f32.mrf.mxu0
        %4746 = vdwg.mxu0
        %4747 = vmatprep.subr.bf16.mxu0 %v3692
        %4748 = vmatpush1.bf16.msra.mxu0 %v3691
        %4749 = vmatprep.subr.bf16.mxu0 %v3677
        %4750 = vmatpush1.bf16.msra.mxu0 %v3676
        %4751 = vmatprep.subr.bf16.mxu0 %v3662
        %4752 = vmatpush1.bf16.msra.mxu0 %v3661
        %4753 = vmatprep.subr.bf16.mxu0 %v3647
        %4754 = vmatpush1.bf16.msra.mxu0 %v3646
        %4755 = vmatprep.subr.bf16.mxu0 %v3632
        %4756 = vmatpush1.bf16.msra.mxu0 %v3631
        %4757 = vmatprep.subr.bf16.mxu0 %v3617
        %4758 = vmatpush1.bf16.msra.mxu0 %v3616
        %4759 = vmatprep.subr.bf16.mxu0 %v3602
        %4760 = vmatpush1.bf16.msra.mxu0 %v3601
        %4761 = vmatprep.subr.bf16.mxu0 %v3587
        %4762 = vmatpush1.bf16.msra.mxu0 %v3586
        %4763 = vmatprep.subr.bf16.mxu0 %v3812
        %4764 = vmatpush2.bf16.msra.mxu0 %v3811
        %4765 = vmatprep.subr.bf16.mxu0 %v3797
        %4766 = vmatpush2.bf16.msra.mxu0 %v3796
        %4767 = vmatprep.subr.bf16.mxu0 %v3782
        %4768 = vmatpush2.bf16.msra.mxu0 %v3781
        %4769 = vmatprep.subr.bf16.mxu0 %v3767
        %4770 = vmatpush2.bf16.msra.mxu0 %v3766
        %4771 = vmatprep.subr.bf16.mxu0 %v3752
        %4772 = vmatpush2.bf16.msra.mxu0 %v3751
        %4773 = vmatprep.subr.bf16.mxu0 %v3737
        %4774 = vmatpush2.bf16.msra.mxu0 %v3736
        %4775 = vmatprep.subr.bf16.mxu0 %v3722
        %4776 = vmatpush2.bf16.msra.mxu0 %v3721
        %4777 = vmatprep.subr.bf16.mxu0 %v3707
        %4778 = vmatpush2.bf16.msra.mxu0 %v3706
        %4779 = vmatprep.mubr.bf16.mxu0 %v1859
        %4780 = vmatmul.mubr.bf16.gmra.mxu0 %v1858
        %v4781 = vpop.f32.mrf.mxu0
        %v4782 = vadd.f32 %v4741, %v4781
        %v4783 = vpop.f32.mrf.mxu0
        %v4784 = vadd.f32 %v4743, %v4783
        %v4785 = vpop.f32.mrf.mxu0
        %v4786 = vpop.f32.mrf.mxu0
        %4787 = vdwg.mxu0
        %4788 = vmatprep.subr.bf16.mxu0 %v3454
        %4789 = vmatpush1.bf16.msra.mxu0 %v3453
        %4790 = vmatprep.subr.bf16.mxu0 %v3439
        %4791 = vmatpush1.bf16.msra.mxu0 %v3438
        %4792 = vmatprep.subr.bf16.mxu0 %v3424
        %4793 = vmatpush1.bf16.msra.mxu0 %v3423
        %4794 = vmatprep.subr.bf16.mxu0 %v3409
        %4795 = vmatpush1.bf16.msra.mxu0 %v3408
        %4796 = vmatprep.subr.bf16.mxu0 %v3394
        %4797 = vmatpush1.bf16.msra.mxu0 %v3393
        %4798 = vmatprep.subr.bf16.mxu0 %v3379
        %4799 = vmatpush1.bf16.msra.mxu0 %v3378
        %4800 = vmatprep.subr.bf16.mxu0 %v3364
        %4801 = vmatpush1.bf16.msra.mxu0 %v3363
        %4802 = vmatprep.subr.bf16.mxu0 %v3349
        %4803 = vmatpush1.bf16.msra.mxu0 %v3348
        %4804 = vmatprep.subr.bf16.mxu0 %v3574
        %4805 = vmatpush2.bf16.msra.mxu0 %v3573
        %4806 = vmatprep.subr.bf16.mxu0 %v3559
        %4807 = vmatpush2.bf16.msra.mxu0 %v3558
        %4808 = vmatprep.subr.bf16.mxu0 %v3544
        %4809 = vmatpush2.bf16.msra.mxu0 %v3543
        %4810 = vmatprep.subr.bf16.mxu0 %v3529
        %4811 = vmatpush2.bf16.msra.mxu0 %v3528
        %4812 = vmatprep.subr.bf16.mxu0 %v3514
        %4813 = vmatpush2.bf16.msra.mxu0 %v3513
        %4814 = vmatprep.subr.bf16.mxu0 %v3499
        %4815 = vmatpush2.bf16.msra.mxu0 %v3498
        %4816 = vmatprep.subr.bf16.mxu0 %v3484
        %4817 = vmatpush2.bf16.msra.mxu0 %v3483
        %4818 = vmatprep.subr.bf16.mxu0 %v3469
        %4819 = vmatpush2.bf16.msra.mxu0 %v3468
        %4820 = vmatprep.mubr.bf16.mxu0 %v1857
        %4821 = vmatmul.mubr.bf16.gmra.mxu0 %v1850
        %v4822 = vpop.f32.mrf.mxu0
        %v4823 = vadd.f32 %v1811, %v4822
        %v4824 = vpop.f32.mrf.mxu0
        %v4825 = vadd.f32 %v1815, %v4824
        %v4826 = vpop.f32.mrf.mxu0
        %v4827 = vpop.f32.mrf.mxu0
        %4828 = vdwg.mxu0
        %4829 = vmatprep.subr.bf16.mxu0 %v3694
        %4830 = vmatpush1.bf16.msra.mxu0 %v3693
        %4831 = vmatprep.subr.bf16.mxu0 %v3679
        %4832 = vmatpush1.bf16.msra.mxu0 %v3678
        %4833 = vmatprep.subr.bf16.mxu0 %v3664
        %4834 = vmatpush1.bf16.msra.mxu0 %v3663
        %4835 = vmatprep.subr.bf16.mxu0 %v3649
        %4836 = vmatpush1.bf16.msra.mxu0 %v3648
        %4837 = vmatprep.subr.bf16.mxu0 %v3634
        %4838 = vmatpush1.bf16.msra.mxu0 %v3633
        %4839 = vmatprep.subr.bf16.mxu0 %v3619
        %4840 = vmatpush1.bf16.msra.mxu0 %v3618
        %4841 = vmatprep.subr.bf16.mxu0 %v3604
        %4842 = vmatpush1.bf16.msra.mxu0 %v3603
        %4843 = vmatprep.subr.bf16.mxu0 %v3589
        %4844 = vmatpush1.bf16.msra.mxu0 %v3588
        %4845 = vmatprep.subr.bf16.mxu0 %v3814
        %4846 = vmatpush2.bf16.msra.mxu0 %v3813
        %4847 = vmatprep.subr.bf16.mxu0 %v3799
        %4848 = vmatpush2.bf16.msra.mxu0 %v3798
        %4849 = vmatprep.subr.bf16.mxu0 %v3784
        %4850 = vmatpush2.bf16.msra.mxu0 %v3783
        %4851 = vmatprep.subr.bf16.mxu0 %v3769
        %4852 = vmatpush2.bf16.msra.mxu0 %v3768
        %4853 = vmatprep.subr.bf16.mxu0 %v3754
        %4854 = vmatpush2.bf16.msra.mxu0 %v3753
        %4855 = vmatprep.subr.bf16.mxu0 %v3739
        %4856 = vmatpush2.bf16.msra.mxu0 %v3738
        %4857 = vmatprep.subr.bf16.mxu0 %v3724
        %4858 = vmatpush2.bf16.msra.mxu0 %v3723
        %4859 = vmatprep.subr.bf16.mxu0 %v3709
        %4860 = vmatpush2.bf16.msra.mxu0 %v3708
        %4861 = vmatprep.mubr.bf16.mxu0 %v1859
        %4862 = vmatmul.mubr.bf16.gmra.mxu0 %v1858
        %v4863 = vpop.f32.mrf.mxu0
        %v4864 = vadd.f32 %v4823, %v4863
        %v4865 = vpop.f32.mrf.mxu0
        %v4866 = vadd.f32 %v4825, %v4865
        %v4867 = vpop.f32.mrf.mxu0
        %v4868 = vpop.f32.mrf.mxu0
        %4869 = vdwg.mxu0
        %4870 = vmatprep.subr.bf16.mxu0 0
        %4871 = vmatpush1.bf16.msra.mxu0 %v3455
        %4872 = vmatprep.subr.bf16.mxu0 0
        %4873 = vmatpush1.bf16.msra.mxu0 %v3440
        %4874 = vmatprep.subr.bf16.mxu0 0
        %4875 = vmatpush1.bf16.msra.mxu0 %v3425
        %4876 = vmatprep.subr.bf16.mxu0 0
        %4877 = vmatpush1.bf16.msra.mxu0 %v3410
        %4878 = vmatprep.subr.bf16.mxu0 0
        %4879 = vmatpush1.bf16.msra.mxu0 %v3395
        %4880 = vmatprep.subr.bf16.mxu0 0
        %4881 = vmatpush1.bf16.msra.mxu0 %v3380
        %4882 = vmatprep.subr.bf16.mxu0 0
        %4883 = vmatpush1.bf16.msra.mxu0 %v3365
        %4884 = vmatprep.subr.bf16.mxu0 0
        %4885 = vmatpush1.bf16.msra.mxu0 %v3350
        %4886 = vmatprep.subr.bf16.mxu0 0
        %4887 = vmatpush2.bf16.msra.mxu0 %v3575
        %4888 = vmatprep.subr.bf16.mxu0 0
        %4889 = vmatpush2.bf16.msra.mxu0 %v3560
        %4890 = vmatprep.subr.bf16.mxu0 0
        %4891 = vmatpush2.bf16.msra.mxu0 %v3545
        %4892 = vmatprep.subr.bf16.mxu0 0
        %4893 = vmatpush2.bf16.msra.mxu0 %v3530
        %4894 = vmatprep.subr.bf16.mxu0 0
        %4895 = vmatpush2.bf16.msra.mxu0 %v3515
        %4896 = vmatprep.subr.bf16.mxu0 0
        %4897 = vmatpush2.bf16.msra.mxu0 %v3500
        %4898 = vmatprep.subr.bf16.mxu0 0
        %4899 = vmatpush2.bf16.msra.mxu0 %v3485
        %4900 = vmatprep.subr.bf16.mxu0 0
        %4901 = vmatpush2.bf16.msra.mxu0 %v3470
        %4902 = vmatprep.mubr.bf16.mxu0 %v1857
        %4903 = vmatmul.mubr.bf16.gmra.mxu0 %v1850
        %v4904 = vpop.f32.mrf.mxu0
        %v4905 = vadd.f32 %v1819, %v4904
        %v4906 = vpop.f32.mrf.mxu0
        %v4907 = vpop.f32.mrf.mxu0
        %v4908 = vpop.f32.mrf.mxu0
        %4909 = vdwg.mxu0
        %4910 = vmatprep.subr.bf16.mxu0 0
        %4911 = vmatpush1.bf16.msra.mxu0 %v3695
        %4912 = vmatprep.subr.bf16.mxu0 0
        %4913 = vmatpush1.bf16.msra.mxu0 %v3680
        %4914 = vmatprep.subr.bf16.mxu0 0
        %4915 = vmatpush1.bf16.msra.mxu0 %v3665
        %4916 = vmatprep.subr.bf16.mxu0 0
        %4917 = vmatpush1.bf16.msra.mxu0 %v3650
        %4918 = vmatprep.subr.bf16.mxu0 0
        %4919 = vmatpush1.bf16.msra.mxu0 %v3635
        %4920 = vmatprep.subr.bf16.mxu0 0
        %4921 = vmatpush1.bf16.msra.mxu0 %v3620
        %4922 = vmatprep.subr.bf16.mxu0 0
        %4923 = vmatpush1.bf16.msra.mxu0 %v3605
        %4924 = vmatprep.subr.bf16.mxu0 0
        %4925 = vmatpush1.bf16.msra.mxu0 %v3590
        %4926 = vmatprep.subr.bf16.mxu0 0
        %4927 = vmatpush2.bf16.msra.mxu0 %v3815
        %4928 = vmatprep.subr.bf16.mxu0 0
        %4929 = vmatpush2.bf16.msra.mxu0 %v3800
        %4930 = vmatprep.subr.bf16.mxu0 0
        %4931 = vmatpush2.bf16.msra.mxu0 %v3785
        %4932 = vmatprep.subr.bf16.mxu0 0
        %4933 = vmatpush2.bf16.msra.mxu0 %v3770
        %4934 = vmatprep.subr.bf16.mxu0 0
        %4935 = vmatpush2.bf16.msra.mxu0 %v3755
        %4936 = vmatprep.subr.bf16.mxu0 0
        %4937 = vmatpush2.bf16.msra.mxu0 %v3740
        %4938 = vmatprep.subr.bf16.mxu0 0
        %4939 = vmatpush2.bf16.msra.mxu0 %v3725
        %4940 = vmatprep.subr.bf16.mxu0 0
        %4941 = vmatpush2.bf16.msra.mxu0 %v3710
        %4942 = vmatprep.mubr.bf16.mxu0 %v1859
        %4943 = vmatmul.mubr.bf16.gmra.mxu0 %v1858
        %v4944 = vpop.f32.mrf.mxu0
        %v4945 = vadd.f32 %v4905, %v4944
        %v4946 = vpop.f32.mrf.mxu0
        %v4947 = vpop.f32.mrf.mxu0
        %v4948 = vpop.f32.mrf.mxu0
        %4949 = vdwg.mxu0
        %v4950 = vtanh.pop %v4372
        %v4951 = vtanh.pop %v4374
        %v4952 = vtanh.pop %v4454
        %v4953 = vtanh.pop %v4456
        %v4954 = vtanh.pop %v4536
        %v4955 = vtanh.pop %v4538
        %v4956 = vtanh.pop %v4618
        %v4957 = vtanh.pop %v4620
        %v4958 = vtanh.pop %v4700
        %v4959 = vtanh.pop %v4702
        %v4960 = vtanh.pop %v4782
        %v4961 = vtanh.pop %v4784
        %v4962 = vtanh.pop %v4864
        %v4963 = vtanh.pop %v4866
        %v4964 = vtanh.pop %v4945
        %v4980 = vcombine.low %v4950, %v4951
        %v4981 = vcombine.low %v4952, %v4953
        %v4983 = vunpack.c.l.s4 1983009808
        %v4984 = vunpack.c.0.s8 %v4983
        %v4985 = vlaneseq
        %v4986 = vshrl.u32 %v4985, 7
        %v4987 = vsub.s32 %v4984, %v4986
        %v4988 = vrot.slane %v4980, %v4987
        %v4990 = vunpack.c.l.s4 1983009808
        %v4991 = vunpack.c.0.s8 %v4990
        %v4992 = vlaneseq
        %v4993 = vshrl.u32 %v4992, 7
        %v4994 = vsub.s32 %v4991, %v4993
        %v4995 = vrot.slane %v4981, %v4994
        %v4996 = vcombine.low %v4988, %v4995
        %v4997 = vcombine.low %v4954, %v4955
        %v4998 = vcombine.low %v4956, %v4957
        %v5000 = vunpack.c.l.s4 1983009808
        %v5001 = vunpack.c.0.s8 %v5000
        %v5002 = vlaneseq
        %v5003 = vshrl.u32 %v5002, 7
        %v5004 = vsub.s32 %v5001, %v5003
        %v5005 = vrot.slane %v4997, %v5004
        %v5007 = vunpack.c.l.s4 1983009808
        %v5008 = vunpack.c.0.s8 %v5007
        %v5009 = vlaneseq
        %v5010 = vshrl.u32 %v5009, 7
        %v5011 = vsub.s32 %v5008, %v5010
        %v5012 = vrot.slane %v4998, %v5011
        %v5013 = vcombine.low %v5005, %v5012
        %v5014 = vcombine.low %v4958, %v4959
        %v5015 = vcombine.low %v4960, %v4961
        %v5017 = vunpack.c.l.s4 1983009808
        %v5018 = vunpack.c.0.s8 %v5017
        %v5019 = vlaneseq
        %v5020 = vshrl.u32 %v5019, 7
        %v5021 = vsub.s32 %v5018, %v5020
        %v5022 = vrot.slane %v5014, %v5021
        %v5024 = vunpack.c.l.s4 1983009808
        %v5025 = vunpack.c.0.s8 %v5024
        %v5026 = vlaneseq
        %v5027 = vshrl.u32 %v5026, 7
        %v5028 = vsub.s32 %v5025, %v5027
        %v5029 = vrot.slane %v5015, %v5028
        %v5030 = vcombine.low %v5022, %v5029
        %v5031 = vcombine.low %v4962, %v4963
        %v5033 = vunpack.c.l.s4 1983009808
        %v5034 = vunpack.c.0.s8 %v5033
        %v5035 = vlaneseq
        %v5036 = vshrl.u32 %v5035, 7
        %v5037 = vsub.s32 %v5034, %v5036
        %v5038 = vrot.slane %v5031, %v5037
        %v5040 = vunpack.c.l.s4 1983009808
        %v5041 = vunpack.c.0.s8 %v5040
        %v5042 = vlaneseq
        %v5043 = vshrl.u32 %v5042, 7
        %v5044 = vsub.s32 %v5041, %v5043
        %v5045 = vrot.slane %v4964, %v5044
        %v5046 = vcombine.low %v5038, %v5045
        %5051 = vst [vmem:[%s1234] sm:$0xff] %v4996
        %5052 = vst [vmem:[%s1234 + $0x8] sm:$0xff] %v5013
        %5053 = vst [vmem:[%s1234 + $0x10] sm:$0xff] %v5030
        %5054 = vst [vmem:[%s1234 + $0x18] sm:$0x3f] %v5046
        %s5055 = sand.u32 %s98, 1
        %s5056 = scalar_lea.sflag [#allocation4], %s5055
        %s5057 = sand.u32 %s98, 1
        %s5058 = smul.addr %s5057, 30
        %s5059 = scalar_lea.vmem [#allocation3], %s5058
        // Predicated region
        $region59: #{mlp_mapper_forward.1} parent=53 // pred_check
          %p5060 = pneg %p108
        $region60: #{mlp_mapper_forward.1} parent=53 // pred_check_branch
          %5062 = sbr.rel (%p5060) target = $region62
        $region61: #{mlp_mapper_forward.1} parent=53 // pred_region
          %s5063 = smul.u32 15, %s17
          %s5065 = ssub.s32 480, 480
          %5066 = vsyncadd %s5056, %s5065
          %s5067 = smul.addr %s5063, 32
          %s5068 = scalar_lea.hbm %s3, %s5067
          %s5070 = sshll.u32 %s5059, 4
          %s5071 = int_to_ptr.vmem [resolvable:$true] %s5070
          %5073 = dma.vmem_to_hbm [thread:$0]  %s5071, 480, %s5068, %s5056
        $region62: #{mlp_mapper_forward.1} parent=53 // pred_fallthru
          _
      $region54: #{mlp_mapper_forward.1} parent=5 // pred_fallthru
        _
      %p5074 = scmp.le.s32.totalorder 2, %s12
      // Predicated region
      $region63: #{mlp_mapper_forward.1} parent=5 // pred_check
        %p5075 = pneg %p5074
      $region64: #{mlp_mapper_forward.1} parent=5 // pred_check_branch
        %5077 = sbr.rel (%p5075) target = $region66
      $region65: #{mlp_mapper_forward.1} parent=5 // pred_region
        %s5078 = ssub.s32 %s12, 2
        // Predicated region
        $region67: #{mlp_mapper_forward.1} parent=65 // pred_check
          %p5079 = pneg %p114
        $region68: #{mlp_mapper_forward.1} parent=65 // pred_check_branch
          %5081 = sbr.rel (%p5079) target = $region70
        $region69: #{mlp_mapper_forward.1} parent=65 // pred_region
          %s5082 = sand.u32 %s99, 1
          %s5083 = scalar_lea.sflag [#allocation4], %s5082
          %s5084 = sand.u32 %s99, 1
          %s5085 = smul.addr %s5084, 30
          %s5086 = scalar_lea.vmem [#allocation3], %s5085
          %5087 = dma.done %s5083, 480
        $region70: #{mlp_mapper_forward.1} parent=65 // pred_fallthru
          _
      $region66: #{mlp_mapper_forward.1} parent=5 // pred_fallthru
        _
    $region6: #{mlp_mapper_forward.1} parent=1 // loop_footer
      %s16 = sadd.s32 1, %s12
    $region7: #{mlp_mapper_forward.1} parent=1 // loop_footer_branch
      %11 = sbr.rel target = $region3
    $region8: #{mlp_mapper_forward.1} parent=1 // loop_exit
      _
    %5088 = vsyncpa [#allocation4], 1
    %s5089 = scalar_lea.sflag [#allocation4], 1
    %5090 = vsyncpa %s5089, 1

</llo_original>
